<compile_context>
chip_gen: v5e
topology: v5e:2x2
jax: 0.10.0
libtpu: 0.0.40
codegen_flags: <defaults>
</compile_context>

<pallas_src>
import functools

import jax
import jax.numpy as jnp
import numpy as np
from jax import lax
from jax.experimental import pallas as pl
from jax.experimental.pallas import tpu as pltpu


def _round_up(x, m):
    return (x + m - 1) // m * m


# ----------------------------------------------------------------------------
# Plain-JAX glue: bb_process feature construction (elementwise, cheap)
# ----------------------------------------------------------------------------
def bb_features(bb):
    """bb: [B, N, 4] -> [B, N, 10]  (matches SI_GNN.bb_process pre-projection)."""
    bb_size = bb[..., 2:] - bb[..., :2]
    bb_centre = bb[..., :2] + 0.5 * bb_size
    bb_area = (bb_size[..., 0] * bb_size[..., 1])[..., None]
    bb_shape = (bb_size[..., 0] / (bb_size[..., 1] + 1e-14))[..., None]
    return jnp.concatenate([bb, bb_size, bb_centre, bb_area, bb_shape], axis=-1)


# ----------------------------------------------------------------------------
# Pallas kernel: BT samples per grid step
# ----------------------------------------------------------------------------
def _si_gnn_kernel(BT, N_pad, L_pad, Ns, loc, K, fsd_pad,
                   s_ref, v_ref, sbb_ref, vbb_ref, sf_ref, vf_ref,
                   l2s_ref, l3_ref,
                   wfs_s_ref, wfs_b_ref, bfs_ref,
                   wfv_v_ref, wfv_b_ref, bfv_ref,
                   wo1_ref, bo1_ref, wo2_ref, bo2_ref,
                   eps_ref,                                   # SMEM (1, 1)
                   s_out_ref, v_out_ref, adj_out_ref):
    f32 = jnp.float32
    mm_dt = wfs_s_ref.dtype            # bf16 matmul operands, f32 accumulation
    eps = eps_ref[0, 0]
    D_fb = bfs_ref.shape[-1]

    s_all = s_ref[...]                 # (BT*N_pad, fsd_pad) f32
    v_all = v_ref[...]                 # (BT*L_pad, fvd_pad) f32

    # ---- batched row-independent matmuls over the whole batch tile (fills MXU M) ----
    # fs_fa4([s, s_bb]) / fv_fa2([v, v_bb]) without materializing the concats
    fs = (jnp.dot(s_all.astype(mm_dt), wfs_s_ref[...], preferred_element_type=f32)
          + jnp.dot(sbb_ref[...], wfs_b_ref[...], preferred_element_type=f32)
          + bfs_ref[...])              # (BT*N_pad, D_fb)
    fv = (jnp.dot(v_all.astype(mm_dt), wfv_v_ref[...], preferred_element_type=f32)
          + jnp.dot(vbb_ref[...], wfv_b_ref[...], preferred_element_type=f32)
          + bfv_ref[...])              # (BT*L_pad, D_fb)

    # Language gating, batched over the tile. N_pad / L_pad are multiples of 8, so the
    # (BT*rows, D) <-> (BT, rows, D) reshapes never cross an (8,128) tile -> free.
    fs_g = (fs.reshape(BT, N_pad, D_fb) * l3_ref[...]).reshape(BT * N_pad, D_fb)
    fv_g = (fv.reshape(BT, L_pad, D_fb) * l2s_ref[...]).reshape(BT * L_pad, D_fb)

    prep_s = jnp.maximum(
        jnp.dot(fs_g.astype(mm_dt), wo2_ref[...], preferred_element_type=f32)
        + bo2_ref[...], 0.0)           # (BT*N_pad, fvd_pad)  = output_proj2(...)
    prep_v = jnp.maximum(
        jnp.dot(fv_g.astype(mm_dt), wo1_ref[...], preferred_element_type=f32)
        + bo1_ref[...], 0.0)           # (BT*L_pad, fsd_pad)  = output_proj1(...)
    # TODO(synk): F.dropout on prep_s / prep_v skipped (dropout == 0 / eval mode).

    # passthrough half of s_out: one batched, unmasked, lane-aligned store
    # (output_mask is applied in the XLA epilogue together with the -inf adj mask)
    s_out_ref[:, 0:fsd_pad] = s_all

    sf = sf_ref[...]                   # (BT*N_pad, K*inter)  bf16, precomputed s_bb@W1
    vf = vf_ref[...]                   # (BT*L_pad, K*inter)  bf16, precomputed v_bb@W2
    row_ids = lax.broadcasted_iota(jnp.int32, (N_pad, 1), 0)
    col_ids = lax.broadcasted_iota(jnp.int32, (1, L_pad), 1)
    row_pad = (row_ids < Ns).astype(f32)               # zero padded source rows
    col_bias = jnp.where(col_ids < loc, 0.0, -1e30)    # kill padded visual cols pre-softmax
    inv_k = 1.0 / float(K)

    # ---- per-sample adjacency + propagation (only the sample-coupled matmuls left) ----
    for b in range(BT):
        r0 = b * N_pad
        c0 = b * L_pad
        # mean_k (s_bb@W1_k)(v_bb@W2_k)^T == one contraction over the fused K*inter dim
        logits = lax.dot_general(sf[r0:r0 + N_pad], vf[c0:c0 + L_pad],
                                 (((1,), (1,)), ((), ())),
                                 preferred_element_type=f32) * inv_k + col_bias
        mx = jnp.max(logits, axis=-1, keepdims=True)
        ex = jnp.exp(logits - mx)
        # exact reciprocal: keep adj rows summing to 1 (review correctness concern)
        adj = ex * pl.reciprocal(jnp.sum(ex, axis=-1, keepdims=True))
        adj = adj * row_pad                             # (N_pad, L_pad)
        adj_out_ref[r0:r0 + N_pad, :] = adj

        # new_ele = adj^T @ prep_s (contract rows of both). Mosaic's vxpose of adj
        # rides the XLU slot; re-orient only if a bundle dump shows XLU saturated.
        new_ele = lax.dot_general(adj, prep_s[r0:r0 + N_pad, :],
                                  (((0,), (0,)), ((), ())),
                                  preferred_element_type=f32)          # (L_pad, fvd_pad)
        v_out_ref[c0:c0 + L_pad, :] = eps * new_ele + v_all[c0:c0 + L_pad, :]

        s_app = jnp.dot(adj, prep_v[c0:c0 + L_pad, :],
                        preferred_element_type=f32)                    # (N_pad, fsd_pad)
        s_out_ref[r0:r0 + N_pad, fsd_pad:2 * fsd_pad] = s_app


# ----------------------------------------------------------------------------
# Wrapper: hoisted projections, padding, BlockSpecs, pallas_call, XLA epilogue
# ----------------------------------------------------------------------------
def si_gnn_forward(params, l, s, ps, mask_s, v_ori, pv, mask_v=None,
                   penalty_ratio=10.0, batch_tile=4, matmul_dtype=jnp.bfloat16):
    f32 = jnp.float32
    B, Ns, fsd = s.shape
    # loc is taken from v_ori / pv static shapes (mask_v[0] in the module).
    loc, fvd = v_ori.shape[1], v_ori.shape[2]
    bb_dim = params['w_bb'].shape[1]
    K, _, inter = params['W1'].shape
    KI = K * inter
    D_fb = fvd + bb_dim

    # lane-dense output slabs, sublane-aligned source rows
    N_pad = _round_up(Ns, 8)
    L_pad = _round_up(loc, 128)
    fsd_pad = _round_up(fsd, 128)
    fvd_pad = _round_up(fvd, 128)

    # BT*N_pad rows feed every batched matmul; prefer >= 2 grid steps so v7x's two
    # TensorCores both get work (grid axis is "parallel") and the pipeline overlaps.
    BT = max(1, min(batch_tile, B))
    while BT > 1 and _round_up(B, BT) // BT < 2:
        BT //= 2
    B_pad = _round_up(B, BT)

    # ---- hoisted XLA-side prep (low MXU-K-occupancy projections + language gates) ----
    hp = jax.lax.Precision.HIGHEST
    bbs = bb_features(ps)                                             # (B, Ns, 10)
    bbv = bb_features(pv)                                             # (B, loc, 10)
    s_bb = jnp.matmul(bbs, params['w_bb'], precision=hp) + params['b_bb']
    v_bb = jnp.matmul(bbv, params['w_bb'], precision=hp) + params['b_bb']
    # fuse the K adjacency heads into one contraction dimension and pre-project
    W1f = params['W1'].transpose(1, 0, 2).reshape(bb_dim, KI)
    W2f = params['W2'].transpose(1, 0, 2).reshape(bb_dim, KI)
    sf = jnp.matmul(s_bb, W1f, precision=hp)                          # (B, Ns, KI)
    vf = jnp.matmul(v_bb, W2f, precision=hp)                          # (B, loc, KI)
    l2s = jax.nn.softmax(
        jnp.matmul(l, params['w_l2'], precision=hp) + params['b_l2'], axis=-1)
    l3 = jnp.matmul(l, params['w_l3'], precision=hp) + params['b_l3']

    def pad3(x, rows, lanes):
        return jnp.pad(x, ((0, B_pad - B), (0, rows - x.shape[1]), (0, lanes - x.shape[2])))

    s_p = pad3(s, N_pad, fsd_pad).reshape(B_pad * N_pad, fsd_pad)
    v_p = pad3(v_ori, L_pad, fvd_pad).reshape(B_pad * L_pad, fvd_pad)
    sbb_p = pad3(s_bb, N_pad, bb_dim).reshape(B_pad * N_pad, bb_dim).astype(matmul_dtype)
    vbb_p = pad3(v_bb, L_pad, bb_dim).reshape(B_pad * L_pad, bb_dim).astype(matmul_dtype)
    sf_p = pad3(sf, N_pad, KI).reshape(B_pad * N_pad, KI).astype(matmul_dtype)
    vf_p = pad3(vf, L_pad, KI).reshape(B_pad * L_pad, KI).astype(matmul_dtype)
    l2s_p = jnp.pad(l2s, ((0, B_pad - B), (0, 0)))[:, None, :]        # (B_pad, 1, D_fb) f32
    l3_p = jnp.pad(l3, ((0, B_pad - B), (0, 0)))[:, None, :]

    def pad2(x, rows, cols):
        return jnp.pad(x, ((0, rows - x.shape[0]), (0, cols - x.shape[1])))

    # split concat-weights so the kernel never builds [s, s_bb] / [v, v_bb]; zero-pad
    # to the lane-dense widths (zero rows/cols are exact no-ops under the contraction)
    wfs_s = pad2(params['w_fs'][:fsd], fsd_pad, D_fb).astype(matmul_dtype)
    wfs_b = params['w_fs'][fsd:].astype(matmul_dtype)
    wfv_v = pad2(params['w_fv'][:fvd], fvd_pad, D_fb).astype(matmul_dtype)
    wfv_b = params['w_fv'][fvd:].astype(matmul_dtype)
    wo1 = pad2(params['w_o1'], D_fb, fsd_pad).astype(matmul_dtype)
    bo1 = pad2(params['b_o1'], 1, fsd_pad)
    wo2 = pad2(params['w_o2'], D_fb, fvd_pad).astype(matmul_dtype)
    bo2 = pad2(params['b_o2'], 1, fvd_pad)

    kernel = functools.partial(_si_gnn_kernel, BT, N_pad, L_pad, Ns, loc, K, fsd_pad)

    def rows_spec(rows, cols):
        return pl.BlockSpec((rows, cols), lambda g: (g, 0))

    def const_spec(shape):
        # Constant index_map -> each weight block is DMA'd once and re-used across the
        # grid. TODO(synk): pipeline_mode=pl.Buffered(1) would also drop the double
        # buffer, but all weights total <200 KiB even double-buffered, so it is not
        # worth the lowering risk here.
        return pl.BlockSpec(shape, lambda g: (0,) * len(shape))

    gate_spec = pl.BlockSpec((BT, 1, D_fb), lambda g: (g, 0, 0))
    smem_spec = pl.BlockSpec(memory_space=pltpu.MemorySpace.SMEM)

    in_specs = [
        rows_spec(BT * N_pad, fsd_pad),      # s (f32, passthrough + matmul)
        rows_spec(BT * L_pad, fvd_pad),      # v_ori (f32, residual + matmul)
        rows_spec(BT * N_pad, bb_dim),       # s_bb (bf16)
        rows_spec(BT * L_pad, bb_dim),       # v_bb (bf16)
        rows_spec(BT * N_pad, KI),           # sf = s_bb @ W1 (bf16)
        rows_spec(BT * L_pad, KI),           # vf = v_bb @ W2 (bf16)
        gate_spec,                           # softmax(l_proj2(l))
        gate_spec,                           # l_proj3(l)
        const_spec((fsd_pad, D_fb)), const_spec((bb_dim, D_fb)), const_spec((1, D_fb)),  # fs_fa4
        const_spec((fvd_pad, D_fb)), const_spec((bb_dim, D_fb)), const_spec((1, D_fb)),  # fv_fa2
        const_spec((D_fb, fsd_pad)), const_spec((1, fsd_pad)),                           # output_proj1
        const_spec((D_fb, fvd_pad)), const_spec((1, fvd_pad)),                           # output_proj2
        smem_spec,                                                                       # epsilon
    ]
    out_specs = (
        rows_spec(BT * N_pad, 2 * fsd_pad),  # s_out slabs (lane-aligned at fsd_pad)
        rows_spec(BT * L_pad, fvd_pad),      # v_out (lane-dense, padded to 128)
        rows_spec(BT * N_pad, L_pad),        # adj
    )
    out_shape = (
        jax.ShapeDtypeStruct((B_pad * N_pad, 2 * fsd_pad), f32),
        jax.ShapeDtypeStruct((B_pad * L_pad, fvd_pad), f32),
        jax.ShapeDtypeStruct((B_pad * N_pad, L_pad), f32),
    )

    s_out_f, v_out_f, adj_f = pl.pallas_call(
        kernel,
        out_shape=out_shape,
        grid_spec=pltpu.PrefetchScalarGridSpec(
            num_scalar_prefetch=0,
            grid=(B_pad // BT,),
            in_specs=in_specs,
            out_specs=out_specs),
        compiler_params=pltpu.CompilerParams(
            dimension_semantics=("parallel",),
            # ~4 MiB/step at BT=4 (double-buffered blocks + in-kernel temps); 32 MiB
            # leaves ample headroom for Mosaic scratch while staying at 50% of v7x's
            # 64 MiB physical VMEM (25% of v5e/v6e's 128 MiB).
            vmem_limit_bytes=32 * 1024 * 1024),
    )(s_p, v_p, sbb_p, vbb_p, sf_p, vf_p, l2s_p, l3_p,
      wfs_s, wfs_b, params['b_fs'],
      wfv_v, wfv_b, params['b_fv'],
      wo1, bo1, wo2, bo2,
      params['eps'])

    # ---- un-pad + cheap XLA epilogue (output_mask, adj -inf row mask, attention loss)
    s_slab = s_out_f.reshape(B_pad, N_pad, 2 * fsd_pad)[:B, :Ns]
    s_out = jnp.concatenate([s_slab[..., :fsd], s_slab[..., fsd_pad:fsd_pad + fsd]], axis=-1)
    v_out = v_out_f.reshape(B_pad, L_pad, fvd_pad)[:B, :loc, :fvd]
    adj = adj_f.reshape(B_pad, N_pad, L_pad)[:B, :Ns, :loc]

    valid = (jnp.arange(Ns)[None, :] < mask_s[:, None])[:, :, None]
    s_out = s_out * valid.astype(s_out.dtype)                 # output_mask
    adj_out = adj + jnp.where(valid, 0.0, -jnp.inf)           # inf_tmp
    fro = jnp.sum(jnp.sqrt(jnp.sum(adj * adj, axis=-1)), axis=-1) / mask_s.astype(f32)
    loss = -jnp.sum(fro) / penalty_ratio
    return s_out, v_out, adj_out, loss
    # TODO(synk): only it=1 GNN iteration implemented (it>1 changes v's feature width
    # in the original module and would break fv_fa2's input dim anyway).


# ----------------------------------------------------------------------------
# Pure-JAX reference (for cross-checking the kernel)
# ----------------------------------------------------------------------------
def si_gnn_reference(params, l, s, ps, mask_s, v_ori, pv, penalty_ratio=10.0):
    hp = jax.lax.Precision.HIGHEST
    dot = functools.partial(jnp.matmul, precision=hp)
    bbs = bb_features(ps)
    bbv = bb_features(pv)
    s_bb = dot(bbs, params['w_bb']) + params['b_bb']
    v_bb = dot(bbv, params['w_bb']) + params['b_bb']
    v_full = jnp.concatenate([v_ori, v_bb], axis=2)

    s_f = jnp.einsum('bnd,kdi->bkni', s_bb, params['W1'], precision=hp)
    v_f = jnp.einsum('bmd,kdi->bkmi', v_bb, params['W2'], precision=hp)
    adj = jnp.mean(jnp.einsum('bkni,bkmi->bknm', s_f, v_f, precision=hp), axis=1)
    adj = jax.nn.softmax(adj, axis=2)

    lq = l[:, None, :]
    fs = dot(jnp.concatenate([s, s_bb], -1), params['w_fs']) + params['b_fs']
    l3 = dot(lq, params['w_l3']) + params['b_l3']
    prep_s = jax.nn.relu(dot(fs * l3, params['w_o2']) + params['b_o2'])

    fv = dot(v_full, params['w_fv']) + params['b_fv']
    l2 = jax.nn.softmax(dot(lq, params['w_l2']) + params['b_l2'], axis=-1)
    prep_v = jax.nn.relu(dot(fv * l2, params['w_o1']) + params['b_o1'])

    new_ele = dot(jnp.swapaxes(adj, 1, 2), prep_s)
    v_out = params['eps'][0, 0] * new_ele + v_ori
    s_out = jnp.concatenate([s, dot(adj, prep_v)], axis=2)

    valid = (jnp.arange(s.shape[1])[None, :] < mask_s[:, None])[:, :, None]
    s_out = s_out * valid.astype(s.dtype)
    adj_masked = adj + jnp.where(valid, 0.0, -jnp.inf)
    fro = jnp.sum(jnp.linalg.norm(adj, axis=-1), axis=-1) / mask_s.astype(jnp.float32)
    loss = -jnp.sum(fro) / penalty_ratio
    return s_out, v_out, adj_masked, loss


# ----------------------------------------------------------------------------
# Deterministic parameter init (shapes per SI_GNN.__init__; xavier-normal-ish)
# ----------------------------------------------------------------------------
def init_params(key, bb_dim, fvd, fsd, l_dim, inter_dim, K):
    keys = jax.random.split(key, 20)
    kit = iter(keys)

    def xavier(k, shape):
        fan_in, fan_out = shape[-2], shape[-1]
        std = (2.0 / (fan_in + fan_out)) ** 0.5
        return (std * jax.random.normal(k, shape)).astype(jnp.float32)

    def bias(k, dim):
        return (0.01 * jax.random.normal(k, (1, dim))).astype(jnp.float32)

    p = {}
    p['w_bb'] = xavier(next(kit), (10, bb_dim)); p['b_bb'] = bias(next(kit), bb_dim)
    p['W1'] = xavier(next(kit), (K, bb_dim, inter_dim))
    p['W2'] = xavier(next(kit), (K, bb_dim, inter_dim))
    p['w_fs'] = xavier(next(kit), (fsd + bb_dim, fvd + bb_dim)); p['b_fs'] = bias(next(kit), fvd + bb_dim)
    p['w_l2'] = xavier(next(kit), (l_dim, fvd + bb_dim)); p['b_l2'] = bias(next(kit), fvd + bb_dim)
    p['w_l3'] = xavier(next(kit), (l_dim, fvd + bb_dim)); p['b_l3'] = bias(next(kit), fvd + bb_dim)
    p['w_fv'] = xavier(next(kit), (fvd + bb_dim, fvd + bb_dim)); p['b_fv'] = bias(next(kit), fvd + bb_dim)
    p['w_o1'] = xavier(next(kit), (bb_dim + fvd, fsd)); p['b_o1'] = bias(next(kit), fsd)
    p['w_o2'] = xavier(next(kit), (bb_dim + fvd, fvd)); p['b_o2'] = bias(next(kit), fvd)
    p['eps'] = jax.random.normal(next(kit), (1, 1)).astype(jnp.float32)
    return p


if __name__ == "__main__":
    # small shapes (original: Ns=50, loc=100, fsd=300, l_dim=2048)
    B, Ns, loc = 8, 50, 100
    fsd, fvd, bb_dim, l_dim, inter_dim, K = 128, 64, 32, 256, 16, 2

    root = jax.random.PRNGKey(0)
    kparam, kl, ks, kv, kps1, kps2, kpv1, kpv2 = jax.random.split(root, 8)
    params = init_params(kparam, bb_dim, fvd, fsd, l_dim, inter_dim, K)

    l = jax.random.normal(kl, (B, l_dim), jnp.float32)
    s = jax.random.normal(ks, (B, Ns, fsd), jnp.float32)
    v_ori = jax.random.normal(kv, (B, loc, fvd), jnp.float32)
    ps_lo = jax.random.uniform(kps1, (B, Ns, 2), jnp.float32)
    ps = jnp.concatenate(
        [ps_lo, ps_lo + 0.1 + 0.5 * jax.random.uniform(kps2, (B, Ns, 2), jnp.float32)], axis=-1)
    pv_lo = jax.random.uniform(kpv1, (B, loc, 2), jnp.float32)
    pv = jnp.concatenate(
        [pv_lo, pv_lo + 0.1 + 0.5 * jax.random.uniform(kpv2, (B, loc, 2), jnp.float32)], axis=-1)
    mask_s = jnp.array([30, Ns, 7, 44, 50, 12, 25, 3], dtype=jnp.int32)
    mask_v = jnp.array([loc], dtype=jnp.int32)  # loc is taken from v_ori / pv shapes

    fwd = jax.jit(si_gnn_forward)
    s_out, v_out, adj_out, loss = fwd(params, l, s, ps, mask_s, v_ori, pv, mask_v)
    jax.tree_util.tree_map(jax.block_until_ready, (s_out, v_out, adj_out, loss))

    # cross-check against pure-JAX reference (bf16 matmul operands => relaxed atol)
    s_r, v_r, adj_r, loss_r = si_gnn_reference(params, l, s, ps, mask_s, v_ori, pv)
    np.testing.assert_allclose(np.asarray(s_out), np.asarray(s_r), rtol=2e-2, atol=2e-2)
    np.testing.assert_allclose(np.asarray(v_out), np.asarray(v_r), rtol=2e-2, atol=2e-2)
    np.testing.assert_allclose(np.asarray(adj_out), np.asarray(adj_r), rtol=2e-2, atol=2e-3)
    np.testing.assert_allclose(np.asarray(loss), np.asarray(loss_r), rtol=2e-2, atol=2e-3)

    print("KERNEL_OK")
</pallas_src>

<mosaic_0001>
module attributes {stable_mosaic.version = 11 : i64} {
  func.func @_si_gnn_kernel(%arg0: i32, %arg1: memref<224x128xf32, #tpu.memory_space<vmem>>, %arg2: memref<512x128xf32, #tpu.memory_space<vmem>>, %arg3: memref<224x32xbf16, #tpu.memory_space<vmem>>, %arg4: memref<512x32xbf16, #tpu.memory_space<vmem>>, %arg5: memref<224x32xbf16, #tpu.memory_space<vmem>>, %arg6: memref<512x32xbf16, #tpu.memory_space<vmem>>, %arg7: memref<4x1x96xf32, #tpu.memory_space<vmem>>, %arg8: memref<4x1x96xf32, #tpu.memory_space<vmem>>, %arg9: memref<128x96xbf16, #tpu.memory_space<vmem>>, %arg10: memref<32x96xbf16, #tpu.memory_space<vmem>>, %arg11: memref<1x96xf32, #tpu.memory_space<vmem>>, %arg12: memref<128x96xbf16, #tpu.memory_space<vmem>>, %arg13: memref<32x96xbf16, #tpu.memory_space<vmem>>, %arg14: memref<1x96xf32, #tpu.memory_space<vmem>>, %arg15: memref<96x128xbf16, #tpu.memory_space<vmem>>, %arg16: memref<1x128xf32, #tpu.memory_space<vmem>>, %arg17: memref<96x128xbf16, #tpu.memory_space<vmem>>, %arg18: memref<1x128xf32, #tpu.memory_space<vmem>>, %arg19: memref<1x1xf32, #tpu.memory_space<smem>>, %arg20: memref<224x256xf32, #tpu.memory_space<vmem>>, %arg21: memref<512x128xf32, #tpu.memory_space<vmem>>, %arg22: memref<224x128xf32, #tpu.memory_space<vmem>>) attributes {dimension_semantics = [#tpu.dimension_semantics<parallel>], iteration_bounds = array<i64: 2>, scalar_prefetch = 0 : i64, scratch_operands = 0 : i64, tpu.core_type = #tpu.core_type<tc>, window_params = [{transform_indices = @transform_0, window_bounds = array<i64: 224, 128>}, {transform_indices = @transform_1, window_bounds = array<i64: 512, 128>}, {transform_indices = @transform_2, window_bounds = array<i64: 224, 32>}, {transform_indices = @transform_3, window_bounds = array<i64: 512, 32>}, {transform_indices = @transform_4, window_bounds = array<i64: 224, 32>}, {transform_indices = @transform_5, window_bounds = array<i64: 512, 32>}, {transform_indices = @transform_6, window_bounds = array<i64: 4, 1, 96>}, {transform_indices = @transform_7, window_bounds = array<i64: 4, 1, 96>}, {pipeline_mode = #tpu.pipeline_mode<synchronous>, transform_indices = @transform_8, window_bounds = array<i64: 128, 96>}, {pipeline_mode = #tpu.pipeline_mode<synchronous>, transform_indices = @transform_9, window_bounds = array<i64: 32, 96>}, {pipeline_mode = #tpu.pipeline_mode<synchronous>, transform_indices = @transform_10, window_bounds = array<i64: 1, 96>}, {pipeline_mode = #tpu.pipeline_mode<synchronous>, transform_indices = @transform_11, window_bounds = array<i64: 128, 96>}, {pipeline_mode = #tpu.pipeline_mode<synchronous>, transform_indices = @transform_12, window_bounds = array<i64: 32, 96>}, {pipeline_mode = #tpu.pipeline_mode<synchronous>, transform_indices = @transform_13, window_bounds = array<i64: 1, 96>}, {pipeline_mode = #tpu.pipeline_mode<synchronous>, transform_indices = @transform_14, window_bounds = array<i64: 96, 128>}, {pipeline_mode = #tpu.pipeline_mode<synchronous>, transform_indices = @transform_15, window_bounds = array<i64: 1, 128>}, {pipeline_mode = #tpu.pipeline_mode<synchronous>, transform_indices = @transform_16, window_bounds = array<i64: 96, 128>}, {pipeline_mode = #tpu.pipeline_mode<synchronous>, transform_indices = @transform_17, window_bounds = array<i64: 1, 128>}, {transform_indices = @transform_18, window_bounds = array<i64: 1, 1>}, {transform_indices = @transform_19, window_bounds = array<i64: 224, 256>}, {transform_indices = @transform_20, window_bounds = array<i64: 512, 128>}, {transform_indices = @transform_21, window_bounds = array<i64: 224, 128>}]} {
    %c0 = arith.constant 0 : index
    %c0_0 = arith.constant 0 : index
    %0 = memref.load %arg19[%c0, %c0_0] : memref<1x1xf32, #tpu.memory_space<smem>>
    %c0_1 = arith.constant 0 : index
    %c0_2 = arith.constant 0 : index
    %1 = vector.load %arg1[%c0_1, %c0_2] : memref<224x128xf32, #tpu.memory_space<vmem>>, vector<224x128xf32>
    %c0_3 = arith.constant 0 : index
    %c0_4 = arith.constant 0 : index
    %2 = vector.load %arg2[%c0_3, %c0_4] : memref<512x128xf32, #tpu.memory_space<vmem>>, vector<512x128xf32>
    %3 = arith.truncf %1 : vector<224x128xf32> to vector<224x128xbf16>
    %c0_5 = arith.constant 0 : index
    %c0_6 = arith.constant 0 : index
    %4 = vector.load %arg9[%c0_5, %c0_6] : memref<128x96xbf16, #tpu.memory_space<vmem>>, vector<128x96xbf16>
    %cst = arith.constant dense<0.000000e+00> : vector<224x96xf32>
    %5 = tpu.matmul %3, %4, %cst {dimension_numbers = #tpu.dot_dimension_numbers<[1], [0], [0], [1], [0, 0, 1, 1], [], []>} : vector<224x128xbf16>, vector<128x96xbf16>, vector<224x96xf32> -> vector<224x96xf32>
    %c0_7 = arith.constant 0 : index
    %c0_8 = arith.constant 0 : index
    %6 = vector.load %arg3[%c0_7, %c0_8] : memref<224x32xbf16, #tpu.memory_space<vmem>>, vector<224x32xbf16>
    %c0_9 = arith.constant 0 : index
    %c0_10 = arith.constant 0 : index
    %7 = vector.load %arg10[%c0_9, %c0_10] : memref<32x96xbf16, #tpu.memory_space<vmem>>, vector<32x96xbf16>
    %cst_11 = arith.constant dense<0.000000e+00> : vector<224x96xf32>
    %8 = tpu.matmul %6, %7, %cst_11 {dimension_numbers = #tpu.dot_dimension_numbers<[1], [0], [0], [1], [0, 0, 1, 1], [], []>} : vector<224x32xbf16>, vector<32x96xbf16>, vector<224x96xf32> -> vector<224x96xf32>
    %9 = arith.addf %5, %8 : vector<224x96xf32>
    %c0_12 = arith.constant 0 : index
    %c0_13 = arith.constant 0 : index
    %10 = vector.load %arg11[%c0_12, %c0_13] : memref<1x96xf32, #tpu.memory_space<vmem>>, vector<1x96xf32>
    %11 = vector.broadcast %10 : vector<1x96xf32> to vector<224x96xf32>
    %12 = arith.addf %9, %11 : vector<224x96xf32>
    %13 = arith.truncf %2 : vector<512x128xf32> to vector<512x128xbf16>
    %c0_14 = arith.constant 0 : index
    %c0_15 = arith.constant 0 : index
    %14 = vector.load %arg12[%c0_14, %c0_15] : memref<128x96xbf16, #tpu.memory_space<vmem>>, vector<128x96xbf16>
    %cst_16 = arith.constant dense<0.000000e+00> : vector<512x96xf32>
    %15 = tpu.matmul %13, %14, %cst_16 {dimension_numbers = #tpu.dot_dimension_numbers<[1], [0], [0], [1], [0, 0, 1, 1], [], []>} : vector<512x128xbf16>, vector<128x96xbf16>, vector<512x96xf32> -> vector<512x96xf32>
    %c0_17 = arith.constant 0 : index
    %c0_18 = arith.constant 0 : index
    %16 = vector.load %arg4[%c0_17, %c0_18] : memref<512x32xbf16, #tpu.memory_space<vmem>>, vector<512x32xbf16>
    %c0_19 = arith.constant 0 : index
    %c0_20 = arith.constant 0 : index
    %17 = vector.load %arg13[%c0_19, %c0_20] : memref<32x96xbf16, #tpu.memory_space<vmem>>, vector<32x96xbf16>
    %cst_21 = arith.constant dense<0.000000e+00> : vector<512x96xf32>
    %18 = tpu.matmul %16, %17, %cst_21 {dimension_numbers = #tpu.dot_dimension_numbers<[1], [0], [0], [1], [0, 0, 1, 1], [], []>} : vector<512x32xbf16>, vector<32x96xbf16>, vector<512x96xf32> -> vector<512x96xf32>
    %19 = arith.addf %15, %18 : vector<512x96xf32>
    %c0_22 = arith.constant 0 : index
    %c0_23 = arith.constant 0 : index
    %20 = vector.load %arg14[%c0_22, %c0_23] : memref<1x96xf32, #tpu.memory_space<vmem>>, vector<1x96xf32>
    %21 = vector.broadcast %20 : vector<1x96xf32> to vector<512x96xf32>
    %22 = arith.addf %19, %21 : vector<512x96xf32>
    %23 = vector.shape_cast %12 : vector<224x96xf32> to vector<4x56x96xf32>
    %c0_24 = arith.constant 0 : index
    %c0_25 = arith.constant 0 : index
    %c0_26 = arith.constant 0 : index
    %24 = vector.load %arg8[%c0_24, %c0_25, %c0_26] : memref<4x1x96xf32, #tpu.memory_space<vmem>>, vector<4x1x96xf32>
    %25 = vector.broadcast %24 : vector<4x1x96xf32> to vector<4x56x96xf32>
    %26 = arith.mulf %23, %25 : vector<4x56x96xf32>
    %27 = vector.shape_cast %26 : vector<4x56x96xf32> to vector<224x96xf32>
    %28 = vector.shape_cast %22 : vector<512x96xf32> to vector<4x128x96xf32>
    %c0_27 = arith.constant 0 : index
    %c0_28 = arith.constant 0 : index
    %c0_29 = arith.constant 0 : index
    %29 = vector.load %arg7[%c0_27, %c0_28, %c0_29] : memref<4x1x96xf32, #tpu.memory_space<vmem>>, vector<4x1x96xf32>
    %30 = vector.broadcast %29 : vector<4x1x96xf32> to vector<4x128x96xf32>
    %31 = arith.mulf %28, %30 : vector<4x128x96xf32>
    %32 = vector.shape_cast %31 : vector<4x128x96xf32> to vector<512x96xf32>
    %33 = arith.truncf %27 : vector<224x96xf32> to vector<224x96xbf16>
    %c0_30 = arith.constant 0 : index
    %c0_31 = arith.constant 0 : index
    %34 = vector.load %arg17[%c0_30, %c0_31] : memref<96x128xbf16, #tpu.memory_space<vmem>>, vector<96x128xbf16>
    %cst_32 = arith.constant dense<0.000000e+00> : vector<224x128xf32>
    %35 = tpu.matmul %33, %34, %cst_32 {dimension_numbers = #tpu.dot_dimension_numbers<[1], [0], [0], [1], [0, 0, 1, 1], [], []>} : vector<224x96xbf16>, vector<96x128xbf16>, vector<224x128xf32> -> vector<224x128xf32>
    %c0_33 = arith.constant 0 : index
    %c0_34 = arith.constant 0 : index
    %36 = vector.load %arg18[%c0_33, %c0_34] : memref<1x128xf32, #tpu.memory_space<vmem>>, vector<1x128xf32>
    %37 = vector.broadcast %36 : vector<1x128xf32> to vector<224x128xf32>
    %38 = arith.addf %35, %37 : vector<224x128xf32>
    %cst_35 = arith.constant 0.000000e+00 : f32
    %39 = vector.broadcast %cst_35 : f32 to vector<224x128xf32>
    %40 = arith.maximumf %38, %39 : vector<224x128xf32>
    %41 = arith.truncf %32 : vector<512x96xf32> to vector<512x96xbf16>
    %c0_36 = arith.constant 0 : index
    %c0_37 = arith.constant 0 : index
    %42 = vector.load %arg15[%c0_36, %c0_37] : memref<96x128xbf16, #tpu.memory_space<vmem>>, vector<96x128xbf16>
    %cst_38 = arith.constant dense<0.000000e+00> : vector<512x128xf32>
    %43 = tpu.matmul %41, %42, %cst_38 {dimension_numbers = #tpu.dot_dimension_numbers<[1], [0], [0], [1], [0, 0, 1, 1], [], []>} : vector<512x96xbf16>, vector<96x128xbf16>, vector<512x128xf32> -> vector<512x128xf32>
    %c0_39 = arith.constant 0 : index
    %c0_40 = arith.constant 0 : index
    %44 = vector.load %arg16[%c0_39, %c0_40] : memref<1x128xf32, #tpu.memory_space<vmem>>, vector<1x128xf32>
    %45 = vector.broadcast %44 : vector<1x128xf32> to vector<512x128xf32>
    %46 = arith.addf %43, %45 : vector<512x128xf32>
    %cst_41 = arith.constant 0.000000e+00 : f32
    %47 = vector.broadcast %cst_41 : f32 to vector<512x128xf32>
    %48 = arith.maximumf %46, %47 : vector<512x128xf32>
    %c0_42 = arith.constant 0 : index
    %c0_43 = arith.constant 0 : index
    %49 = vector.load %arg20[%c0_42, %c0_43] : memref<224x256xf32, #tpu.memory_space<vmem>>, vector<224x128xf32>
    tpu.vector_store %arg20[%c0_42, %c0_43], %1 {strides = array<i32>} : memref<224x256xf32, #tpu.memory_space<vmem>>, vector<224x128xf32>,
    %c0_44 = arith.constant 0 : index
    %c0_45 = arith.constant 0 : index
    %50 = vector.load %arg5[%c0_44, %c0_45] : memref<224x32xbf16, #tpu.memory_space<vmem>>, vector<224x32xbf16>
    %c0_46 = arith.constant 0 : index
    %c0_47 = arith.constant 0 : index
    %51 = vector.load %arg6[%c0_46, %c0_47] : memref<512x32xbf16, #tpu.memory_space<vmem>>, vector<512x32xbf16>
    %52 = tpu.iota {dimensions = array<i32: 0>} : vector<56x1xi32>
    %53 = tpu.iota {dimensions = array<i32: 1>} : vector<1x128xi32>
    %c50_i32 = arith.constant 50 : i32
    %54 = vector.broadcast %c50_i32 : i32 to vector<56x1xi32>
    %55 = arith.cmpi slt, %52, %54 : vector<56x1xi32>
    %56 = arith.extui %55 : vector<56x1xi1> to vector<56x1xi32>
    %57 = arith.sitofp %56 : vector<56x1xi32> to vector<56x1xf32>
    %c100_i32 = arith.constant 100 : i32
    %58 = vector.broadcast %c100_i32 : i32 to vector<1x128xi32>
    %59 = arith.cmpi slt, %53, %58 : vector<1x128xi32>
    %cst_48 = arith.constant 0.000000e+00 : f32
    %cst_49 = arith.constant -1.000000e+30 : f32
    %60 = vector.broadcast %cst_48 : f32 to vector<1x128xf32>
    %61 = vector.broadcast %cst_49 : f32 to vector<1x128xf32>
    %62 = arith.select %59, %60, %61 : vector<1x128xi1>, vector<1x128xf32>
    %63 = vector.extract_strided_slice %50 {offsets = [0, 0], sizes = [56, 32], strides = [1, 1]} : vector<224x32xbf16> to vector<56x32xbf16>
    %64 = vector.extract_strided_slice %51 {offsets = [0, 0], sizes = [128, 32], strides = [1, 1]} : vector<512x32xbf16> to vector<128x32xbf16>
    %cst_50 = arith.constant dense<0.000000e+00> : vector<56x128xf32>
    %65 = tpu.matmul %63, %64, %cst_50 {dimension_numbers = #tpu.dot_dimension_numbers<[1], [1], [0], [0], [0, 0, 1, 0], [], []>} : vector<56x32xbf16>, vector<128x32xbf16>, vector<56x128xf32> -> vector<56x128xf32>
    %cst_51 = arith.constant 5.000000e-01 : f32
    %66 = vector.broadcast %cst_51 : f32 to vector<56x128xf32>
    %67 = arith.mulf %65, %66 : vector<56x128xf32>
    %68 = vector.broadcast %62 : vector<1x128xf32> to vector<56x128xf32>
    %69 = arith.addf %67, %68 : vector<56x128xf32>
    %cst_52 = arith.constant dense<0xFF800000> : vector<56xf32>
    %70 = vector.multi_reduction <maximumf>, %69, %cst_52 [1] : vector<56x128xf32> to vector<56xf32>
    %71 = vector.shape_cast %70 : vector<56xf32> to vector<56x1xf32>
    %72 = vector.broadcast %71 : vector<56x1xf32> to vector<56x128xf32>
    %73 = arith.subf %69, %72 : vector<56x128xf32>
    %74 = math.exp %73 : vector<56x128xf32>
    %cst_53 = arith.constant dense<0.000000e+00> : vector<56xf32>
    %75 = vector.multi_reduction <add>, %74, %cst_53 [1] : vector<56x128xf32> to vector<56xf32>
    %76 = vector.shape_cast %75 : vector<56xf32> to vector<56x1xf32>
    %77 = tpu.reciprocal %76 : vector<56x1xf32> -> vector<56x1xf32>
    %78 = vector.broadcast %77 : vector<56x1xf32> to vector<56x128xf32>
    %79 = arith.mulf %74, %78 : vector<56x128xf32>
    %80 = vector.broadcast %57 : vector<56x1xf32> to vector<56x128xf32>
    %81 = arith.mulf %79, %80 : vector<56x128xf32>
    %c0_54 = arith.constant 0 : index
    %c0_55 = arith.constant 0 : index
    %82 = vector.load %arg22[%c0_54, %c0_55] : memref<224x128xf32, #tpu.memory_space<vmem>>, vector<56x128xf32>
    tpu.vector_store %arg22[%c0_54, %c0_55], %81 {strides = array<i32>} : memref<224x128xf32, #tpu.memory_space<vmem>>, vector<56x128xf32>,
    %83 = vector.extract_strided_slice %40 {offsets = [0, 0], sizes = [56, 128], strides = [1, 1]} : vector<224x128xf32> to vector<56x128xf32>
    %cst_56 = arith.constant dense<0.000000e+00> : vector<128x128xf32>
    %84 = tpu.matmul %81, %83, %cst_56 {dimension_numbers = #tpu.dot_dimension_numbers<[0], [0], [1], [1], [0, 1, 1, 1], [], []>} : vector<56x128xf32>, vector<56x128xf32>, vector<128x128xf32> -> vector<128x128xf32>
    %85 = vector.broadcast %0 : f32 to vector<128x128xf32>
    %86 = arith.mulf %85, %84 : vector<128x128xf32>
    %87 = vector.extract_strided_slice %2 {offsets = [0, 0], sizes = [128, 128], strides = [1, 1]} : vector<512x128xf32> to vector<128x128xf32>
    %88 = arith.addf %86, %87 : vector<128x128xf32>
    %c0_57 = arith.constant 0 : index
    %c0_58 = arith.constant 0 : index
    %89 = vector.load %arg21[%c0_57, %c0_58] : memref<512x128xf32, #tpu.memory_space<vmem>>, vector<128x128xf32>
    tpu.vector_store %arg21[%c0_57, %c0_58], %88 {strides = array<i32>} : memref<512x128xf32, #tpu.memory_space<vmem>>, vector<128x128xf32>,
    %90 = vector.extract_strided_slice %48 {offsets = [0, 0], sizes = [128, 128], strides = [1, 1]} : vector<512x128xf32> to vector<128x128xf32>
    %cst_59 = arith.constant dense<0.000000e+00> : vector<56x128xf32>
    %91 = tpu.matmul %81, %90, %cst_59 {dimension_numbers = #tpu.dot_dimension_numbers<[1], [0], [0], [1], [0, 0, 1, 1], [], []>} : vector<56x128xf32>, vector<128x128xf32>, vector<56x128xf32> -> vector<56x128xf32>
    %c0_60 = arith.constant 0 : index
    %c128 = arith.constant 128 : index
    %92 = vector.load %arg20[%c0_60, %c128] : memref<224x256xf32, #tpu.memory_space<vmem>>, vector<56x128xf32>
    tpu.vector_store %arg20[%c0_60, %c128], %91 {strides = array<i32>} : memref<224x256xf32, #tpu.memory_space<vmem>>, vector<56x128xf32>,
    %93 = vector.extract_strided_slice %50 {offsets = [56, 0], sizes = [56, 32], strides = [1, 1]} : vector<224x32xbf16> to vector<56x32xbf16>
    %94 = vector.extract_strided_slice %51 {offsets = [128, 0], sizes = [128, 32], strides = [1, 1]} : vector<512x32xbf16> to vector<128x32xbf16>
    %cst_61 = arith.constant dense<0.000000e+00> : vector<56x128xf32>
    %95 = tpu.matmul %93, %94, %cst_61 {dimension_numbers = #tpu.dot_dimension_numbers<[1], [1], [0], [0], [0, 0, 1, 0], [], []>} : vector<56x32xbf16>, vector<128x32xbf16>, vector<56x128xf32> -> vector<56x128xf32>
    %cst_62 = arith.constant 5.000000e-01 : f32
    %96 = vector.broadcast %cst_62 : f32 to vector<56x128xf32>
    %97 = arith.mulf %95, %96 : vector<56x128xf32>
    %98 = vector.broadcast %62 : vector<1x128xf32> to vector<56x128xf32>
    %99 = arith.addf %97, %98 : vector<56x128xf32>
    %cst_63 = arith.constant dense<0xFF800000> : vector<56xf32>
    %100 = vector.multi_reduction <maximumf>, %99, %cst_63 [1] : vector<56x128xf32> to vector<56xf32>
    %101 = vector.shape_cast %100 : vector<56xf32> to vector<56x1xf32>
    %102 = vector.broadcast %101 : vector<56x1xf32> to vector<56x128xf32>
    %103 = arith.subf %99, %102 : vector<56x128xf32>
    %104 = math.exp %103 : vector<56x128xf32>
    %cst_64 = arith.constant dense<0.000000e+00> : vector<56xf32>
    %105 = vector.multi_reduction <add>, %104, %cst_64 [1] : vector<56x128xf32> to vector<56xf32>
    %106 = vector.shape_cast %105 : vector<56xf32> to vector<56x1xf32>
    %107 = tpu.reciprocal %106 : vector<56x1xf32> -> vector<56x1xf32>
    %108 = vector.broadcast %107 : vector<56x1xf32> to vector<56x128xf32>
    %109 = arith.mulf %104, %108 : vector<56x128xf32>
    %110 = vector.broadcast %57 : vector<56x1xf32> to vector<56x128xf32>
    %111 = arith.mulf %109, %110 : vector<56x128xf32>
    %c56 = arith.constant 56 : index
    %c0_65 = arith.constant 0 : index
    %112 = vector.load %arg22[%c56, %c0_65] : memref<224x128xf32, #tpu.memory_space<vmem>>, vector<56x128xf32>
    tpu.vector_store %arg22[%c56, %c0_65], %111 {strides = array<i32>} : memref<224x128xf32, #tpu.memory_space<vmem>>, vector<56x128xf32>,
    %113 = vector.extract_strided_slice %40 {offsets = [56, 0], sizes = [56, 128], strides = [1, 1]} : vector<224x128xf32> to vector<56x128xf32>
    %cst_66 = arith.constant dense<0.000000e+00> : vector<128x128xf32>
    %114 = tpu.matmul %111, %113, %cst_66 {dimension_numbers = #tpu.dot_dimension_numbers<[0], [0], [1], [1], [0, 1, 1, 1], [], []>} : vector<56x128xf32>, vector<56x128xf32>, vector<128x128xf32> -> vector<128x128xf32>
    %115 = vector.broadcast %0 : f32 to vector<128x128xf32>
    %116 = arith.mulf %115, %114 : vector<128x128xf32>
    %117 = vector.extract_strided_slice %2 {offsets = [128, 0], sizes = [128, 128], strides = [1, 1]} : vector<512x128xf32> to vector<128x128xf32>
    %118 = arith.addf %116, %117 : vector<128x128xf32>
    %c128_67 = arith.constant 128 : index
    %c0_68 = arith.constant 0 : index
    %119 = vector.load %arg21[%c128_67, %c0_68] : memref<512x128xf32, #tpu.memory_space<vmem>>, vector<128x128xf32>
    tpu.vector_store %arg21[%c128_67, %c0_68], %118 {strides = array<i32>} : memref<512x128xf32, #tpu.memory_space<vmem>>, vector<128x128xf32>,
    %120 = vector.extract_strided_slice %48 {offsets = [128, 0], sizes = [128, 128], strides = [1, 1]} : vector<512x128xf32> to vector<128x128xf32>
    %cst_69 = arith.constant dense<0.000000e+00> : vector<56x128xf32>
    %121 = tpu.matmul %111, %120, %cst_69 {dimension_numbers = #tpu.dot_dimension_numbers<[1], [0], [0], [1], [0, 0, 1, 1], [], []>} : vector<56x128xf32>, vector<128x128xf32>, vector<56x128xf32> -> vector<56x128xf32>
    %c56_70 = arith.constant 56 : index
    %c128_71 = arith.constant 128 : index
    %122 = vector.load %arg20[%c56_70, %c128_71] : memref<224x256xf32, #tpu.memory_space<vmem>>, vector<56x128xf32>
    tpu.vector_store %arg20[%c56_70, %c128_71], %121 {strides = array<i32>} : memref<224x256xf32, #tpu.memory_space<vmem>>, vector<56x128xf32>,
    %123 = vector.extract_strided_slice %50 {offsets = [112, 0], sizes = [56, 32], strides = [1, 1]} : vector<224x32xbf16> to vector<56x32xbf16>
    %124 = vector.extract_strided_slice %51 {offsets = [256, 0], sizes = [128, 32], strides = [1, 1]} : vector<512x32xbf16> to vector<128x32xbf16>
    %cst_72 = arith.constant dense<0.000000e+00> : vector<56x128xf32>
    %125 = tpu.matmul %123, %124, %cst_72 {dimension_numbers = #tpu.dot_dimension_numbers<[1], [1], [0], [0], [0, 0, 1, 0], [], []>} : vector<56x32xbf16>, vector<128x32xbf16>, vector<56x128xf32> -> vector<56x128xf32>
    %cst_73 = arith.constant 5.000000e-01 : f32
    %126 = vector.broadcast %cst_73 : f32 to vector<56x128xf32>
    %127 = arith.mulf %125, %126 : vector<56x128xf32>
    %128 = vector.broadcast %62 : vector<1x128xf32> to vector<56x128xf32>
    %129 = arith.addf %127, %128 : vector<56x128xf32>
    %cst_74 = arith.constant dense<0xFF800000> : vector<56xf32>
    %130 = vector.multi_reduction <maximumf>, %129, %cst_74 [1] : vector<56x128xf32> to vector<56xf32>
    %131 = vector.shape_cast %130 : vector<56xf32> to vector<56x1xf32>
    %132 = vector.broadcast %131 : vector<56x1xf32> to vector<56x128xf32>
    %133 = arith.subf %129, %132 : vector<56x128xf32>
    %134 = math.exp %133 : vector<56x128xf32>
    %cst_75 = arith.constant dense<0.000000e+00> : vector<56xf32>
    %135 = vector.multi_reduction <add>, %134, %cst_75 [1] : vector<56x128xf32> to vector<56xf32>
    %136 = vector.shape_cast %135 : vector<56xf32> to vector<56x1xf32>
    %137 = tpu.reciprocal %136 : vector<56x1xf32> -> vector<56x1xf32>
    %138 = vector.broadcast %137 : vector<56x1xf32> to vector<56x128xf32>
    %139 = arith.mulf %134, %138 : vector<56x128xf32>
    %140 = vector.broadcast %57 : vector<56x1xf32> to vector<56x128xf32>
    %141 = arith.mulf %139, %140 : vector<56x128xf32>
    %c112 = arith.constant 112 : index
    %c0_76 = arith.constant 0 : index
    %142 = vector.load %arg22[%c112, %c0_76] : memref<224x128xf32, #tpu.memory_space<vmem>>, vector<56x128xf32>
    tpu.vector_store %arg22[%c112, %c0_76], %141 {strides = array<i32>} : memref<224x128xf32, #tpu.memory_space<vmem>>, vector<56x128xf32>,
    %143 = vector.extract_strided_slice %40 {offsets = [112, 0], sizes = [56, 128], strides = [1, 1]} : vector<224x128xf32> to vector<56x128xf32>
    %cst_77 = arith.constant dense<0.000000e+00> : vector<128x128xf32>
    %144 = tpu.matmul %141, %143, %cst_77 {dimension_numbers = #tpu.dot_dimension_numbers<[0], [0], [1], [1], [0, 1, 1, 1], [], []>} : vector<56x128xf32>, vector<56x128xf32>, vector<128x128xf32> -> vector<128x128xf32>
    %145 = vector.broadcast %0 : f32 to vector<128x128xf32>
    %146 = arith.mulf %145, %144 : vector<128x128xf32>
    %147 = vector.extract_strided_slice %2 {offsets = [256, 0], sizes = [128, 128], strides = [1, 1]} : vector<512x128xf32> to vector<128x128xf32>
    %148 = arith.addf %146, %147 : vector<128x128xf32>
    %c256 = arith.constant 256 : index
    %c0_78 = arith.constant 0 : index
    %149 = vector.load %arg21[%c256, %c0_78] : memref<512x128xf32, #tpu.memory_space<vmem>>, vector<128x128xf32>
    tpu.vector_store %arg21[%c256, %c0_78], %148 {strides = array<i32>} : memref<512x128xf32, #tpu.memory_space<vmem>>, vector<128x128xf32>,
    %150 = vector.extract_strided_slice %48 {offsets = [256, 0], sizes = [128, 128], strides = [1, 1]} : vector<512x128xf32> to vector<128x128xf32>
    %cst_79 = arith.constant dense<0.000000e+00> : vector<56x128xf32>
    %151 = tpu.matmul %141, %150, %cst_79 {dimension_numbers = #tpu.dot_dimension_numbers<[1], [0], [0], [1], [0, 0, 1, 1], [], []>} : vector<56x128xf32>, vector<128x128xf32>, vector<56x128xf32> -> vector<56x128xf32>
    %c112_80 = arith.constant 112 : index
    %c128_81 = arith.constant 128 : index
    %152 = vector.load %arg20[%c112_80, %c128_81] : memref<224x256xf32, #tpu.memory_space<vmem>>, vector<56x128xf32>
    tpu.vector_store %arg20[%c112_80, %c128_81], %151 {strides = array<i32>} : memref<224x256xf32, #tpu.memory_space<vmem>>, vector<56x128xf32>,
    %153 = vector.extract_strided_slice %50 {offsets = [168, 0], sizes = [56, 32], strides = [1, 1]} : vector<224x32xbf16> to vector<56x32xbf16>
    %154 = vector.extract_strided_slice %51 {offsets = [384, 0], sizes = [128, 32], strides = [1, 1]} : vector<512x32xbf16> to vector<128x32xbf16>
    %cst_82 = arith.constant dense<0.000000e+00> : vector<56x128xf32>
    %155 = tpu.matmul %153, %154, %cst_82 {dimension_numbers = #tpu.dot_dimension_numbers<[1], [1], [0], [0], [0, 0, 1, 0], [], []>} : vector<56x32xbf16>, vector<128x32xbf16>, vector<56x128xf32> -> vector<56x128xf32>
    %cst_83 = arith.constant 5.000000e-01 : f32
    %156 = vector.broadcast %cst_83 : f32 to vector<56x128xf32>
    %157 = arith.mulf %155, %156 : vector<56x128xf32>
    %158 = vector.broadcast %62 : vector<1x128xf32> to vector<56x128xf32>
    %159 = arith.addf %157, %158 : vector<56x128xf32>
    %cst_84 = arith.constant dense<0xFF800000> : vector<56xf32>
    %160 = vector.multi_reduction <maximumf>, %159, %cst_84 [1] : vector<56x128xf32> to vector<56xf32>
    %161 = vector.shape_cast %160 : vector<56xf32> to vector<56x1xf32>
    %162 = vector.broadcast %161 : vector<56x1xf32> to vector<56x128xf32>
    %163 = arith.subf %159, %162 : vector<56x128xf32>
    %164 = math.exp %163 : vector<56x128xf32>
    %cst_85 = arith.constant dense<0.000000e+00> : vector<56xf32>
    %165 = vector.multi_reduction <add>, %164, %cst_85 [1] : vector<56x128xf32> to vector<56xf32>
    %166 = vector.shape_cast %165 : vector<56xf32> to vector<56x1xf32>
    %167 = tpu.reciprocal %166 : vector<56x1xf32> -> vector<56x1xf32>
    %168 = vector.broadcast %167 : vector<56x1xf32> to vector<56x128xf32>
    %169 = arith.mulf %164, %168 : vector<56x128xf32>
    %170 = vector.broadcast %57 : vector<56x1xf32> to vector<56x128xf32>
    %171 = arith.mulf %169, %170 : vector<56x128xf32>
    %c168 = arith.constant 168 : index
    %c0_86 = arith.constant 0 : index
    %172 = vector.load %arg22[%c168, %c0_86] : memref<224x128xf32, #tpu.memory_space<vmem>>, vector<56x128xf32>
    tpu.vector_store %arg22[%c168, %c0_86], %171 {strides = array<i32>} : memref<224x128xf32, #tpu.memory_space<vmem>>, vector<56x128xf32>,
    %173 = vector.extract_strided_slice %40 {offsets = [168, 0], sizes = [56, 128], strides = [1, 1]} : vector<224x128xf32> to vector<56x128xf32>
    %cst_87 = arith.constant dense<0.000000e+00> : vector<128x128xf32>
    %174 = tpu.matmul %171, %173, %cst_87 {dimension_numbers = #tpu.dot_dimension_numbers<[0], [0], [1], [1], [0, 1, 1, 1], [], []>} : vector<56x128xf32>, vector<56x128xf32>, vector<128x128xf32> -> vector<128x128xf32>
    %175 = vector.broadcast %0 : f32 to vector<128x128xf32>
    %176 = arith.mulf %175, %174 : vector<128x128xf32>
    %177 = vector.extract_strided_slice %2 {offsets = [384, 0], sizes = [128, 128], strides = [1, 1]} : vector<512x128xf32> to vector<128x128xf32>
    %178 = arith.addf %176, %177 : vector<128x128xf32>
    %c384 = arith.constant 384 : index
    %c0_88 = arith.constant 0 : index
    %179 = vector.load %arg21[%c384, %c0_88] : memref<512x128xf32, #tpu.memory_space<vmem>>, vector<128x128xf32>
    tpu.vector_store %arg21[%c384, %c0_88], %178 {strides = array<i32>} : memref<512x128xf32, #tpu.memory_space<vmem>>, vector<128x128xf32>,
    %180 = vector.extract_strided_slice %48 {offsets = [384, 0], sizes = [128, 128], strides = [1, 1]} : vector<512x128xf32> to vector<128x128xf32>
    %cst_89 = arith.constant dense<0.000000e+00> : vector<56x128xf32>
    %181 = tpu.matmul %171, %180, %cst_89 {dimension_numbers = #tpu.dot_dimension_numbers<[1], [0], [0], [1], [0, 0, 1, 1], [], []>} : vector<56x128xf32>, vector<128x128xf32>, vector<56x128xf32> -> vector<56x128xf32>
    %c168_90 = arith.constant 168 : index
    %c128_91 = arith.constant 128 : index
    %182 = vector.load %arg20[%c168_90, %c128_91] : memref<224x256xf32, #tpu.memory_space<vmem>>, vector<56x128xf32>
    tpu.vector_store %arg20[%c168_90, %c128_91], %181 {strides = array<i32>} : memref<224x256xf32, #tpu.memory_space<vmem>>, vector<56x128xf32>,
    return
  }
  func.func @transform_0(%arg0: i32) -> (i32, i32) {
    %c0_i32 = arith.constant 0 : i32
    %c0_i32_0 = arith.constant 0 : i32
    return %arg0, %c0_i32 : i32, i32
  }
  func.func @transform_1(%arg0: i32) -> (i32, i32) {
    %c0_i32 = arith.constant 0 : i32
    %c0_i32_0 = arith.constant 0 : i32
    return %arg0, %c0_i32 : i32, i32
  }
  func.func @transform_2(%arg0: i32) -> (i32, i32) {
    %c0_i32 = arith.constant 0 : i32
    %c0_i32_0 = arith.constant 0 : i32
    return %arg0, %c0_i32 : i32, i32
  }
  func.func @transform_3(%arg0: i32) -> (i32, i32) {
    %c0_i32 = arith.constant 0 : i32
    %c0_i32_0 = arith.constant 0 : i32
    return %arg0, %c0_i32 : i32, i32
  }
  func.func @transform_4(%arg0: i32) -> (i32, i32) {
    %c0_i32 = arith.constant 0 : i32
    %c0_i32_0 = arith.constant 0 : i32
    return %arg0, %c0_i32 : i32, i32
  }
  func.func @transform_5(%arg0: i32) -> (i32, i32) {
    %c0_i32 = arith.constant 0 : i32
    %c0_i32_0 = arith.constant 0 : i32
    return %arg0, %c0_i32 : i32, i32
  }
  func.func @transform_6(%arg0: i32) -> (i32, i32, i32) {
    %c0_i32 = arith.constant 0 : i32
    %c0_i32_0 = arith.constant 0 : i32
    %c0_i32_1 = arith.constant 0 : i32
    return %arg0, %c0_i32, %c0_i32_0 : i32, i32, i32
  }
  func.func @transform_7(%arg0: i32) -> (i32, i32, i32) {
    %c0_i32 = arith.constant 0 : i32
    %c0_i32_0 = arith.constant 0 : i32
    %c0_i32_1 = arith.constant 0 : i32
    return %arg0, %c0_i32, %c0_i32_0 : i32, i32, i32
  }
  func.func @transform_8(%arg0: i32) -> (i32, i32) {
    %c0_i32 = arith.constant 0 : i32
    %c0_i32_0 = arith.constant 0 : i32
    %c0_i32_1 = arith.constant 0 : i32
    return %c0_i32, %c0_i32_0 : i32, i32
  }
  func.func @transform_9(%arg0: i32) -> (i32, i32) {
    %c0_i32 = arith.constant 0 : i32
    %c0_i32_0 = arith.constant 0 : i32
    %c0_i32_1 = arith.constant 0 : i32
    return %c0_i32, %c0_i32_0 : i32, i32
  }
  func.func @transform_10(%arg0: i32) -> (i32, i32) {
    %c0_i32 = arith.constant 0 : i32
    %c0_i32_0 = arith.constant 0 : i32
    %c0_i32_1 = arith.constant 0 : i32
    return %c0_i32, %c0_i32_0 : i32, i32
  }
  func.func @transform_11(%arg0: i32) -> (i32, i32) {
    %c0_i32 = arith.constant 0 : i32
    %c0_i32_0 = arith.constant 0 : i32
    %c0_i32_1 = arith.constant 0 : i32
    return %c0_i32, %c0_i32_0 : i32, i32
  }
  func.func @transform_12(%arg0: i32) -> (i32, i32) {
    %c0_i32 = arith.constant 0 : i32
    %c0_i32_0 = arith.constant 0 : i32
    %c0_i32_1 = arith.constant 0 : i32
    return %c0_i32, %c0_i32_0 : i32, i32
  }
  func.func @transform_13(%arg0: i32) -> (i32, i32) {
    %c0_i32 = arith.constant 0 : i32
    %c0_i32_0 = arith.constant 0 : i32
    %c0_i32_1 = arith.constant 0 : i32
    return %c0_i32, %c0_i32_0 : i32, i32
  }
  func.func @transform_14(%arg0: i32) -> (i32, i32) {
    %c0_i32 = arith.constant 0 : i32
    %c0_i32_0 = arith.constant 0 : i32
    %c0_i32_1 = arith.constant 0 : i32
    return %c0_i32, %c0_i32_0 : i32, i32
  }
  func.func @transform_15(%arg0: i32) -> (i32, i32) {
    %c0_i32 = arith.constant 0 : i32
    %c0_i32_0 = arith.constant 0 : i32
    %c0_i32_1 = arith.constant 0 : i32
    return %c0_i32, %c0_i32_0 : i32, i32
  }
  func.func @transform_16(%arg0: i32) -> (i32, i32) {
    %c0_i32 = arith.constant 0 : i32
    %c0_i32_0 = arith.constant 0 : i32
    %c0_i32_1 = arith.constant 0 : i32
    return %c0_i32, %c0_i32_0 : i32, i32
  }
  func.func @transform_17(%arg0: i32) -> (i32, i32) {
    %c0_i32 = arith.constant 0 : i32
    %c0_i32_0 = arith.constant 0 : i32
    %c0_i32_1 = arith.constant 0 : i32
    return %c0_i32, %c0_i32_0 : i32, i32
  }
  func.func @transform_18(%arg0: i32) -> (i32, i32) {
    %c0_i32 = arith.constant 0 : i32
    %c0_i32_0 = arith.constant 0 : i32
    %c0_i32_1 = arith.constant 0 : i32
    return %c0_i32, %c0_i32_0 : i32, i32
  }
  func.func @transform_19(%arg0: i32) -> (i32, i32) {
    %c0_i32 = arith.constant 0 : i32
    %c0_i32_0 = arith.constant 0 : i32
    return %arg0, %c0_i32 : i32, i32
  }
  func.func @transform_20(%arg0: i32) -> (i32, i32) {
    %c0_i32 = arith.constant 0 : i32
    %c0_i32_0 = arith.constant 0 : i32
    return %arg0, %c0_i32 : i32, i32
  }
  func.func @transform_21(%arg0: i32) -> (i32, i32) {
    %c0_i32 = arith.constant 0 : i32
    %c0_i32_0 = arith.constant 0 : i32
    return %arg0, %c0_i32 : i32, i32
  }
}

</mosaic_0001>

<llo_original>
// kernel: si_gnn_forward.1
$region0: #{si_gnn_forward.1}
  #allocation0 [shape = 'u32[]', space=smem, size = 0x4, offset = 0x4, fixed_abs, tag = 'smem constant byte address 0x4 - core index']
  #allocation1 [shape = 'u32[72,128]{1,0:T(1,128)}', space=vmem, size = 0x9000, scoped, tag = 'internal scratch']
  #allocation2 [shape = 'f32[1,1]{1,0:T(1,128)S(6)}', space=smem, size = 0x200, scoped, tag = 'scoped memory for si_gnn_forward.1']
  %s0 = inlined_call_operand.vmem [shape: f32[448,128], index: 0, kind: input, shape index: {}]
  %s1 = inlined_call_operand.vmem [shape: f32[1024,128], index: 1, kind: input, shape index: {}]
  %s2 = inlined_call_operand.vmem [shape: bf16[448,32], index: 2, kind: input, shape index: {}]
  %s3 = inlined_call_operand.vmem [shape: bf16[1024,32], index: 3, kind: input, shape index: {}]
  %s4 = inlined_call_operand.vmem [shape: bf16[448,32], index: 4, kind: input, shape index: {}]
  %s5 = inlined_call_operand.vmem [shape: bf16[1024,32], index: 5, kind: input, shape index: {}]
  %s6 = inlined_call_operand.vmem [shape: f32[8,1,96], index: 6, kind: input, shape index: {}]
  %s7 = inlined_call_operand.vmem [shape: f32[8,1,96], index: 7, kind: input, shape index: {}]
  %s8 = inlined_call_operand.vmem [shape: bf16[128,96], index: 8, kind: input, shape index: {}]
  %s9 = inlined_call_operand.vmem [shape: bf16[32,96], index: 9, kind: input, shape index: {}]
  %s10 = inlined_call_operand.vmem [shape: f32[1,96], index: 10, kind: input, shape index: {}]
  %s11 = inlined_call_operand.vmem [shape: bf16[128,96], index: 11, kind: input, shape index: {}]
  %s12 = inlined_call_operand.vmem [shape: bf16[32,96], index: 12, kind: input, shape index: {}]
  %s13 = inlined_call_operand.vmem [shape: f32[1,96], index: 13, kind: input, shape index: {}]
  %s14 = inlined_call_operand.vmem [shape: bf16[96,128], index: 14, kind: input, shape index: {}]
  %s15 = inlined_call_operand.vmem [shape: f32[1,128], index: 15, kind: input, shape index: {}]
  %s16 = inlined_call_operand.vmem [shape: bf16[96,128], index: 16, kind: input, shape index: {}]
  %s17 = inlined_call_operand.vmem [shape: f32[1,128], index: 17, kind: input, shape index: {}]
  %s18 = inlined_call_operand.<no memory space> [shape: f32[1,1], index: 18, kind: input, shape index: {}]
  %s19 = inlined_call_operand.vmem [shape: f32[448,256], index: 19, kind: output, shape index: {0}]
  %s20 = inlined_call_operand.vmem [shape: f32[1024,128], index: 20, kind: output, shape index: {1}]
  %s21 = inlined_call_operand.vmem [shape: f32[448,128], index: 21, kind: output, shape index: {2}]
  %22 = xla_tuple %s19, %s20, %s21
  %s23 = sld [smem:[#allocation0]]
  $region125: #{si_gnn_forward.1} parent=0
    _
  %s25 = ssub.s32 1, %s23
  %s26 = scalar_select 0, %s25, %s23
  %27 = sst [smem:[#allocation2]] %s18
  loop: start=0, step=1, limit=4
  $region2: #{si_gnn_forward.1} parent=0 // loop_pre_header
    _
  $region3: #{si_gnn_forward.1} parent=0 // loop_header
    %s29 = sphi 0, %s33
    %p30 = scmp.ge.s32.totalorder %s29, 4
    %s39 = sphi 0, %s41
    %s42 = sphi 0, %s39
    %s43 = sphi 0, %s42
    %s59 = sphi 0, %s43
    %s65 = sphi 0, %s67
    %s68 = sphi 0, %s65
    %s69 = sphi 0, %s68
    %s85 = sphi 0, %s69
    %s91 = sphi 0, %s93
    %s94 = sphi 0, %s91
    %s95 = sphi 0, %s94
    %s111 = sphi 0, %s95
    %s117 = sphi 0, %s119
    %s120 = sphi 0, %s117
    %s121 = sphi 0, %s120
    %s137 = sphi 0, %s121
    %s143 = sphi 0, %s145
    %s146 = sphi 0, %s143
    %s147 = sphi 0, %s146
    %s163 = sphi 0, %s147
    %s169 = sphi 0, %s171
    %s172 = sphi 0, %s169
    %s173 = sphi 0, %s172
    %s189 = sphi 0, %s173
    %s195 = sphi 0, %s197
    %s198 = sphi 0, %s195
    %s199 = sphi 0, %s198
    %s215 = sphi 0, %s199
    %s221 = sphi 0, %s223
    %s224 = sphi 0, %s221
    %s225 = sphi 0, %s224
    %s241 = sphi 0, %s225
    %s245 = sphi 0, %s245
    %s247 = sphi 0, %s245
    %s248 = sphi 0, %s247
    %s262 = sphi 0, %s248
    %s266 = sphi 0, %s266
    %s268 = sphi 0, %s266
    %s269 = sphi 0, %s268
    %s283 = sphi 0, %s269
    %s287 = sphi 0, %s287
    %s289 = sphi 0, %s287
    %s290 = sphi 0, %s289
    %s304 = sphi 0, %s290
    %s308 = sphi 0, %s308
    %s310 = sphi 0, %s308
    %s311 = sphi 0, %s310
    %s325 = sphi 0, %s311
    %s329 = sphi 0, %s329
    %s331 = sphi 0, %s329
    %s332 = sphi 0, %s331
    %s346 = sphi 0, %s332
    %s350 = sphi 0, %s350
    %s352 = sphi 0, %s350
    %s353 = sphi 0, %s352
    %s367 = sphi 0, %s353
    %s371 = sphi 0, %s371
    %s373 = sphi 0, %s371
    %s374 = sphi 0, %s373
    %s388 = sphi 0, %s374
    %s392 = sphi 0, %s392
    %s394 = sphi 0, %s392
    %s395 = sphi 0, %s394
    %s409 = sphi 0, %s395
    %s413 = sphi 0, %s413
    %s415 = sphi 0, %s413
    %s416 = sphi 0, %s415
    %s430 = sphi 0, %s416
    %s434 = sphi 0, %s434
    %s436 = sphi 0, %s434
    %s437 = sphi 0, %s436
    %s451 = sphi 0, %s437
    %s455 = sphi 0, %s455
    %s457 = sphi 0, %s455
    %s458 = sphi 0, %s457
    %s472 = sphi 0, %s458
    %s478 = sphi 0, %s480
    %s481 = sphi 0, %s478
    %s482 = sphi 0, %s481
    %s498 = sphi 0, %s482
    %s504 = sphi 0, %s506
    %s507 = sphi 0, %s504
    %s508 = sphi 0, %s507
    %s524 = sphi 0, %s508
    %s530 = sphi 0, %s532
    %s533 = sphi 0, %s530
    %s534 = sphi 0, %s533
    %s550 = sphi 0, %s534
  $region4: #{si_gnn_forward.1} parent=0 // loop_header_branch
    %32 = sbr.rel (%p30) target = $region8
  $region5: #{si_gnn_forward.1} parent=0 // loop_body
    %s34 = ssub.s32 %s29, 1
    %s35 = ssub.s32 %s29, 2
    %s36 = sadd.s32 %s29, 1
    %s37 = ssub.s32 %s29, %s36
    %p38 = scmp.eq.s32.totalorder %s37, 0
    %s40 = sadd.s32 %s39, 1
    %s41 = scalar_select %p38, %s39, %s40
    %p44 = pneg %p38
    %p45 = scmp.eq.s32.totalorder %s29, 1
    %p46 = por %p44, %p45
    %p47 = scmp.ne.s32.totalorder %s39, %s42
    %p48 = scmp.eq.s32.totalorder %s29, 0
    %p49 = por %p47, %p48
    %p50 = scmp.ne.s32.totalorder %s39, %s42
    %p51 = scmp.eq.s32.totalorder %s34, 1
    %p52 = por %p50, %p51
    %p53 = scmp.ne.s32.totalorder %s42, %s43
    %p54 = scmp.eq.s32.totalorder %s34, 0
    %p55 = por %p53, %p54
    %p56 = scmp.ne.s32.totalorder %s42, %s43
    %p57 = scmp.eq.s32.totalorder %s35, 1
    %p58 = por %p56, %p57
    %p60 = scmp.ne.s32.totalorder %s43, %s59
    %p61 = scmp.eq.s32.totalorder %s35, 0
    %p62 = por %p60, %p61
    %s63 = ssub.s32 %s29, %s36
    %p64 = scmp.eq.s32.totalorder %s63, 0
    %s66 = sadd.s32 %s65, 1
    %s67 = scalar_select %p64, %s65, %s66
    %p70 = pneg %p64
    %p71 = scmp.eq.s32.totalorder %s29, 1
    %p72 = por %p70, %p71
    %p73 = scmp.ne.s32.totalorder %s65, %s68
    %p74 = scmp.eq.s32.totalorder %s29, 0
    %p75 = por %p73, %p74
    %p76 = scmp.ne.s32.totalorder %s65, %s68
    %p77 = scmp.eq.s32.totalorder %s34, 1
    %p78 = por %p76, %p77
    %p79 = scmp.ne.s32.totalorder %s68, %s69
    %p80 = scmp.eq.s32.totalorder %s34, 0
    %p81 = por %p79, %p80
    %p82 = scmp.ne.s32.totalorder %s68, %s69
    %p83 = scmp.eq.s32.totalorder %s35, 1
    %p84 = por %p82, %p83
    %p86 = scmp.ne.s32.totalorder %s69, %s85
    %p87 = scmp.eq.s32.totalorder %s35, 0
    %p88 = por %p86, %p87
    %s89 = ssub.s32 %s29, %s36
    %p90 = scmp.eq.s32.totalorder %s89, 0
    %s92 = sadd.s32 %s91, 1
    %s93 = scalar_select %p90, %s91, %s92
    %p96 = pneg %p90
    %p97 = scmp.eq.s32.totalorder %s29, 1
    %p98 = por %p96, %p97
    %p99 = scmp.ne.s32.totalorder %s91, %s94
    %p100 = scmp.eq.s32.totalorder %s29, 0
    %p101 = por %p99, %p100
    %p102 = scmp.ne.s32.totalorder %s91, %s94
    %p103 = scmp.eq.s32.totalorder %s34, 1
    %p104 = por %p102, %p103
    %p105 = scmp.ne.s32.totalorder %s94, %s95
    %p106 = scmp.eq.s32.totalorder %s34, 0
    %p107 = por %p105, %p106
    %p108 = scmp.ne.s32.totalorder %s94, %s95
    %p109 = scmp.eq.s32.totalorder %s35, 1
    %p110 = por %p108, %p109
    %p112 = scmp.ne.s32.totalorder %s95, %s111
    %p113 = scmp.eq.s32.totalorder %s35, 0
    %p114 = por %p112, %p113
    %s115 = ssub.s32 %s29, %s36
    %p116 = scmp.eq.s32.totalorder %s115, 0
    %s118 = sadd.s32 %s117, 1
    %s119 = scalar_select %p116, %s117, %s118
    %p122 = pneg %p116
    %p123 = scmp.eq.s32.totalorder %s29, 1
    %p124 = por %p122, %p123
    %p125 = scmp.ne.s32.totalorder %s117, %s120
    %p126 = scmp.eq.s32.totalorder %s29, 0
    %p127 = por %p125, %p126
    %p128 = scmp.ne.s32.totalorder %s117, %s120
    %p129 = scmp.eq.s32.totalorder %s34, 1
    %p130 = por %p128, %p129
    %p131 = scmp.ne.s32.totalorder %s120, %s121
    %p132 = scmp.eq.s32.totalorder %s34, 0
    %p133 = por %p131, %p132
    %p134 = scmp.ne.s32.totalorder %s120, %s121
    %p135 = scmp.eq.s32.totalorder %s35, 1
    %p136 = por %p134, %p135
    %p138 = scmp.ne.s32.totalorder %s121, %s137
    %p139 = scmp.eq.s32.totalorder %s35, 0
    %p140 = por %p138, %p139
    %s141 = ssub.s32 %s29, %s36
    %p142 = scmp.eq.s32.totalorder %s141, 0
    %s144 = sadd.s32 %s143, 1
    %s145 = scalar_select %p142, %s143, %s144
    %p148 = pneg %p142
    %p149 = scmp.eq.s32.totalorder %s29, 1
    %p150 = por %p148, %p149
    %p151 = scmp.ne.s32.totalorder %s143, %s146
    %p152 = scmp.eq.s32.totalorder %s29, 0
    %p153 = por %p151, %p152
    %p154 = scmp.ne.s32.totalorder %s143, %s146
    %p155 = scmp.eq.s32.totalorder %s34, 1
    %p156 = por %p154, %p155
    %p157 = scmp.ne.s32.totalorder %s146, %s147
    %p158 = scmp.eq.s32.totalorder %s34, 0
    %p159 = por %p157, %p158
    %p160 = scmp.ne.s32.totalorder %s146, %s147
    %p161 = scmp.eq.s32.totalorder %s35, 1
    %p162 = por %p160, %p161
    %p164 = scmp.ne.s32.totalorder %s147, %s163
    %p165 = scmp.eq.s32.totalorder %s35, 0
    %p166 = por %p164, %p165
    %s167 = ssub.s32 %s29, %s36
    %p168 = scmp.eq.s32.totalorder %s167, 0
    %s170 = sadd.s32 %s169, 1
    %s171 = scalar_select %p168, %s169, %s170
    %p174 = pneg %p168
    %p175 = scmp.eq.s32.totalorder %s29, 1
    %p176 = por %p174, %p175
    %p177 = scmp.ne.s32.totalorder %s169, %s172
    %p178 = scmp.eq.s32.totalorder %s29, 0
    %p179 = por %p177, %p178
    %p180 = scmp.ne.s32.totalorder %s169, %s172
    %p181 = scmp.eq.s32.totalorder %s34, 1
    %p182 = por %p180, %p181
    %p183 = scmp.ne.s32.totalorder %s172, %s173
    %p184 = scmp.eq.s32.totalorder %s34, 0
    %p185 = por %p183, %p184
    %p186 = scmp.ne.s32.totalorder %s172, %s173
    %p187 = scmp.eq.s32.totalorder %s35, 1
    %p188 = por %p186, %p187
    %p190 = scmp.ne.s32.totalorder %s173, %s189
    %p191 = scmp.eq.s32.totalorder %s35, 0
    %p192 = por %p190, %p191
    %s193 = ssub.s32 %s29, %s36
    %p194 = scmp.eq.s32.totalorder %s193, 0
    %s196 = sadd.s32 %s195, 1
    %s197 = scalar_select %p194, %s195, %s196
    %p200 = pneg %p194
    %p201 = scmp.eq.s32.totalorder %s29, 1
    %p202 = por %p200, %p201
    %p203 = scmp.ne.s32.totalorder %s195, %s198
    %p204 = scmp.eq.s32.totalorder %s29, 0
    %p205 = por %p203, %p204
    %p206 = scmp.ne.s32.totalorder %s195, %s198
    %p207 = scmp.eq.s32.totalorder %s34, 1
    %p208 = por %p206, %p207
    %p209 = scmp.ne.s32.totalorder %s198, %s199
    %p210 = scmp.eq.s32.totalorder %s34, 0
    %p211 = por %p209, %p210
    %p212 = scmp.ne.s32.totalorder %s198, %s199
    %p213 = scmp.eq.s32.totalorder %s35, 1
    %p214 = por %p212, %p213
    %p216 = scmp.ne.s32.totalorder %s199, %s215
    %p217 = scmp.eq.s32.totalorder %s35, 0
    %p218 = por %p216, %p217
    %s219 = ssub.s32 %s29, %s36
    %p220 = scmp.eq.s32.totalorder %s219, 0
    %s222 = sadd.s32 %s221, 1
    %s223 = scalar_select %p220, %s221, %s222
    %p226 = pneg %p220
    %p227 = scmp.eq.s32.totalorder %s29, 1
    %p228 = por %p226, %p227
    %p229 = scmp.ne.s32.totalorder %s221, %s224
    %p230 = scmp.eq.s32.totalorder %s29, 0
    %p231 = por %p229, %p230
    %p232 = scmp.ne.s32.totalorder %s221, %s224
    %p233 = scmp.eq.s32.totalorder %s34, 1
    %p234 = por %p232, %p233
    %p235 = scmp.ne.s32.totalorder %s224, %s225
    %p236 = scmp.eq.s32.totalorder %s34, 0
    %p237 = por %p235, %p236
    %p238 = scmp.ne.s32.totalorder %s224, %s225
    %p239 = scmp.eq.s32.totalorder %s35, 1
    %p240 = por %p238, %p239
    %p242 = scmp.ne.s32.totalorder %s225, %s241
    %p243 = scmp.eq.s32.totalorder %s35, 0
    %p244 = por %p242, %p243
    %s246 = sadd.s32 %s245, 1
    %p249 = scmp.eq.s32.totalorder %s29, 1
    %p250 = scmp.ne.s32.totalorder %s245, %s247
    %p251 = scmp.eq.s32.totalorder %s29, 0
    %p252 = por %p250, %p251
    %p253 = scmp.ne.s32.totalorder %s245, %s247
    %p254 = scmp.eq.s32.totalorder %s34, 1
    %p255 = por %p253, %p254
    %p256 = scmp.ne.s32.totalorder %s247, %s248
    %p257 = scmp.eq.s32.totalorder %s34, 0
    %p258 = por %p256, %p257
    %p259 = scmp.ne.s32.totalorder %s247, %s248
    %p260 = scmp.eq.s32.totalorder %s35, 1
    %p261 = por %p259, %p260
    %p263 = scmp.ne.s32.totalorder %s248, %s262
    %p264 = scmp.eq.s32.totalorder %s35, 0
    %p265 = por %p263, %p264
    %s267 = sadd.s32 %s266, 1
    %p270 = scmp.eq.s32.totalorder %s29, 1
    %p271 = scmp.ne.s32.totalorder %s266, %s268
    %p272 = scmp.eq.s32.totalorder %s29, 0
    %p273 = por %p271, %p272
    %p274 = scmp.ne.s32.totalorder %s266, %s268
    %p275 = scmp.eq.s32.totalorder %s34, 1
    %p276 = por %p274, %p275
    %p277 = scmp.ne.s32.totalorder %s268, %s269
    %p278 = scmp.eq.s32.totalorder %s34, 0
    %p279 = por %p277, %p278
    %p280 = scmp.ne.s32.totalorder %s268, %s269
    %p281 = scmp.eq.s32.totalorder %s35, 1
    %p282 = por %p280, %p281
    %p284 = scmp.ne.s32.totalorder %s269, %s283
    %p285 = scmp.eq.s32.totalorder %s35, 0
    %p286 = por %p284, %p285
    %s288 = sadd.s32 %s287, 1
    %p291 = scmp.eq.s32.totalorder %s29, 1
    %p292 = scmp.ne.s32.totalorder %s287, %s289
    %p293 = scmp.eq.s32.totalorder %s29, 0
    %p294 = por %p292, %p293
    %p295 = scmp.ne.s32.totalorder %s287, %s289
    %p296 = scmp.eq.s32.totalorder %s34, 1
    %p297 = por %p295, %p296
    %p298 = scmp.ne.s32.totalorder %s289, %s290
    %p299 = scmp.eq.s32.totalorder %s34, 0
    %p300 = por %p298, %p299
    %p301 = scmp.ne.s32.totalorder %s289, %s290
    %p302 = scmp.eq.s32.totalorder %s35, 1
    %p303 = por %p301, %p302
    %p305 = scmp.ne.s32.totalorder %s290, %s304
    %p306 = scmp.eq.s32.totalorder %s35, 0
    %p307 = por %p305, %p306
    %s309 = sadd.s32 %s308, 1
    %p312 = scmp.eq.s32.totalorder %s29, 1
    %p313 = scmp.ne.s32.totalorder %s308, %s310
    %p314 = scmp.eq.s32.totalorder %s29, 0
    %p315 = por %p313, %p314
    %p316 = scmp.ne.s32.totalorder %s308, %s310
    %p317 = scmp.eq.s32.totalorder %s34, 1
    %p318 = por %p316, %p317
    %p319 = scmp.ne.s32.totalorder %s310, %s311
    %p320 = scmp.eq.s32.totalorder %s34, 0
    %p321 = por %p319, %p320
    %p322 = scmp.ne.s32.totalorder %s310, %s311
    %p323 = scmp.eq.s32.totalorder %s35, 1
    %p324 = por %p322, %p323
    %p326 = scmp.ne.s32.totalorder %s311, %s325
    %p327 = scmp.eq.s32.totalorder %s35, 0
    %p328 = por %p326, %p327
    %s330 = sadd.s32 %s329, 1
    %p333 = scmp.eq.s32.totalorder %s29, 1
    %p334 = scmp.ne.s32.totalorder %s329, %s331
    %p335 = scmp.eq.s32.totalorder %s29, 0
    %p336 = por %p334, %p335
    %p337 = scmp.ne.s32.totalorder %s329, %s331
    %p338 = scmp.eq.s32.totalorder %s34, 1
    %p339 = por %p337, %p338
    %p340 = scmp.ne.s32.totalorder %s331, %s332
    %p341 = scmp.eq.s32.totalorder %s34, 0
    %p342 = por %p340, %p341
    %p343 = scmp.ne.s32.totalorder %s331, %s332
    %p344 = scmp.eq.s32.totalorder %s35, 1
    %p345 = por %p343, %p344
    %p347 = scmp.ne.s32.totalorder %s332, %s346
    %p348 = scmp.eq.s32.totalorder %s35, 0
    %p349 = por %p347, %p348
    %s351 = sadd.s32 %s350, 1
    %p354 = scmp.eq.s32.totalorder %s29, 1
    %p355 = scmp.ne.s32.totalorder %s350, %s352
    %p356 = scmp.eq.s32.totalorder %s29, 0
    %p357 = por %p355, %p356
    %p358 = scmp.ne.s32.totalorder %s350, %s352
    %p359 = scmp.eq.s32.totalorder %s34, 1
    %p360 = por %p358, %p359
    %p361 = scmp.ne.s32.totalorder %s352, %s353
    %p362 = scmp.eq.s32.totalorder %s34, 0
    %p363 = por %p361, %p362
    %p364 = scmp.ne.s32.totalorder %s352, %s353
    %p365 = scmp.eq.s32.totalorder %s35, 1
    %p366 = por %p364, %p365
    %p368 = scmp.ne.s32.totalorder %s353, %s367
    %p369 = scmp.eq.s32.totalorder %s35, 0
    %p370 = por %p368, %p369
    %s372 = sadd.s32 %s371, 1
    %p375 = scmp.eq.s32.totalorder %s29, 1
    %p376 = scmp.ne.s32.totalorder %s371, %s373
    %p377 = scmp.eq.s32.totalorder %s29, 0
    %p378 = por %p376, %p377
    %p379 = scmp.ne.s32.totalorder %s371, %s373
    %p380 = scmp.eq.s32.totalorder %s34, 1
    %p381 = por %p379, %p380
    %p382 = scmp.ne.s32.totalorder %s373, %s374
    %p383 = scmp.eq.s32.totalorder %s34, 0
    %p384 = por %p382, %p383
    %p385 = scmp.ne.s32.totalorder %s373, %s374
    %p386 = scmp.eq.s32.totalorder %s35, 1
    %p387 = por %p385, %p386
    %p389 = scmp.ne.s32.totalorder %s374, %s388
    %p390 = scmp.eq.s32.totalorder %s35, 0
    %p391 = por %p389, %p390
    %s393 = sadd.s32 %s392, 1
    %p396 = scmp.eq.s32.totalorder %s29, 1
    %p397 = scmp.ne.s32.totalorder %s392, %s394
    %p398 = scmp.eq.s32.totalorder %s29, 0
    %p399 = por %p397, %p398
    %p400 = scmp.ne.s32.totalorder %s392, %s394
    %p401 = scmp.eq.s32.totalorder %s34, 1
    %p402 = por %p400, %p401
    %p403 = scmp.ne.s32.totalorder %s394, %s395
    %p404 = scmp.eq.s32.totalorder %s34, 0
    %p405 = por %p403, %p404
    %p406 = scmp.ne.s32.totalorder %s394, %s395
    %p407 = scmp.eq.s32.totalorder %s35, 1
    %p408 = por %p406, %p407
    %p410 = scmp.ne.s32.totalorder %s395, %s409
    %p411 = scmp.eq.s32.totalorder %s35, 0
    %p412 = por %p410, %p411
    %s414 = sadd.s32 %s413, 1
    %p417 = scmp.eq.s32.totalorder %s29, 1
    %p418 = scmp.ne.s32.totalorder %s413, %s415
    %p419 = scmp.eq.s32.totalorder %s29, 0
    %p420 = por %p418, %p419
    %p421 = scmp.ne.s32.totalorder %s413, %s415
    %p422 = scmp.eq.s32.totalorder %s34, 1
    %p423 = por %p421, %p422
    %p424 = scmp.ne.s32.totalorder %s415, %s416
    %p425 = scmp.eq.s32.totalorder %s34, 0
    %p426 = por %p424, %p425
    %p427 = scmp.ne.s32.totalorder %s415, %s416
    %p428 = scmp.eq.s32.totalorder %s35, 1
    %p429 = por %p427, %p428
    %p431 = scmp.ne.s32.totalorder %s416, %s430
    %p432 = scmp.eq.s32.totalorder %s35, 0
    %p433 = por %p431, %p432
    %s435 = sadd.s32 %s434, 1
    %p438 = scmp.eq.s32.totalorder %s29, 1
    %p439 = scmp.ne.s32.totalorder %s434, %s436
    %p440 = scmp.eq.s32.totalorder %s29, 0
    %p441 = por %p439, %p440
    %p442 = scmp.ne.s32.totalorder %s434, %s436
    %p443 = scmp.eq.s32.totalorder %s34, 1
    %p444 = por %p442, %p443
    %p445 = scmp.ne.s32.totalorder %s436, %s437
    %p446 = scmp.eq.s32.totalorder %s34, 0
    %p447 = por %p445, %p446
    %p448 = scmp.ne.s32.totalorder %s436, %s437
    %p449 = scmp.eq.s32.totalorder %s35, 1
    %p450 = por %p448, %p449
    %p452 = scmp.ne.s32.totalorder %s437, %s451
    %p453 = scmp.eq.s32.totalorder %s35, 0
    %p454 = por %p452, %p453
    %s456 = sadd.s32 %s455, 1
    %p459 = scmp.eq.s32.totalorder %s29, 1
    %p460 = scmp.ne.s32.totalorder %s455, %s457
    %p461 = scmp.eq.s32.totalorder %s29, 0
    %p462 = por %p460, %p461
    %p463 = scmp.ne.s32.totalorder %s455, %s457
    %p464 = scmp.eq.s32.totalorder %s34, 1
    %p465 = por %p463, %p464
    %p466 = scmp.ne.s32.totalorder %s457, %s458
    %p467 = scmp.eq.s32.totalorder %s34, 0
    %p468 = por %p466, %p467
    %p469 = scmp.ne.s32.totalorder %s457, %s458
    %p470 = scmp.eq.s32.totalorder %s35, 1
    %p471 = por %p469, %p470
    %p473 = scmp.ne.s32.totalorder %s458, %s472
    %p474 = scmp.eq.s32.totalorder %s35, 0
    %p475 = por %p473, %p474
    %s476 = ssub.s32 %s29, %s36
    %p477 = scmp.eq.s32.totalorder %s476, 0
    %s479 = sadd.s32 %s478, 1
    %s480 = scalar_select %p477, %s478, %s479
    %p483 = pneg %p477
    %p484 = scmp.eq.s32.totalorder %s29, 1
    %p485 = por %p483, %p484
    %p486 = scmp.ne.s32.totalorder %s478, %s481
    %p487 = scmp.eq.s32.totalorder %s29, 0
    %p488 = por %p486, %p487
    %p489 = scmp.ne.s32.totalorder %s478, %s481
    %p490 = scmp.eq.s32.totalorder %s34, 1
    %p491 = por %p489, %p490
    %p492 = scmp.ne.s32.totalorder %s481, %s482
    %p493 = scmp.eq.s32.totalorder %s34, 0
    %p494 = por %p492, %p493
    %p495 = scmp.ne.s32.totalorder %s481, %s482
    %p496 = scmp.eq.s32.totalorder %s35, 1
    %p497 = por %p495, %p496
    %p499 = scmp.ne.s32.totalorder %s482, %s498
    %p500 = scmp.eq.s32.totalorder %s35, 0
    %p501 = por %p499, %p500
    %s502 = ssub.s32 %s29, %s36
    %p503 = scmp.eq.s32.totalorder %s502, 0
    %s505 = sadd.s32 %s504, 1
    %s506 = scalar_select %p503, %s504, %s505
    %p509 = pneg %p503
    %p510 = scmp.eq.s32.totalorder %s29, 1
    %p511 = por %p509, %p510
    %p512 = scmp.ne.s32.totalorder %s504, %s507
    %p513 = scmp.eq.s32.totalorder %s29, 0
    %p514 = por %p512, %p513
    %p515 = scmp.ne.s32.totalorder %s504, %s507
    %p516 = scmp.eq.s32.totalorder %s34, 1
    %p517 = por %p515, %p516
    %p518 = scmp.ne.s32.totalorder %s507, %s508
    %p519 = scmp.eq.s32.totalorder %s34, 0
    %p520 = por %p518, %p519
    %p521 = scmp.ne.s32.totalorder %s507, %s508
    %p522 = scmp.eq.s32.totalorder %s35, 1
    %p523 = por %p521, %p522
    %p525 = scmp.ne.s32.totalorder %s508, %s524
    %p526 = scmp.eq.s32.totalorder %s35, 0
    %p527 = por %p525, %p526
    %s528 = ssub.s32 %s29, %s36
    %p529 = scmp.eq.s32.totalorder %s528, 0
    %s531 = sadd.s32 %s530, 1
    %s532 = scalar_select %p529, %s530, %s531
    %p535 = pneg %p529
    %p536 = scmp.eq.s32.totalorder %s29, 1
    %p537 = por %p535, %p536
    %p538 = scmp.ne.s32.totalorder %s530, %s533
    %p539 = scmp.eq.s32.totalorder %s29, 0
    %p540 = por %p538, %p539
    %p541 = scmp.ne.s32.totalorder %s530, %s533
    %p542 = scmp.eq.s32.totalorder %s34, 1
    %p543 = por %p541, %p542
    %p544 = scmp.ne.s32.totalorder %s533, %s534
    %p545 = scmp.eq.s32.totalorder %s34, 0
    %p546 = por %p544, %p545
    %p547 = scmp.ne.s32.totalorder %s533, %s534
    %p548 = scmp.eq.s32.totalorder %s35, 1
    %p549 = por %p547, %p548
    %p551 = scmp.ne.s32.totalorder %s534, %s550
    %p552 = scmp.eq.s32.totalorder %s35, 0
    %p553 = por %p551, %p552
    %p554 = scmp.le.s32.totalorder 1, %s29
    %p555 = scmp.lt.s32.totalorder %s29, 3
    %p556 = pnand %p554, %p555
    %p557 = pneg %p556
    // Predicated region
    $region9: #{si_gnn_forward.1} parent=5 // pred_check
      _
    $region10: #{si_gnn_forward.1} parent=5 // pred_check_branch
      %559 = sbr.rel (%p556) target = $region12
    $region11: #{si_gnn_forward.1} parent=5 // pred_region
      %s560 = ssub.s32 %s29, 1
      // Predicated region
      $region13: #{si_gnn_forward.1} parent=11 // pred_check
        %p561 = pneg %p258
      $region14: #{si_gnn_forward.1} parent=11 // pred_check_branch
        %563 = sbr.rel (%p561) target = $region16
      $region15: #{si_gnn_forward.1} parent=11 // pred_region
        _
      $region16: #{si_gnn_forward.1} parent=11 // pred_fallthru
        _
      // Predicated region
      $region17: #{si_gnn_forward.1} parent=11 // pred_check
        %p564 = pneg %p279
      $region18: #{si_gnn_forward.1} parent=11 // pred_check_branch
        %566 = sbr.rel (%p564) target = $region20
      $region19: #{si_gnn_forward.1} parent=11 // pred_region
        _
      $region20: #{si_gnn_forward.1} parent=11 // pred_fallthru
        _
      // Predicated region
      $region21: #{si_gnn_forward.1} parent=11 // pred_check
        %p567 = pneg %p300
      $region22: #{si_gnn_forward.1} parent=11 // pred_check_branch
        %569 = sbr.rel (%p567) target = $region24
      $region23: #{si_gnn_forward.1} parent=11 // pred_region
        _
      $region24: #{si_gnn_forward.1} parent=11 // pred_fallthru
        _
      // Predicated region
      $region25: #{si_gnn_forward.1} parent=11 // pred_check
        %p570 = pneg %p321
      $region26: #{si_gnn_forward.1} parent=11 // pred_check_branch
        %572 = sbr.rel (%p570) target = $region28
      $region27: #{si_gnn_forward.1} parent=11 // pred_region
        _
      $region28: #{si_gnn_forward.1} parent=11 // pred_fallthru
        _
      // Predicated region
      $region29: #{si_gnn_forward.1} parent=11 // pred_check
        %p573 = pneg %p342
      $region30: #{si_gnn_forward.1} parent=11 // pred_check_branch
        %575 = sbr.rel (%p573) target = $region32
      $region31: #{si_gnn_forward.1} parent=11 // pred_region
        _
      $region32: #{si_gnn_forward.1} parent=11 // pred_fallthru
        _
      // Predicated region
      $region33: #{si_gnn_forward.1} parent=11 // pred_check
        %p576 = pneg %p363
      $region34: #{si_gnn_forward.1} parent=11 // pred_check_branch
        %578 = sbr.rel (%p576) target = $region36
      $region35: #{si_gnn_forward.1} parent=11 // pred_region
        _
      $region36: #{si_gnn_forward.1} parent=11 // pred_fallthru
        _
      // Predicated region
      $region37: #{si_gnn_forward.1} parent=11 // pred_check
        %p579 = pneg %p384
      $region38: #{si_gnn_forward.1} parent=11 // pred_check_branch
        %581 = sbr.rel (%p579) target = $region40
      $region39: #{si_gnn_forward.1} parent=11 // pred_region
        _
      $region40: #{si_gnn_forward.1} parent=11 // pred_fallthru
        _
      // Predicated region
      $region41: #{si_gnn_forward.1} parent=11 // pred_check
        %p582 = pneg %p405
      $region42: #{si_gnn_forward.1} parent=11 // pred_check_branch
        %584 = sbr.rel (%p582) target = $region44
      $region43: #{si_gnn_forward.1} parent=11 // pred_region
        _
      $region44: #{si_gnn_forward.1} parent=11 // pred_fallthru
        _
      // Predicated region
      $region45: #{si_gnn_forward.1} parent=11 // pred_check
        %p585 = pneg %p426
      $region46: #{si_gnn_forward.1} parent=11 // pred_check_branch
        %587 = sbr.rel (%p585) target = $region48
      $region47: #{si_gnn_forward.1} parent=11 // pred_region
        _
      $region48: #{si_gnn_forward.1} parent=11 // pred_fallthru
        _
      // Predicated region
      $region49: #{si_gnn_forward.1} parent=11 // pred_check
        %p588 = pneg %p447
      $region50: #{si_gnn_forward.1} parent=11 // pred_check_branch
        %590 = sbr.rel (%p588) target = $region52
      $region51: #{si_gnn_forward.1} parent=11 // pred_region
        _
      $region52: #{si_gnn_forward.1} parent=11 // pred_fallthru
        _
      // Predicated region
      $region53: #{si_gnn_forward.1} parent=11 // pred_check
        %p591 = pneg %p468
      $region54: #{si_gnn_forward.1} parent=11 // pred_check_branch
        %593 = sbr.rel (%p591) target = $region56
      $region55: #{si_gnn_forward.1} parent=11 // pred_region
        _
      $region56: #{si_gnn_forward.1} parent=11 // pred_fallthru
        _
    $region12: #{si_gnn_forward.1} parent=5 // pred_fallthru
      _
    %p594 = scmp.lt.s32.totalorder %s29, 2
    // Predicated region
    $region57: #{si_gnn_forward.1} parent=5 // pred_check
      %p595 = pneg %p594
    $region58: #{si_gnn_forward.1} parent=5 // pred_check_branch
      %597 = sbr.rel (%p595) target = $region60
    $region59: #{si_gnn_forward.1} parent=5 // pred_region
      // Predicated region
      $region61: #{si_gnn_forward.1} parent=59 // pred_check
        %p598 = pneg %p49
      $region62: #{si_gnn_forward.1} parent=59 // pred_check_branch
        %600 = sbr.rel (%p598) target = $region64
      $region63: #{si_gnn_forward.1} parent=59 // pred_region
        %s601 = smul.u32 28, %s29
        %p602 = scmp.lt.s32.totalorder %s601, 55
        %s603 = scalar_select %p602, %s601, 55
        %s604 = smul.addr %s603, 8
        %s605 = scalar_lea.vmem %s0, %s604
        %s606 = smul.u32 28, %s29
      $region64: #{si_gnn_forward.1} parent=59 // pred_fallthru
        _
      // Predicated region
      $region65: #{si_gnn_forward.1} parent=59 // pred_check
        %p607 = pneg %p75
      $region66: #{si_gnn_forward.1} parent=59 // pred_check_branch
        %609 = sbr.rel (%p607) target = $region68
      $region67: #{si_gnn_forward.1} parent=59 // pred_region
        %s610 = smul.u32 64, %s29
        %p611 = scmp.lt.s32.totalorder %s610, 127
        %s612 = scalar_select %p611, %s610, 127
        %s613 = smul.addr %s612, 8
        %s614 = scalar_lea.vmem %s1, %s613
        %s615 = smul.u32 64, %s29
      $region68: #{si_gnn_forward.1} parent=59 // pred_fallthru
        _
      // Predicated region
      $region69: #{si_gnn_forward.1} parent=59 // pred_check
        %p616 = pneg %p101
      $region70: #{si_gnn_forward.1} parent=59 // pred_check_branch
        %618 = sbr.rel (%p616) target = $region72
      $region71: #{si_gnn_forward.1} parent=59 // pred_region
        %s619 = smul.u32 28, %s29
        %p620 = scmp.lt.s32.totalorder %s619, 55
        %s621 = scalar_select %p620, %s619, 55
        %s622 = smul.addr %s621, 4
        %s623 = scalar_lea.vmem %s2, %s622
        %s624 = smul.u32 28, %s29
      $region72: #{si_gnn_forward.1} parent=59 // pred_fallthru
        _
      // Predicated region
      $region73: #{si_gnn_forward.1} parent=59 // pred_check
        %p625 = pneg %p127
      $region74: #{si_gnn_forward.1} parent=59 // pred_check_branch
        %627 = sbr.rel (%p625) target = $region76
      $region75: #{si_gnn_forward.1} parent=59 // pred_region
        %s628 = smul.u32 64, %s29
        %p629 = scmp.lt.s32.totalorder %s628, 127
        %s630 = scalar_select %p629, %s628, 127
        %s631 = smul.addr %s630, 4
        %s632 = scalar_lea.vmem %s3, %s631
        %s633 = smul.u32 64, %s29
      $region76: #{si_gnn_forward.1} parent=59 // pred_fallthru
        _
      // Predicated region
      $region77: #{si_gnn_forward.1} parent=59 // pred_check
        %p634 = pneg %p153
      $region78: #{si_gnn_forward.1} parent=59 // pred_check_branch
        %636 = sbr.rel (%p634) target = $region80
      $region79: #{si_gnn_forward.1} parent=59 // pred_region
        %s637 = smul.u32 28, %s29
        %p638 = scmp.lt.s32.totalorder %s637, 55
        %s639 = scalar_select %p638, %s637, 55
        %s640 = smul.addr %s639, 4
        %s641 = scalar_lea.vmem %s4, %s640
        %s642 = smul.u32 28, %s29
      $region80: #{si_gnn_forward.1} parent=59 // pred_fallthru
        _
      // Predicated region
      $region81: #{si_gnn_forward.1} parent=59 // pred_check
        %p643 = pneg %p179
      $region82: #{si_gnn_forward.1} parent=59 // pred_check_branch
        %645 = sbr.rel (%p643) target = $region84
      $region83: #{si_gnn_forward.1} parent=59 // pred_region
        %s646 = smul.u32 64, %s29
        %p647 = scmp.lt.s32.totalorder %s646, 127
        %s648 = scalar_select %p647, %s646, 127
        %s649 = smul.addr %s648, 4
        %s650 = scalar_lea.vmem %s5, %s649
        %s651 = smul.u32 64, %s29
      $region84: #{si_gnn_forward.1} parent=59 // pred_fallthru
        _
      // Predicated region
      $region85: #{si_gnn_forward.1} parent=59 // pred_check
        %p652 = pneg %p205
      $region86: #{si_gnn_forward.1} parent=59 // pred_check_branch
        %654 = sbr.rel (%p652) target = $region88
      $region87: #{si_gnn_forward.1} parent=59 // pred_region
        %s655 = smul.u32 4, %s29
        %p656 = scmp.lt.s32.totalorder %s655, 7
        %s657 = scalar_select %p656, %s655, 7
        %s658 = scalar_lea.vmem %s6, %s657
        %s659 = smul.u32 4, %s29
      $region88: #{si_gnn_forward.1} parent=59 // pred_fallthru
        _
      // Predicated region
      $region89: #{si_gnn_forward.1} parent=59 // pred_check
        %p660 = pneg %p231
      $region90: #{si_gnn_forward.1} parent=59 // pred_check_branch
        %662 = sbr.rel (%p660) target = $region92
      $region91: #{si_gnn_forward.1} parent=59 // pred_region
        %s663 = smul.u32 4, %s29
        %p664 = scmp.lt.s32.totalorder %s663, 7
        %s665 = scalar_select %p664, %s663, 7
        %s666 = scalar_lea.vmem %s7, %s665
        %s667 = smul.u32 4, %s29
      $region92: #{si_gnn_forward.1} parent=59 // pred_fallthru
        _
    $region60: #{si_gnn_forward.1} parent=5 // pred_fallthru
      _
    %p668 = scmp.le.s32.totalorder 1, %s29
    %p669 = scmp.lt.s32.totalorder %s29, 3
    %p670 = pnand %p668, %p669
    %p671 = pneg %p670
    // Predicated region
    $region93: #{si_gnn_forward.1} parent=5 // pred_check
      _
    $region94: #{si_gnn_forward.1} parent=5 // pred_check_branch
      %673 = sbr.rel (%p670) target = $region96
    $region95: #{si_gnn_forward.1} parent=5 // pred_region
      %s674 = ssub.s32 %s29, 1
      %s675 = smul.u32 28, %s34
      %p676 = scmp.lt.s32.totalorder %s675, 55
      %s677 = scalar_select %p676, %s675, 55
      %s678 = smul.addr %s677, 8
      %s679 = scalar_lea.vmem %s0, %s678
      %p680 = pneg %p55
      %p681 = pneg %p52
      %s682 = smul.u32 64, %s34
      %p683 = scmp.lt.s32.totalorder %s682, 127
      %s684 = scalar_select %p683, %s682, 127
      %s685 = smul.addr %s684, 8
      %s686 = scalar_lea.vmem %s1, %s685
      %p687 = pneg %p81
      %p688 = pneg %p78
      %s689 = smul.u32 28, %s34
      %p690 = scmp.lt.s32.totalorder %s689, 55
      %s691 = scalar_select %p690, %s689, 55
      %s692 = smul.addr %s691, 4
      %s693 = scalar_lea.vmem %s2, %s692
      %p694 = pneg %p107
      %p695 = pneg %p104
      %s696 = smul.u32 64, %s34
      %p697 = scmp.lt.s32.totalorder %s696, 127
      %s698 = scalar_select %p697, %s696, 127
      %s699 = smul.addr %s698, 4
      %s700 = scalar_lea.vmem %s3, %s699
      %p701 = pneg %p133
      %p702 = pneg %p130
      %s703 = smul.u32 28, %s34
      %p704 = scmp.lt.s32.totalorder %s703, 55
      %s705 = scalar_select %p704, %s703, 55
      %s706 = smul.addr %s705, 4
      %s707 = scalar_lea.vmem %s4, %s706
      %p708 = pneg %p159
      %p709 = pneg %p156
      %s710 = smul.u32 64, %s34
      %p711 = scmp.lt.s32.totalorder %s710, 127
      %s712 = scalar_select %p711, %s710, 127
      %s713 = smul.addr %s712, 4
      %s714 = scalar_lea.vmem %s5, %s713
      %p715 = pneg %p185
      %p716 = pneg %p182
      %s717 = smul.u32 4, %s34
      %p718 = scmp.lt.s32.totalorder %s717, 7
      %s719 = scalar_select %p718, %s717, 7
      %s720 = scalar_lea.vmem %s6, %s719
      %p721 = pneg %p211
      %p722 = pneg %p208
      %s723 = smul.u32 4, %s34
      %p724 = scmp.lt.s32.totalorder %s723, 7
      %s725 = scalar_select %p724, %s723, 7
      %s726 = scalar_lea.vmem %s7, %s725
      %p727 = pneg %p237
      %p728 = pneg %p234
      %p729 = pneg %p258
      %p730 = pneg %p255
      %p731 = pneg %p279
      %p732 = pneg %p276
      %p733 = pneg %p300
      %p734 = pneg %p297
      %p735 = pneg %p321
      %p736 = pneg %p318
      %p737 = pneg %p342
      %p738 = pneg %p339
      %p739 = pneg %p363
      %p740 = pneg %p360
      %p741 = pneg %p384
      %p742 = pneg %p381
      %p743 = pneg %p405
      %p744 = pneg %p402
      %p745 = pneg %p426
      %p746 = pneg %p423
      %p747 = pneg %p447
      %p748 = pneg %p444
      %p749 = pneg %p468
      %p750 = pneg %p465
      %p751 = pneg %p494
      %p752 = pneg %p491
      %s753 = smul.u32 28, %s34
      %p754 = scmp.lt.s32.totalorder %s753, 55
      %s755 = scalar_select %p754, %s753, 55
      %s756 = smul.addr %s755, 2
      %s757 = smul.addr %s756, 8
      %s758 = scalar_lea.vmem %s19, %s757
      %p759 = pneg %p520
      %p760 = pneg %p517
      %s761 = smul.u32 64, %s34
      %p762 = scmp.lt.s32.totalorder %s761, 127
      %s763 = scalar_select %p762, %s761, 127
      %s764 = smul.addr %s763, 8
      %s765 = scalar_lea.vmem %s20, %s764
      %p766 = pneg %p546
      %p767 = pneg %p543
      %s768 = smul.u32 28, %s34
      %p769 = scmp.lt.s32.totalorder %s768, 55
      %s770 = scalar_select %p769, %s768, 55
      %s771 = smul.addr %s770, 8
      %s772 = scalar_lea.vmem %s21, %s771
      %s773 = smul.u32 28, %s34
      %p774 = scmp.lt.s32.totalorder %s773, 55
      %s775 = scalar_select %p774, %s773, 55
      %s776 = smul.addr %s775, 8
      %s777 = scalar_lea.vmem %s0, %s776
      %s778 = smul.u32 28, %s34
      %s779 = smul.u32 64, %s34
      %p780 = scmp.lt.s32.totalorder %s779, 127
      %s781 = scalar_select %p780, %s779, 127
      %s782 = smul.addr %s781, 8
      %s783 = scalar_lea.vmem %s1, %s782
      %s784 = smul.u32 64, %s34
      %s785 = smul.u32 28, %s34
      %p786 = scmp.lt.s32.totalorder %s785, 55
      %s787 = scalar_select %p786, %s785, 55
      %s788 = smul.addr %s787, 4
      %s789 = scalar_lea.vmem %s2, %s788
      %s790 = smul.u32 28, %s34
      %s791 = smul.u32 64, %s34
      %p792 = scmp.lt.s32.totalorder %s791, 127
      %s793 = scalar_select %p792, %s791, 127
      %s794 = smul.addr %s793, 4
      %s795 = scalar_lea.vmem %s3, %s794
      %s796 = smul.u32 64, %s34
      %s797 = smul.u32 28, %s34
      %p798 = scmp.lt.s32.totalorder %s797, 55
      %s799 = scalar_select %p798, %s797, 55
      %s800 = smul.addr %s799, 4
      %s801 = scalar_lea.vmem %s4, %s800
      %s802 = smul.u32 28, %s34
      %s803 = smul.u32 64, %s34
      %p804 = scmp.lt.s32.totalorder %s803, 127
      %s805 = scalar_select %p804, %s803, 127
      %s806 = smul.addr %s805, 4
      %s807 = scalar_lea.vmem %s5, %s806
      %s808 = smul.u32 64, %s34
      %s809 = smul.u32 4, %s34
      %p810 = scmp.lt.s32.totalorder %s809, 7
      %s811 = scalar_select %p810, %s809, 7
      %s812 = scalar_lea.vmem %s6, %s811
      %s813 = smul.u32 4, %s34
      %s814 = smul.u32 4, %s34
      %p815 = scmp.lt.s32.totalorder %s814, 7
      %s816 = scalar_select %p815, %s814, 7
      %s817 = scalar_lea.vmem %s7, %s816
      %s818 = smul.u32 4, %s34
      %s819 = smul.u32 28, %s34
      %p820 = scmp.lt.s32.totalorder %s819, 55
      %s821 = scalar_select %p820, %s819, 55
      %s822 = smul.addr %s821, 2
      %s823 = smul.addr %s822, 8
      %s824 = scalar_lea.vmem %s19, %s823
      %s825 = smul.u32 28, %s34
      %s826 = smul.u32 64, %s34
      %p827 = scmp.lt.s32.totalorder %s826, 127
      %s828 = scalar_select %p827, %s826, 127
      %s829 = smul.addr %s828, 8
      %s830 = scalar_lea.vmem %s20, %s829
      %s831 = smul.u32 64, %s34
      %s832 = smul.u32 28, %s34
      %p833 = scmp.lt.s32.totalorder %s832, 55
      %s834 = scalar_select %p833, %s832, 55
      %s835 = smul.addr %s834, 8
      %s836 = scalar_lea.vmem %s21, %s835
      %s837 = smul.u32 28, %s34
      %s839 = sld [smem:[#allocation2]]
      %v840 = vld [vmem:[%s777] sm:$0xff]
      %v841 = vld [vmem:[%s777 + $0x8] sm:$0xff]
      %v842 = vld [vmem:[%s777 + $0x10] sm:$0xff]
      %v843 = vld [vmem:[%s777 + $0x18] sm:$0xff]
      %v844 = vld [vmem:[%s777 + $0x20] sm:$0xff]
      %v845 = vld [vmem:[%s777 + $0x28] sm:$0xff]
      %v846 = vld [vmem:[%s777 + $0x30] sm:$0xff]
      %v847 = vld [vmem:[%s777 + $0x38] sm:$0xff]
      %v848 = vld [vmem:[%s777 + $0x40] sm:$0xff]
      %v849 = vld [vmem:[%s777 + $0x48] sm:$0xff]
      %v850 = vld [vmem:[%s777 + $0x50] sm:$0xff]
      %v851 = vld [vmem:[%s777 + $0x58] sm:$0xff]
      %v852 = vld [vmem:[%s777 + $0x60] sm:$0xff]
      %v853 = vld [vmem:[%s777 + $0x68] sm:$0xff]
      %v854 = vld [vmem:[%s777 + $0x70] sm:$0xff]
      %v855 = vld [vmem:[%s777 + $0x78] sm:$0xff]
      %v856 = vld [vmem:[%s777 + $0x80] sm:$0xff]
      %v857 = vld [vmem:[%s777 + $0x88] sm:$0xff]
      %v858 = vld [vmem:[%s777 + $0x90] sm:$0xff]
      %v859 = vld [vmem:[%s777 + $0x98] sm:$0xff]
      %v860 = vld [vmem:[%s777 + $0xa0] sm:$0xff]
      %v861 = vld [vmem:[%s777 + $0xa8] sm:$0xff]
      %v862 = vld [vmem:[%s777 + $0xb0] sm:$0xff]
      %v863 = vld [vmem:[%s777 + $0xb8] sm:$0xff]
      %v864 = vld [vmem:[%s777 + $0xc0] sm:$0xff]
      %v865 = vld [vmem:[%s777 + $0xc8] sm:$0xff]
      %v866 = vld [vmem:[%s777 + $0xd0] sm:$0xff]
      %v867 = vld [vmem:[%s777 + $0xd8] sm:$0xff]
      %v868 = vld [vmem:[%s783] sm:$0xff]
      %v869 = vld [vmem:[%s783 + $0x8] sm:$0xff]
      %v870 = vld [vmem:[%s783 + $0x10] sm:$0xff]
      %v871 = vld [vmem:[%s783 + $0x18] sm:$0xff]
      %v872 = vld [vmem:[%s783 + $0x20] sm:$0xff]
      %v873 = vld [vmem:[%s783 + $0x28] sm:$0xff]
      %v874 = vld [vmem:[%s783 + $0x30] sm:$0xff]
      %v875 = vld [vmem:[%s783 + $0x38] sm:$0xff]
      %v876 = vld [vmem:[%s783 + $0x40] sm:$0xff]
      %v877 = vld [vmem:[%s783 + $0x48] sm:$0xff]
      %v878 = vld [vmem:[%s783 + $0x50] sm:$0xff]
      %v879 = vld [vmem:[%s783 + $0x58] sm:$0xff]
      %v880 = vld [vmem:[%s783 + $0x60] sm:$0xff]
      %v881 = vld [vmem:[%s783 + $0x68] sm:$0xff]
      %v882 = vld [vmem:[%s783 + $0x70] sm:$0xff]
      %v883 = vld [vmem:[%s783 + $0x78] sm:$0xff]
      %v884 = vld [vmem:[%s783 + $0x80] sm:$0xff]
      %v885 = vld [vmem:[%s783 + $0x88] sm:$0xff]
      %v886 = vld [vmem:[%s783 + $0x90] sm:$0xff]
      %v887 = vld [vmem:[%s783 + $0x98] sm:$0xff]
      %v888 = vld [vmem:[%s783 + $0xa0] sm:$0xff]
      %v889 = vld [vmem:[%s783 + $0xa8] sm:$0xff]
      %v890 = vld [vmem:[%s783 + $0xb0] sm:$0xff]
      %v891 = vld [vmem:[%s783 + $0xb8] sm:$0xff]
      %v892 = vld [vmem:[%s783 + $0xc0] sm:$0xff]
      %v893 = vld [vmem:[%s783 + $0xc8] sm:$0xff]
      %v894 = vld [vmem:[%s783 + $0xd0] sm:$0xff]
      %v895 = vld [vmem:[%s783 + $0xd8] sm:$0xff]
      %v896 = vld [vmem:[%s783 + $0xe0] sm:$0xff]
      %v897 = vld [vmem:[%s783 + $0xe8] sm:$0xff]
      %v898 = vld [vmem:[%s783 + $0xf0] sm:$0xff]
      %v899 = vld [vmem:[%s783 + $0xf8] sm:$0xff]
      %v900 = vld [vmem:[%s783 + $0x100] sm:$0xff]
      %v901 = vld [vmem:[%s783 + $0x108] sm:$0xff]
      %v902 = vld [vmem:[%s783 + $0x110] sm:$0xff]
      %v903 = vld [vmem:[%s783 + $0x118] sm:$0xff]
      %v904 = vld [vmem:[%s783 + $0x120] sm:$0xff]
      %v905 = vld [vmem:[%s783 + $0x128] sm:$0xff]
      %v906 = vld [vmem:[%s783 + $0x130] sm:$0xff]
      %v907 = vld [vmem:[%s783 + $0x138] sm:$0xff]
      %v908 = vld [vmem:[%s783 + $0x140] sm:$0xff]
      %v909 = vld [vmem:[%s783 + $0x148] sm:$0xff]
      %v910 = vld [vmem:[%s783 + $0x150] sm:$0xff]
      %v911 = vld [vmem:[%s783 + $0x158] sm:$0xff]
      %v912 = vld [vmem:[%s783 + $0x160] sm:$0xff]
      %v913 = vld [vmem:[%s783 + $0x168] sm:$0xff]
      %v914 = vld [vmem:[%s783 + $0x170] sm:$0xff]
      %v915 = vld [vmem:[%s783 + $0x178] sm:$0xff]
      %v916 = vld [vmem:[%s783 + $0x180] sm:$0xff]
      %v917 = vld [vmem:[%s783 + $0x188] sm:$0xff]
      %v918 = vld [vmem:[%s783 + $0x190] sm:$0xff]
      %v919 = vld [vmem:[%s783 + $0x198] sm:$0xff]
      %v920 = vld [vmem:[%s783 + $0x1a0] sm:$0xff]
      %v921 = vld [vmem:[%s783 + $0x1a8] sm:$0xff]
      %v922 = vld [vmem:[%s783 + $0x1b0] sm:$0xff]
      %v923 = vld [vmem:[%s783 + $0x1b8] sm:$0xff]
      %v924 = vld [vmem:[%s783 + $0x1c0] sm:$0xff]
      %v925 = vld [vmem:[%s783 + $0x1c8] sm:$0xff]
      %v926 = vld [vmem:[%s783 + $0x1d0] sm:$0xff]
      %v927 = vld [vmem:[%s783 + $0x1d8] sm:$0xff]
      %v928 = vld [vmem:[%s783 + $0x1e0] sm:$0xff]
      %v929 = vld [vmem:[%s783 + $0x1e8] sm:$0xff]
      %v930 = vld [vmem:[%s783 + $0x1f0] sm:$0xff]
      %v931 = vld [vmem:[%s783 + $0x1f8] sm:$0xff]
      %v932 = vpack.c.bf16 %v841, %v840
      %v933 = vpack.c.bf16 %v843, %v842
      %v934 = vpack.c.bf16 %v845, %v844
      %v935 = vpack.c.bf16 %v847, %v846
      %v936 = vpack.c.bf16 %v849, %v848
      %v937 = vpack.c.bf16 %v851, %v850
      %v938 = vpack.c.bf16 %v853, %v852
      %v939 = vpack.c.bf16 %v855, %v854
      %v940 = vpack.c.bf16 %v857, %v856
      %v941 = vpack.c.bf16 %v859, %v858
      %v942 = vpack.c.bf16 %v861, %v860
      %v943 = vpack.c.bf16 %v863, %v862
      %v944 = vpack.c.bf16 %v865, %v864
      %v945 = vpack.c.bf16 %v867, %v866
      %v946 = vld [vmem:[%s8] sm:$0xf]
      %v947 = vld [vmem:[%s8 + $0x4] sm:$0xf]
      %v948 = vld [vmem:[%s8 + $0x8] sm:$0xf]
      %v949 = vld [vmem:[%s8 + $0xc] sm:$0xf]
      %v950 = vld [vmem:[%s8 + $0x10] sm:$0xf]
      %v951 = vld [vmem:[%s8 + $0x14] sm:$0xf]
      %v952 = vld [vmem:[%s8 + $0x18] sm:$0xf]
      %v953 = vld [vmem:[%s8 + $0x1c] sm:$0xf]
      %v954 = vld [vmem:[%s8 + $0x20] sm:$0xf]
      %v955 = vld [vmem:[%s8 + $0x24] sm:$0xf]
      %v956 = vld [vmem:[%s8 + $0x28] sm:$0xf]
      %v957 = vld [vmem:[%s8 + $0x2c] sm:$0xf]
      %v958 = vld [vmem:[%s8 + $0x30] sm:$0xf]
      %v959 = vld [vmem:[%s8 + $0x34] sm:$0xf]
      %v960 = vld [vmem:[%s8 + $0x38] sm:$0xf]
      %v961 = vld [vmem:[%s8 + $0x3c] sm:$0xf]
      %v962 = vld [vmem:[%s789] sm:$0xf]
      %v963 = vld [vmem:[%s789 + $0x4] sm:$0xf]
      %v964 = vld [vmem:[%s789 + $0x8] sm:$0xf]
      %v965 = vld [vmem:[%s789 + $0xc] sm:$0xf]
      %v966 = vld [vmem:[%s789 + $0x10] sm:$0xf]
      %v967 = vld [vmem:[%s789 + $0x14] sm:$0xf]
      %v968 = vld [vmem:[%s789 + $0x18] sm:$0xf]
      %v969 = vld [vmem:[%s789 + $0x1c] sm:$0xf]
      %v970 = vld [vmem:[%s789 + $0x20] sm:$0xf]
      %v971 = vld [vmem:[%s789 + $0x24] sm:$0xf]
      %v972 = vld [vmem:[%s789 + $0x28] sm:$0xf]
      %v973 = vld [vmem:[%s789 + $0x2c] sm:$0xf]
      %v974 = vld [vmem:[%s789 + $0x30] sm:$0xf]
      %v975 = vld [vmem:[%s789 + $0x34] sm:$0xf]
      %v976 = vld [vmem:[%s789 + $0x38] sm:$0xf]
      %v977 = vld [vmem:[%s789 + $0x3c] sm:$0xf]
      %v978 = vld [vmem:[%s789 + $0x40] sm:$0xf]
      %v979 = vld [vmem:[%s789 + $0x44] sm:$0xf]
      %v980 = vld [vmem:[%s789 + $0x48] sm:$0xf]
      %v981 = vld [vmem:[%s789 + $0x4c] sm:$0xf]
      %v982 = vld [vmem:[%s789 + $0x50] sm:$0xf]
      %v983 = vld [vmem:[%s789 + $0x54] sm:$0xf]
      %v984 = vld [vmem:[%s789 + $0x58] sm:$0xf]
      %v985 = vld [vmem:[%s789 + $0x5c] sm:$0xf]
      %v986 = vld [vmem:[%s789 + $0x60] sm:$0xf]
      %v987 = vld [vmem:[%s789 + $0x64] sm:$0xf]
      %v988 = vld [vmem:[%s789 + $0x68] sm:$0xf]
      %v989 = vld [vmem:[%s789 + $0x6c] sm:$0xf]
      %v990 = vld [vmem:[%s9] sm:$0xf]
      %v991 = vld [vmem:[%s9 + $0x4] sm:$0xf]
      %v992 = vld [vmem:[%s9 + $0x8] sm:$0xf]
      %v993 = vld [vmem:[%s9 + $0xc] sm:$0xf]
      %v1022 = vunpack.c.l.b16 %v962
      %v1023 = vunpack.c.l.b16 %v963
      %v1024 = vunpack.c.l.b16 %v964
      %v1025 = vunpack.c.l.b16 %v965
      %v1026 = vunpack.c.l.b16 %v966
      %v1027 = vunpack.c.l.b16 %v967
      %v1028 = vunpack.c.l.b16 %v968
      %v1029 = vunpack.c.l.b16 %v969
      %v1030 = vunpack.c.l.b16 %v970
      %v1031 = vunpack.c.l.b16 %v971
      %v1032 = vunpack.c.l.b16 %v972
      %v1033 = vunpack.c.l.b16 %v973
      %v1034 = vunpack.c.l.b16 %v974
      %v1035 = vunpack.c.l.b16 %v975
      %v1036 = vunpack.c.l.b16 %v976
      %v1037 = vunpack.c.l.b16 %v977
      %v1038 = vunpack.c.l.b16 %v978
      %v1039 = vunpack.c.l.b16 %v979
      %v1040 = vunpack.c.l.b16 %v980
      %v1041 = vunpack.c.l.b16 %v981
      %v1042 = vunpack.c.l.b16 %v982
      %v1043 = vunpack.c.l.b16 %v983
      %v1044 = vunpack.c.l.b16 %v984
      %v1045 = vunpack.c.l.b16 %v985
      %v1046 = vunpack.c.l.b16 %v986
      %v1047 = vunpack.c.l.b16 %v987
      %v1048 = vunpack.c.l.b16 %v988
      %v1049 = vunpack.c.l.b16 %v989
      %v1050 = vpack.c.b16 %v1023, %v1022
      %v1051 = vpack.c.b16 %v1025, %v1024
      %v1052 = vpack.c.b16 %v1027, %v1026
      %v1053 = vpack.c.b16 %v1029, %v1028
      %v1054 = vpack.c.b16 %v1031, %v1030
      %v1055 = vpack.c.b16 %v1033, %v1032
      %v1056 = vpack.c.b16 %v1035, %v1034
      %v1057 = vpack.c.b16 %v1037, %v1036
      %v1058 = vpack.c.b16 %v1039, %v1038
      %v1059 = vpack.c.b16 %v1041, %v1040
      %v1060 = vpack.c.b16 %v1043, %v1042
      %v1061 = vpack.c.b16 %v1045, %v1044
      %v1062 = vpack.c.b16 %v1047, %v1046
      %v1063 = vpack.c.b16 %v1049, %v1048
      %v1068 = vunpack.c.l.b16 %v990
      %v1069 = vunpack.c.l.b16 %v991
      %v1070 = vunpack.c.l.b16 %v992
      %v1071 = vunpack.c.l.b16 %v993
      %v1072 = vpack.c.b16 %v1069, %v1068
      %v1073 = vpack.c.b16 %v1071, %v1070
      %vm1076 = vcmask 261120
      %v1078 = vsel %vm1076, %v1050, 0
      %v1081 = vsel %vm1076, %v1051, 0
      %v1084 = vsel %vm1076, %v1052, 0
      %v1087 = vsel %vm1076, %v1053, 0
      %v1090 = vsel %vm1076, %v1054, 0
      %v1093 = vsel %vm1076, %v1055, 0
      %v1096 = vsel %vm1076, %v1056, 0
      %v1099 = vsel %vm1076, %v1057, 0
      %v1102 = vsel %vm1076, %v1058, 0
      %v1105 = vsel %vm1076, %v1059, 0
      %v1108 = vsel %vm1076, %v1060, 0
      %v1111 = vsel %vm1076, %v1061, 0
      %v1114 = vsel %vm1076, %v1062, 0
      %v1117 = vsel %vm1076, %v1063, 0
      %1119 = vmatpush.bf16.msra.mxu0 0
      %1120 = vmatpush.bf16.msra.mxu0 0
      %1121 = vmatpush.bf16.msra.mxu0 0
      %1122 = vmatpush.bf16.msra.mxu0 0
      %1123 = vmatpush.bf16.msra.mxu0 0
      %1124 = vmatpush.bf16.msra.mxu0 0
      %1125 = vmatpush.bf16.msra.mxu0 %v1073
      %1126 = vmatpush.bf16.msra.mxu0 %v1072
      %1127 = vmatmul.bf16.gmra.mxu0 %v1078
      %v1128 = vpop.f32.mrf.mxu0
      %v1129 = vadd.f32 0.0, %v1128
      %v1130 = vpop.f32.mrf.mxu0
      %v1131 = vadd.f32 0.0, %v1130
      %1132 = vmatmul.bf16.gmra.mxu0 %v1081
      %v1133 = vpop.f32.mrf.mxu0
      %v1134 = vadd.f32 0.0, %v1133
      %v1135 = vpop.f32.mrf.mxu0
      %v1136 = vadd.f32 0.0, %v1135
      %1137 = vmatmul.bf16.gmra.mxu0 %v1084
      %v1138 = vpop.f32.mrf.mxu0
      %v1139 = vadd.f32 0.0, %v1138
      %v1140 = vpop.f32.mrf.mxu0
      %v1141 = vadd.f32 0.0, %v1140
      %1142 = vmatmul.bf16.gmra.mxu0 %v1087
      %v1143 = vpop.f32.mrf.mxu0
      %v1144 = vadd.f32 0.0, %v1143
      %v1145 = vpop.f32.mrf.mxu0
      %v1146 = vadd.f32 0.0, %v1145
      %1147 = vmatmul.bf16.gmra.mxu0 %v1090
      %v1148 = vpop.f32.mrf.mxu0
      %v1149 = vadd.f32 0.0, %v1148
      %v1150 = vpop.f32.mrf.mxu0
      %v1151 = vadd.f32 0.0, %v1150
      %1152 = vmatmul.bf16.gmra.mxu0 %v1093
      %v1153 = vpop.f32.mrf.mxu0
      %v1154 = vadd.f32 0.0, %v1153
      %v1155 = vpop.f32.mrf.mxu0
      %v1156 = vadd.f32 0.0, %v1155
      %1157 = vmatmul.bf16.gmra.mxu0 %v1096
      %v1158 = vpop.f32.mrf.mxu0
      %v1159 = vadd.f32 0.0, %v1158
      %v1160 = vpop.f32.mrf.mxu0
      %v1161 = vadd.f32 0.0, %v1160
      %1162 = vmatmul.bf16.gmra.mxu0 %v1099
      %v1163 = vpop.f32.mrf.mxu0
      %v1164 = vadd.f32 0.0, %v1163
      %v1165 = vpop.f32.mrf.mxu0
      %v1166 = vadd.f32 0.0, %v1165
      %1167 = vmatmul.bf16.gmra.mxu0 %v1102
      %v1168 = vpop.f32.mrf.mxu0
      %v1169 = vadd.f32 0.0, %v1168
      %v1170 = vpop.f32.mrf.mxu0
      %v1171 = vadd.f32 0.0, %v1170
      %1172 = vmatmul.bf16.gmra.mxu0 %v1105
      %v1173 = vpop.f32.mrf.mxu0
      %v1174 = vadd.f32 0.0, %v1173
      %v1175 = vpop.f32.mrf.mxu0
      %v1176 = vadd.f32 0.0, %v1175
      %1177 = vmatmul.bf16.gmra.mxu0 %v1108
      %v1178 = vpop.f32.mrf.mxu0
      %v1179 = vadd.f32 0.0, %v1178
      %v1180 = vpop.f32.mrf.mxu0
      %v1181 = vadd.f32 0.0, %v1180
      %1182 = vmatmul.bf16.gmra.mxu0 %v1111
      %v1183 = vpop.f32.mrf.mxu0
      %v1184 = vadd.f32 0.0, %v1183
      %v1185 = vpop.f32.mrf.mxu0
      %v1186 = vadd.f32 0.0, %v1185
      %1187 = vmatmul.bf16.gmra.mxu0 %v1114
      %v1188 = vpop.f32.mrf.mxu0
      %v1189 = vadd.f32 0.0, %v1188
      %v1190 = vpop.f32.mrf.mxu0
      %v1191 = vadd.f32 0.0, %v1190
      %1192 = vmatmul.bf16.gmra.mxu0 %v1117
      %v1193 = vpop.f32.mrf.mxu0
      %v1194 = vadd.f32 0.0, %v1193
      %v1195 = vpop.f32.mrf.mxu0
      %v1196 = vadd.f32 0.0, %v1195
      %1197 = vdwg.mxu0
      %v1214 = vunpack.c.l.b16 %v946
      %v1215 = vunpack.c.l.b16 %v947
      %v1216 = vunpack.c.l.b16 %v948
      %v1217 = vunpack.c.l.b16 %v949
      %v1218 = vunpack.c.l.b16 %v950
      %v1219 = vunpack.c.l.b16 %v951
      %v1220 = vunpack.c.l.b16 %v952
      %v1221 = vunpack.c.l.b16 %v953
      %v1222 = vunpack.c.l.b16 %v954
      %v1223 = vunpack.c.l.b16 %v955
      %v1224 = vunpack.c.l.b16 %v956
      %v1225 = vunpack.c.l.b16 %v957
      %v1226 = vunpack.c.l.b16 %v958
      %v1227 = vunpack.c.l.b16 %v959
      %v1228 = vunpack.c.l.b16 %v960
      %v1229 = vunpack.c.l.b16 %v961
      %v1230 = vpack.c.b16 %v1215, %v1214
      %v1231 = vpack.c.b16 %v1217, %v1216
      %v1232 = vpack.c.b16 %v1219, %v1218
      %v1233 = vpack.c.b16 %v1221, %v1220
      %v1234 = vpack.c.b16 %v1223, %v1222
      %v1235 = vpack.c.b16 %v1225, %v1224
      %v1236 = vpack.c.b16 %v1227, %v1226
      %v1237 = vpack.c.b16 %v1229, %v1228
      %1246 = vmatpush.bf16.msra.mxu0 %v1237
      %1247 = vmatpush.bf16.msra.mxu0 %v1236
      %1248 = vmatpush.bf16.msra.mxu0 %v1235
      %1249 = vmatpush.bf16.msra.mxu0 %v1234
      %1250 = vmatpush.bf16.msra.mxu0 %v1233
      %1251 = vmatpush.bf16.msra.mxu0 %v1232
      %1252 = vmatpush.bf16.msra.mxu0 %v1231
      %1253 = vmatpush.bf16.msra.mxu0 %v1230
      %1254 = vmatmul.bf16.gmra.mxu0 %v932
      %v1255 = vpop.f32.mrf.mxu0
      %v1256 = vadd.f32 %v1129, %v1255
      %v1257 = vpop.f32.mrf.mxu0
      %v1258 = vadd.f32 %v1131, %v1257
      %1259 = vmatmul.bf16.gmra.mxu0 %v933
      %v1260 = vpop.f32.mrf.mxu0
      %v1261 = vadd.f32 %v1134, %v1260
      %v1262 = vpop.f32.mrf.mxu0
      %v1263 = vadd.f32 %v1136, %v1262
      %1264 = vmatmul.bf16.gmra.mxu0 %v934
      %v1265 = vpop.f32.mrf.mxu0
      %v1266 = vadd.f32 %v1139, %v1265
      %v1267 = vpop.f32.mrf.mxu0
      %v1268 = vadd.f32 %v1141, %v1267
      %1269 = vmatmul.bf16.gmra.mxu0 %v935
      %v1270 = vpop.f32.mrf.mxu0
      %v1271 = vadd.f32 %v1144, %v1270
      %v1272 = vpop.f32.mrf.mxu0
      %v1273 = vadd.f32 %v1146, %v1272
      %1274 = vmatmul.bf16.gmra.mxu0 %v936
      %v1275 = vpop.f32.mrf.mxu0
      %v1276 = vadd.f32 %v1149, %v1275
      %v1277 = vpop.f32.mrf.mxu0
      %v1278 = vadd.f32 %v1151, %v1277
      %1279 = vmatmul.bf16.gmra.mxu0 %v937
      %v1280 = vpop.f32.mrf.mxu0
      %v1281 = vadd.f32 %v1154, %v1280
      %v1282 = vpop.f32.mrf.mxu0
      %v1283 = vadd.f32 %v1156, %v1282
      %1284 = vmatmul.bf16.gmra.mxu0 %v938
      %v1285 = vpop.f32.mrf.mxu0
      %v1286 = vadd.f32 %v1159, %v1285
      %v1287 = vpop.f32.mrf.mxu0
      %v1288 = vadd.f32 %v1161, %v1287
      %1289 = vmatmul.bf16.gmra.mxu0 %v939
      %v1290 = vpop.f32.mrf.mxu0
      %v1291 = vadd.f32 %v1164, %v1290
      %v1292 = vpop.f32.mrf.mxu0
      %v1293 = vadd.f32 %v1166, %v1292
      %1294 = vmatmul.bf16.gmra.mxu0 %v940
      %v1295 = vpop.f32.mrf.mxu0
      %v1296 = vadd.f32 %v1169, %v1295
      %v1297 = vpop.f32.mrf.mxu0
      %v1298 = vadd.f32 %v1171, %v1297
      %1299 = vmatmul.bf16.gmra.mxu0 %v941
      %v1300 = vpop.f32.mrf.mxu0
      %v1301 = vadd.f32 %v1174, %v1300
      %v1302 = vpop.f32.mrf.mxu0
      %v1303 = vadd.f32 %v1176, %v1302
      %1304 = vmatmul.bf16.gmra.mxu0 %v942
      %v1305 = vpop.f32.mrf.mxu0
      %v1306 = vadd.f32 %v1179, %v1305
      %v1307 = vpop.f32.mrf.mxu0
      %v1308 = vadd.f32 %v1181, %v1307
      %1309 = vmatmul.bf16.gmra.mxu0 %v943
      %v1310 = vpop.f32.mrf.mxu0
      %v1311 = vadd.f32 %v1184, %v1310
      %v1312 = vpop.f32.mrf.mxu0
      %v1313 = vadd.f32 %v1186, %v1312
      %1314 = vmatmul.bf16.gmra.mxu0 %v944
      %v1315 = vpop.f32.mrf.mxu0
      %v1316 = vadd.f32 %v1189, %v1315
      %v1317 = vpop.f32.mrf.mxu0
      %v1318 = vadd.f32 %v1191, %v1317
      %1319 = vmatmul.bf16.gmra.mxu0 %v945
      %v1320 = vpop.f32.mrf.mxu0
      %v1321 = vadd.f32 %v1194, %v1320
      %v1322 = vpop.f32.mrf.mxu0
      %v1323 = vadd.f32 %v1196, %v1322
      %1324 = vdwg.mxu0
      %v1325 = vld [vmem:[%s10] sm:$0x1]
      %v1327 = vperm.slane %v1325, 0
      %v1329 = vadd.f32 %v1256, %v1327
      %v1330 = vadd.f32 %v1258, %v1327
      %v1331 = vadd.f32 %v1261, %v1327
      %v1332 = vadd.f32 %v1263, %v1327
      %v1333 = vadd.f32 %v1266, %v1327
      %v1334 = vadd.f32 %v1268, %v1327
      %v1335 = vadd.f32 %v1271, %v1327
      %v1336 = vadd.f32 %v1273, %v1327
      %v1337 = vadd.f32 %v1276, %v1327
      %v1338 = vadd.f32 %v1278, %v1327
      %v1339 = vadd.f32 %v1281, %v1327
      %v1340 = vadd.f32 %v1283, %v1327
      %v1341 = vadd.f32 %v1286, %v1327
      %v1342 = vadd.f32 %v1288, %v1327
      %v1343 = vadd.f32 %v1291, %v1327
      %v1344 = vadd.f32 %v1293, %v1327
      %v1345 = vadd.f32 %v1296, %v1327
      %v1346 = vadd.f32 %v1298, %v1327
      %v1347 = vadd.f32 %v1301, %v1327
      %v1348 = vadd.f32 %v1303, %v1327
      %v1349 = vadd.f32 %v1306, %v1327
      %v1350 = vadd.f32 %v1308, %v1327
      %v1351 = vadd.f32 %v1311, %v1327
      %v1352 = vadd.f32 %v1313, %v1327
      %v1353 = vadd.f32 %v1316, %v1327
      %v1354 = vadd.f32 %v1318, %v1327
      %v1355 = vadd.f32 %v1321, %v1327
      %v1356 = vadd.f32 %v1323, %v1327
      %v1357 = vpack.c.bf16 %v869, %v868
      %v1358 = vpack.c.bf16 %v871, %v870
      %v1359 = vpack.c.bf16 %v873, %v872
      %v1360 = vpack.c.bf16 %v875, %v874
      %v1361 = vpack.c.bf16 %v877, %v876
      %v1362 = vpack.c.bf16 %v879, %v878
      %v1363 = vpack.c.bf16 %v881, %v880
      %v1364 = vpack.c.bf16 %v883, %v882
      %v1365 = vpack.c.bf16 %v885, %v884
      %v1366 = vpack.c.bf16 %v887, %v886
      %v1367 = vpack.c.bf16 %v889, %v888
      %v1368 = vpack.c.bf16 %v891, %v890
      %v1369 = vpack.c.bf16 %v893, %v892
      %v1370 = vpack.c.bf16 %v895, %v894
      %v1371 = vpack.c.bf16 %v897, %v896
      %v1372 = vpack.c.bf16 %v899, %v898
      %v1373 = vpack.c.bf16 %v901, %v900
      %v1374 = vpack.c.bf16 %v903, %v902
      %v1375 = vpack.c.bf16 %v905, %v904
      %v1376 = vpack.c.bf16 %v907, %v906
      %v1377 = vpack.c.bf16 %v909, %v908
      %v1378 = vpack.c.bf16 %v911, %v910
      %v1379 = vpack.c.bf16 %v913, %v912
      %v1380 = vpack.c.bf16 %v915, %v914
      %v1381 = vpack.c.bf16 %v917, %v916
      %v1382 = vpack.c.bf16 %v919, %v918
      %v1383 = vpack.c.bf16 %v921, %v920
      %v1384 = vpack.c.bf16 %v923, %v922
      %v1385 = vpack.c.bf16 %v925, %v924
      %v1386 = vpack.c.bf16 %v927, %v926
      %v1387 = vpack.c.bf16 %v929, %v928
      %v1388 = vpack.c.bf16 %v931, %v930
      %v1389 = vld [vmem:[%s11] sm:$0xf]
      %v1390 = vld [vmem:[%s11 + $0x4] sm:$0xf]
      %v1391 = vld [vmem:[%s11 + $0x8] sm:$0xf]
      %v1392 = vld [vmem:[%s11 + $0xc] sm:$0xf]
      %v1393 = vld [vmem:[%s11 + $0x10] sm:$0xf]
      %v1394 = vld [vmem:[%s11 + $0x14] sm:$0xf]
      %v1395 = vld [vmem:[%s11 + $0x18] sm:$0xf]
      %v1396 = vld [vmem:[%s11 + $0x1c] sm:$0xf]
      %v1397 = vld [vmem:[%s11 + $0x20] sm:$0xf]
      %v1398 = vld [vmem:[%s11 + $0x24] sm:$0xf]
      %v1399 = vld [vmem:[%s11 + $0x28] sm:$0xf]
      %v1400 = vld [vmem:[%s11 + $0x2c] sm:$0xf]
      %v1401 = vld [vmem:[%s11 + $0x30] sm:$0xf]
      %v1402 = vld [vmem:[%s11 + $0x34] sm:$0xf]
      %v1403 = vld [vmem:[%s11 + $0x38] sm:$0xf]
      %v1404 = vld [vmem:[%s11 + $0x3c] sm:$0xf]
      %v1405 = vld [vmem:[%s795] sm:$0xf]
      %v1406 = vld [vmem:[%s795 + $0x4] sm:$0xf]
      %v1407 = vld [vmem:[%s795 + $0x8] sm:$0xf]
      %v1408 = vld [vmem:[%s795 + $0xc] sm:$0xf]
      %v1409 = vld [vmem:[%s795 + $0x10] sm:$0xf]
      %v1410 = vld [vmem:[%s795 + $0x14] sm:$0xf]
      %v1411 = vld [vmem:[%s795 + $0x18] sm:$0xf]
      %v1412 = vld [vmem:[%s795 + $0x1c] sm:$0xf]
      %v1413 = vld [vmem:[%s795 + $0x20] sm:$0xf]
      %v1414 = vld [vmem:[%s795 + $0x24] sm:$0xf]
      %v1415 = vld [vmem:[%s795 + $0x28] sm:$0xf]
      %v1416 = vld [vmem:[%s795 + $0x2c] sm:$0xf]
      %v1417 = vld [vmem:[%s795 + $0x30] sm:$0xf]
      %v1418 = vld [vmem:[%s795 + $0x34] sm:$0xf]
      %v1419 = vld [vmem:[%s795 + $0x38] sm:$0xf]
      %v1420 = vld [vmem:[%s795 + $0x3c] sm:$0xf]
      %v1421 = vld [vmem:[%s795 + $0x40] sm:$0xf]
      %v1422 = vld [vmem:[%s795 + $0x44] sm:$0xf]
      %v1423 = vld [vmem:[%s795 + $0x48] sm:$0xf]
      %v1424 = vld [vmem:[%s795 + $0x4c] sm:$0xf]
      %v1425 = vld [vmem:[%s795 + $0x50] sm:$0xf]
      %v1426 = vld [vmem:[%s795 + $0x54] sm:$0xf]
      %v1427 = vld [vmem:[%s795 + $0x58] sm:$0xf]
      %v1428 = vld [vmem:[%s795 + $0x5c] sm:$0xf]
      %v1429 = vld [vmem:[%s795 + $0x60] sm:$0xf]
      %v1430 = vld [vmem:[%s795 + $0x64] sm:$0xf]
      %v1431 = vld [vmem:[%s795 + $0x68] sm:$0xf]
      %v1432 = vld [vmem:[%s795 + $0x6c] sm:$0xf]
      %v1433 = vld [vmem:[%s795 + $0x70] sm:$0xf]
      %v1434 = vld [vmem:[%s795 + $0x74] sm:$0xf]
      %v1435 = vld [vmem:[%s795 + $0x78] sm:$0xf]
      %v1436 = vld [vmem:[%s795 + $0x7c] sm:$0xf]
      %v1437 = vld [vmem:[%s795 + $0x80] sm:$0xf]
      %v1438 = vld [vmem:[%s795 + $0x84] sm:$0xf]
      %v1439 = vld [vmem:[%s795 + $0x88] sm:$0xf]
      %v1440 = vld [vmem:[%s795 + $0x8c] sm:$0xf]
      %v1441 = vld [vmem:[%s795 + $0x90] sm:$0xf]
      %v1442 = vld [vmem:[%s795 + $0x94] sm:$0xf]
      %v1443 = vld [vmem:[%s795 + $0x98] sm:$0xf]
      %v1444 = vld [vmem:[%s795 + $0x9c] sm:$0xf]
      %v1445 = vld [vmem:[%s795 + $0xa0] sm:$0xf]
      %v1446 = vld [vmem:[%s795 + $0xa4] sm:$0xf]
      %v1447 = vld [vmem:[%s795 + $0xa8] sm:$0xf]
      %v1448 = vld [vmem:[%s795 + $0xac] sm:$0xf]
      %v1449 = vld [vmem:[%s795 + $0xb0] sm:$0xf]
      %v1450 = vld [vmem:[%s795 + $0xb4] sm:$0xf]
      %v1451 = vld [vmem:[%s795 + $0xb8] sm:$0xf]
      %v1452 = vld [vmem:[%s795 + $0xbc] sm:$0xf]
      %v1453 = vld [vmem:[%s795 + $0xc0] sm:$0xf]
      %v1454 = vld [vmem:[%s795 + $0xc4] sm:$0xf]
      %v1455 = vld [vmem:[%s795 + $0xc8] sm:$0xf]
      %v1456 = vld [vmem:[%s795 + $0xcc] sm:$0xf]
      %v1457 = vld [vmem:[%s795 + $0xd0] sm:$0xf]
      %v1458 = vld [vmem:[%s795 + $0xd4] sm:$0xf]
      %v1459 = vld [vmem:[%s795 + $0xd8] sm:$0xf]
      %v1460 = vld [vmem:[%s795 + $0xdc] sm:$0xf]
      %v1461 = vld [vmem:[%s795 + $0xe0] sm:$0xf]
      %v1462 = vld [vmem:[%s795 + $0xe4] sm:$0xf]
      %v1463 = vld [vmem:[%s795 + $0xe8] sm:$0xf]
      %v1464 = vld [vmem:[%s795 + $0xec] sm:$0xf]
      %v1465 = vld [vmem:[%s795 + $0xf0] sm:$0xf]
      %v1466 = vld [vmem:[%s795 + $0xf4] sm:$0xf]
      %v1467 = vld [vmem:[%s795 + $0xf8] sm:$0xf]
      %v1468 = vld [vmem:[%s795 + $0xfc] sm:$0xf]
      %v1469 = vld [vmem:[%s12] sm:$0xf]
      %v1470 = vld [vmem:[%s12 + $0x4] sm:$0xf]
      %v1471 = vld [vmem:[%s12 + $0x8] sm:$0xf]
      %v1472 = vld [vmem:[%s12 + $0xc] sm:$0xf]
      %v1537 = vunpack.c.l.b16 %v1405
      %v1538 = vunpack.c.l.b16 %v1406
      %v1539 = vunpack.c.l.b16 %v1407
      %v1540 = vunpack.c.l.b16 %v1408
      %v1541 = vunpack.c.l.b16 %v1409
      %v1542 = vunpack.c.l.b16 %v1410
      %v1543 = vunpack.c.l.b16 %v1411
      %v1544 = vunpack.c.l.b16 %v1412
      %v1545 = vunpack.c.l.b16 %v1413
      %v1546 = vunpack.c.l.b16 %v1414
      %v1547 = vunpack.c.l.b16 %v1415
      %v1548 = vunpack.c.l.b16 %v1416
      %v1549 = vunpack.c.l.b16 %v1417
      %v1550 = vunpack.c.l.b16 %v1418
      %v1551 = vunpack.c.l.b16 %v1419
      %v1552 = vunpack.c.l.b16 %v1420
      %v1553 = vunpack.c.l.b16 %v1421
      %v1554 = vunpack.c.l.b16 %v1422
      %v1555 = vunpack.c.l.b16 %v1423
      %v1556 = vunpack.c.l.b16 %v1424
      %v1557 = vunpack.c.l.b16 %v1425
      %v1558 = vunpack.c.l.b16 %v1426
      %v1559 = vunpack.c.l.b16 %v1427
      %v1560 = vunpack.c.l.b16 %v1428
      %v1561 = vunpack.c.l.b16 %v1429
      %v1562 = vunpack.c.l.b16 %v1430
      %v1563 = vunpack.c.l.b16 %v1431
      %v1564 = vunpack.c.l.b16 %v1432
      %v1565 = vunpack.c.l.b16 %v1433
      %v1566 = vunpack.c.l.b16 %v1434
      %v1567 = vunpack.c.l.b16 %v1435
      %v1568 = vunpack.c.l.b16 %v1436
      %v1569 = vunpack.c.l.b16 %v1437
      %v1570 = vunpack.c.l.b16 %v1438
      %v1571 = vunpack.c.l.b16 %v1439
      %v1572 = vunpack.c.l.b16 %v1440
      %v1573 = vunpack.c.l.b16 %v1441
      %v1574 = vunpack.c.l.b16 %v1442
      %v1575 = vunpack.c.l.b16 %v1443
      %v1576 = vunpack.c.l.b16 %v1444
      %v1577 = vunpack.c.l.b16 %v1445
      %v1578 = vunpack.c.l.b16 %v1446
      %v1579 = vunpack.c.l.b16 %v1447
      %v1580 = vunpack.c.l.b16 %v1448
      %v1581 = vunpack.c.l.b16 %v1449
      %v1582 = vunpack.c.l.b16 %v1450
      %v1583 = vunpack.c.l.b16 %v1451
      %v1584 = vunpack.c.l.b16 %v1452
      %v1585 = vunpack.c.l.b16 %v1453
      %v1586 = vunpack.c.l.b16 %v1454
      %v1587 = vunpack.c.l.b16 %v1455
      %v1588 = vunpack.c.l.b16 %v1456
      %v1589 = vunpack.c.l.b16 %v1457
      %v1590 = vunpack.c.l.b16 %v1458
      %v1591 = vunpack.c.l.b16 %v1459
      %v1592 = vunpack.c.l.b16 %v1460
      %v1593 = vunpack.c.l.b16 %v1461
      %v1594 = vunpack.c.l.b16 %v1462
      %v1595 = vunpack.c.l.b16 %v1463
      %v1596 = vunpack.c.l.b16 %v1464
      %v1597 = vunpack.c.l.b16 %v1465
      %v1598 = vunpack.c.l.b16 %v1466
      %v1599 = vunpack.c.l.b16 %v1467
      %v1600 = vunpack.c.l.b16 %v1468
      %v1601 = vpack.c.b16 %v1538, %v1537
      %v1602 = vpack.c.b16 %v1540, %v1539
      %v1603 = vpack.c.b16 %v1542, %v1541
      %v1604 = vpack.c.b16 %v1544, %v1543
      %v1605 = vpack.c.b16 %v1546, %v1545
      %v1606 = vpack.c.b16 %v1548, %v1547
      %v1607 = vpack.c.b16 %v1550, %v1549
      %v1608 = vpack.c.b16 %v1552, %v1551
      %v1609 = vpack.c.b16 %v1554, %v1553
      %v1610 = vpack.c.b16 %v1556, %v1555
      %v1611 = vpack.c.b16 %v1558, %v1557
      %v1612 = vpack.c.b16 %v1560, %v1559
      %v1613 = vpack.c.b16 %v1562, %v1561
      %v1614 = vpack.c.b16 %v1564, %v1563
      %v1615 = vpack.c.b16 %v1566, %v1565
      %v1616 = vpack.c.b16 %v1568, %v1567
      %v1617 = vpack.c.b16 %v1570, %v1569
      %v1618 = vpack.c.b16 %v1572, %v1571
      %v1619 = vpack.c.b16 %v1574, %v1573
      %v1620 = vpack.c.b16 %v1576, %v1575
      %v1621 = vpack.c.b16 %v1578, %v1577
      %v1622 = vpack.c.b16 %v1580, %v1579
      %v1623 = vpack.c.b16 %v1582, %v1581
      %v1624 = vpack.c.b16 %v1584, %v1583
      %v1625 = vpack.c.b16 %v1586, %v1585
      %v1626 = vpack.c.b16 %v1588, %v1587
      %v1627 = vpack.c.b16 %v1590, %v1589
      %v1628 = vpack.c.b16 %v1592, %v1591
      %v1629 = vpack.c.b16 %v1594, %v1593
      %v1630 = vpack.c.b16 %v1596, %v1595
      %v1631 = vpack.c.b16 %v1598, %v1597
      %v1632 = vpack.c.b16 %v1600, %v1599
      %v1637 = vunpack.c.l.b16 %v1469
      %v1638 = vunpack.c.l.b16 %v1470
      %v1639 = vunpack.c.l.b16 %v1471
      %v1640 = vunpack.c.l.b16 %v1472
      %v1641 = vpack.c.b16 %v1638, %v1637
      %v1642 = vpack.c.b16 %v1640, %v1639
      %v1646 = vsel %vm1076, %v1601, 0
      %v1649 = vsel %vm1076, %v1602, 0
      %v1652 = vsel %vm1076, %v1603, 0
      %v1655 = vsel %vm1076, %v1604, 0
      %v1658 = vsel %vm1076, %v1605, 0
      %v1661 = vsel %vm1076, %v1606, 0
      %v1664 = vsel %vm1076, %v1607, 0
      %v1667 = vsel %vm1076, %v1608, 0
      %v1670 = vsel %vm1076, %v1609, 0
      %v1673 = vsel %vm1076, %v1610, 0
      %v1676 = vsel %vm1076, %v1611, 0
      %v1679 = vsel %vm1076, %v1612, 0
      %v1682 = vsel %vm1076, %v1613, 0
      %v1685 = vsel %vm1076, %v1614, 0
      %v1688 = vsel %vm1076, %v1615, 0
      %v1691 = vsel %vm1076, %v1616, 0
      %v1694 = vsel %vm1076, %v1617, 0
      %v1697 = vsel %vm1076, %v1618, 0
      %v1700 = vsel %vm1076, %v1619, 0
      %v1703 = vsel %vm1076, %v1620, 0
      %v1706 = vsel %vm1076, %v1621, 0
      %v1709 = vsel %vm1076, %v1622, 0
      %v1712 = vsel %vm1076, %v1623, 0
      %v1715 = vsel %vm1076, %v1624, 0
      %v1718 = vsel %vm1076, %v1625, 0
      %v1721 = vsel %vm1076, %v1626, 0
      %v1724 = vsel %vm1076, %v1627, 0
      %v1727 = vsel %vm1076, %v1628, 0
      %v1730 = vsel %vm1076, %v1629, 0
      %v1733 = vsel %vm1076, %v1630, 0
      %v1736 = vsel %vm1076, %v1631, 0
      %v1739 = vsel %vm1076, %v1632, 0
      %1741 = vmatpush.bf16.msra.mxu0 0
      %1742 = vmatpush.bf16.msra.mxu0 0
      %1743 = vmatpush.bf16.msra.mxu0 0
      %1744 = vmatpush.bf16.msra.mxu0 0
      %1745 = vmatpush.bf16.msra.mxu0 0
      %1746 = vmatpush.bf16.msra.mxu0 0
      %1747 = vmatpush.bf16.msra.mxu0 %v1642
      %1748 = vmatpush.bf16.msra.mxu0 %v1641
      %1749 = vmatmul.bf16.gmra.mxu0 %v1646
      %v1750 = vpop.f32.mrf.mxu0
      %v1751 = vadd.f32 0.0, %v1750
      %v1752 = vpop.f32.mrf.mxu0
      %v1753 = vadd.f32 0.0, %v1752
      %1754 = vmatmul.bf16.gmra.mxu0 %v1649
      %v1755 = vpop.f32.mrf.mxu0
      %v1756 = vadd.f32 0.0, %v1755
      %v1757 = vpop.f32.mrf.mxu0
      %v1758 = vadd.f32 0.0, %v1757
      %1759 = vmatmul.bf16.gmra.mxu0 %v1652
      %v1760 = vpop.f32.mrf.mxu0
      %v1761 = vadd.f32 0.0, %v1760
      %v1762 = vpop.f32.mrf.mxu0
      %v1763 = vadd.f32 0.0, %v1762
      %1764 = vmatmul.bf16.gmra.mxu0 %v1655
      %v1765 = vpop.f32.mrf.mxu0
      %v1766 = vadd.f32 0.0, %v1765
      %v1767 = vpop.f32.mrf.mxu0
      %v1768 = vadd.f32 0.0, %v1767
      %1769 = vmatmul.bf16.gmra.mxu0 %v1658
      %v1770 = vpop.f32.mrf.mxu0
      %v1771 = vadd.f32 0.0, %v1770
      %v1772 = vpop.f32.mrf.mxu0
      %v1773 = vadd.f32 0.0, %v1772
      %1774 = vmatmul.bf16.gmra.mxu0 %v1661
      %v1775 = vpop.f32.mrf.mxu0
      %v1776 = vadd.f32 0.0, %v1775
      %v1777 = vpop.f32.mrf.mxu0
      %v1778 = vadd.f32 0.0, %v1777
      %1779 = vmatmul.bf16.gmra.mxu0 %v1664
      %v1780 = vpop.f32.mrf.mxu0
      %v1781 = vadd.f32 0.0, %v1780
      %v1782 = vpop.f32.mrf.mxu0
      %v1783 = vadd.f32 0.0, %v1782
      %1784 = vmatmul.bf16.gmra.mxu0 %v1667
      %v1785 = vpop.f32.mrf.mxu0
      %v1786 = vadd.f32 0.0, %v1785
      %v1787 = vpop.f32.mrf.mxu0
      %v1788 = vadd.f32 0.0, %v1787
      %1789 = vmatmul.bf16.gmra.mxu0 %v1670
      %v1790 = vpop.f32.mrf.mxu0
      %v1791 = vadd.f32 0.0, %v1790
      %v1792 = vpop.f32.mrf.mxu0
      %v1793 = vadd.f32 0.0, %v1792
      %1794 = vmatmul.bf16.gmra.mxu0 %v1673
      %v1795 = vpop.f32.mrf.mxu0
      %v1796 = vadd.f32 0.0, %v1795
      %v1797 = vpop.f32.mrf.mxu0
      %v1798 = vadd.f32 0.0, %v1797
      %1799 = vmatmul.bf16.gmra.mxu0 %v1676
      %v1800 = vpop.f32.mrf.mxu0
      %v1801 = vadd.f32 0.0, %v1800
      %v1802 = vpop.f32.mrf.mxu0
      %v1803 = vadd.f32 0.0, %v1802
      %1804 = vmatmul.bf16.gmra.mxu0 %v1679
      %v1805 = vpop.f32.mrf.mxu0
      %v1806 = vadd.f32 0.0, %v1805
      %v1807 = vpop.f32.mrf.mxu0
      %v1808 = vadd.f32 0.0, %v1807
      %1809 = vmatmul.bf16.gmra.mxu0 %v1682
      %v1810 = vpop.f32.mrf.mxu0
      %v1811 = vadd.f32 0.0, %v1810
      %v1812 = vpop.f32.mrf.mxu0
      %v1813 = vadd.f32 0.0, %v1812
      %1814 = vmatmul.bf16.gmra.mxu0 %v1685
      %v1815 = vpop.f32.mrf.mxu0
      %v1816 = vadd.f32 0.0, %v1815
      %v1817 = vpop.f32.mrf.mxu0
      %v1818 = vadd.f32 0.0, %v1817
      %1819 = vmatmul.bf16.gmra.mxu0 %v1688
      %v1820 = vpop.f32.mrf.mxu0
      %v1821 = vadd.f32 0.0, %v1820
      %v1822 = vpop.f32.mrf.mxu0
      %v1823 = vadd.f32 0.0, %v1822
      %1824 = vmatmul.bf16.gmra.mxu0 %v1691
      %v1825 = vpop.f32.mrf.mxu0
      %v1826 = vadd.f32 0.0, %v1825
      %v1827 = vpop.f32.mrf.mxu0
      %v1828 = vadd.f32 0.0, %v1827
      %1829 = vmatmul.bf16.gmra.mxu0 %v1694
      %v1830 = vpop.f32.mrf.mxu0
      %v1831 = vadd.f32 0.0, %v1830
      %v1832 = vpop.f32.mrf.mxu0
      %v1833 = vadd.f32 0.0, %v1832
      %1834 = vmatmul.bf16.gmra.mxu0 %v1697
      %v1835 = vpop.f32.mrf.mxu0
      %v1836 = vadd.f32 0.0, %v1835
      %v1837 = vpop.f32.mrf.mxu0
      %v1838 = vadd.f32 0.0, %v1837
      %1839 = vmatmul.bf16.gmra.mxu0 %v1700
      %v1840 = vpop.f32.mrf.mxu0
      %v1841 = vadd.f32 0.0, %v1840
      %v1842 = vpop.f32.mrf.mxu0
      %v1843 = vadd.f32 0.0, %v1842
      %1844 = vmatmul.bf16.gmra.mxu0 %v1703
      %v1845 = vpop.f32.mrf.mxu0
      %v1846 = vadd.f32 0.0, %v1845
      %v1847 = vpop.f32.mrf.mxu0
      %v1848 = vadd.f32 0.0, %v1847
      %1849 = vmatmul.bf16.gmra.mxu0 %v1706
      %v1850 = vpop.f32.mrf.mxu0
      %v1851 = vadd.f32 0.0, %v1850
      %v1852 = vpop.f32.mrf.mxu0
      %v1853 = vadd.f32 0.0, %v1852
      %1854 = vmatmul.bf16.gmra.mxu0 %v1709
      %v1855 = vpop.f32.mrf.mxu0
      %v1856 = vadd.f32 0.0, %v1855
      %v1857 = vpop.f32.mrf.mxu0
      %v1858 = vadd.f32 0.0, %v1857
      %1859 = vmatmul.bf16.gmra.mxu0 %v1712
      %v1860 = vpop.f32.mrf.mxu0
      %v1861 = vadd.f32 0.0, %v1860
      %v1862 = vpop.f32.mrf.mxu0
      %v1863 = vadd.f32 0.0, %v1862
      %1864 = vmatmul.bf16.gmra.mxu0 %v1715
      %v1865 = vpop.f32.mrf.mxu0
      %v1866 = vadd.f32 0.0, %v1865
      %v1867 = vpop.f32.mrf.mxu0
      %v1868 = vadd.f32 0.0, %v1867
      %1869 = vmatmul.bf16.gmra.mxu0 %v1718
      %v1870 = vpop.f32.mrf.mxu0
      %v1871 = vadd.f32 0.0, %v1870
      %v1872 = vpop.f32.mrf.mxu0
      %v1873 = vadd.f32 0.0, %v1872
      %1874 = vmatmul.bf16.gmra.mxu0 %v1721
      %v1875 = vpop.f32.mrf.mxu0
      %v1876 = vadd.f32 0.0, %v1875
      %v1877 = vpop.f32.mrf.mxu0
      %v1878 = vadd.f32 0.0, %v1877
      %1879 = vmatmul.bf16.gmra.mxu0 %v1724
      %v1880 = vpop.f32.mrf.mxu0
      %v1881 = vadd.f32 0.0, %v1880
      %v1882 = vpop.f32.mrf.mxu0
      %v1883 = vadd.f32 0.0, %v1882
      %1884 = vmatmul.bf16.gmra.mxu0 %v1727
      %v1885 = vpop.f32.mrf.mxu0
      %v1886 = vadd.f32 0.0, %v1885
      %v1887 = vpop.f32.mrf.mxu0
      %v1888 = vadd.f32 0.0, %v1887
      %1889 = vmatmul.bf16.gmra.mxu0 %v1730
      %v1890 = vpop.f32.mrf.mxu0
      %v1891 = vadd.f32 0.0, %v1890
      %v1892 = vpop.f32.mrf.mxu0
      %v1893 = vadd.f32 0.0, %v1892
      %1894 = vmatmul.bf16.gmra.mxu0 %v1733
      %v1895 = vpop.f32.mrf.mxu0
      %v1896 = vadd.f32 0.0, %v1895
      %v1897 = vpop.f32.mrf.mxu0
      %v1898 = vadd.f32 0.0, %v1897
      %1899 = vmatmul.bf16.gmra.mxu0 %v1736
      %v1900 = vpop.f32.mrf.mxu0
      %v1901 = vadd.f32 0.0, %v1900
      %v1902 = vpop.f32.mrf.mxu0
      %v1903 = vadd.f32 0.0, %v1902
      %1904 = vmatmul.bf16.gmra.mxu0 %v1739
      %v1905 = vpop.f32.mrf.mxu0
      %v1906 = vadd.f32 0.0, %v1905
      %v1907 = vpop.f32.mrf.mxu0
      %v1908 = vadd.f32 0.0, %v1907
      %1909 = vdwg.mxu0
      %v1926 = vunpack.c.l.b16 %v1389
      %v1927 = vunpack.c.l.b16 %v1390
      %v1928 = vunpack.c.l.b16 %v1391
      %v1929 = vunpack.c.l.b16 %v1392
      %v1930 = vunpack.c.l.b16 %v1393
      %v1931 = vunpack.c.l.b16 %v1394
      %v1932 = vunpack.c.l.b16 %v1395
      %v1933 = vunpack.c.l.b16 %v1396
      %v1934 = vunpack.c.l.b16 %v1397
      %v1935 = vunpack.c.l.b16 %v1398
      %v1936 = vunpack.c.l.b16 %v1399
      %v1937 = vunpack.c.l.b16 %v1400
      %v1938 = vunpack.c.l.b16 %v1401
      %v1939 = vunpack.c.l.b16 %v1402
      %v1940 = vunpack.c.l.b16 %v1403
      %v1941 = vunpack.c.l.b16 %v1404
      %v1942 = vpack.c.b16 %v1927, %v1926
      %v1943 = vpack.c.b16 %v1929, %v1928
      %v1944 = vpack.c.b16 %v1931, %v1930
      %v1945 = vpack.c.b16 %v1933, %v1932
      %v1946 = vpack.c.b16 %v1935, %v1934
      %v1947 = vpack.c.b16 %v1937, %v1936
      %v1948 = vpack.c.b16 %v1939, %v1938
      %v1949 = vpack.c.b16 %v1941, %v1940
      %1958 = vmatpush.bf16.msra.mxu0 %v1949
      %1959 = vmatpush.bf16.msra.mxu0 %v1948
      %1960 = vmatpush.bf16.msra.mxu0 %v1947
      %1961 = vmatpush.bf16.msra.mxu0 %v1946
      %1962 = vmatpush.bf16.msra.mxu0 %v1945
      %1963 = vmatpush.bf16.msra.mxu0 %v1944
      %1964 = vmatpush.bf16.msra.mxu0 %v1943
      %1965 = vmatpush.bf16.msra.mxu0 %v1942
      %1966 = vmatmul.bf16.gmra.mxu0 %v1357
      %v1967 = vpop.f32.mrf.mxu0
      %v1968 = vadd.f32 %v1751, %v1967
      %v1969 = vpop.f32.mrf.mxu0
      %v1970 = vadd.f32 %v1753, %v1969
      %1971 = vmatmul.bf16.gmra.mxu0 %v1358
      %v1972 = vpop.f32.mrf.mxu0
      %v1973 = vadd.f32 %v1756, %v1972
      %v1974 = vpop.f32.mrf.mxu0
      %v1975 = vadd.f32 %v1758, %v1974
      %1976 = vmatmul.bf16.gmra.mxu0 %v1359
      %v1977 = vpop.f32.mrf.mxu0
      %v1978 = vadd.f32 %v1761, %v1977
      %v1979 = vpop.f32.mrf.mxu0
      %v1980 = vadd.f32 %v1763, %v1979
      %1981 = vmatmul.bf16.gmra.mxu0 %v1360
      %v1982 = vpop.f32.mrf.mxu0
      %v1983 = vadd.f32 %v1766, %v1982
      %v1984 = vpop.f32.mrf.mxu0
      %v1985 = vadd.f32 %v1768, %v1984
      %1986 = vmatmul.bf16.gmra.mxu0 %v1361
      %v1987 = vpop.f32.mrf.mxu0
      %v1988 = vadd.f32 %v1771, %v1987
      %v1989 = vpop.f32.mrf.mxu0
      %v1990 = vadd.f32 %v1773, %v1989
      %1991 = vmatmul.bf16.gmra.mxu0 %v1362
      %v1992 = vpop.f32.mrf.mxu0
      %v1993 = vadd.f32 %v1776, %v1992
      %v1994 = vpop.f32.mrf.mxu0
      %v1995 = vadd.f32 %v1778, %v1994
      %1996 = vmatmul.bf16.gmra.mxu0 %v1363
      %v1997 = vpop.f32.mrf.mxu0
      %v1998 = vadd.f32 %v1781, %v1997
      %v1999 = vpop.f32.mrf.mxu0
      %v2000 = vadd.f32 %v1783, %v1999
      %2001 = vmatmul.bf16.gmra.mxu0 %v1364
      %v2002 = vpop.f32.mrf.mxu0
      %v2003 = vadd.f32 %v1786, %v2002
      %v2004 = vpop.f32.mrf.mxu0
      %v2005 = vadd.f32 %v1788, %v2004
      %2006 = vmatmul.bf16.gmra.mxu0 %v1365
      %v2007 = vpop.f32.mrf.mxu0
      %v2008 = vadd.f32 %v1791, %v2007
      %v2009 = vpop.f32.mrf.mxu0
      %v2010 = vadd.f32 %v1793, %v2009
      %2011 = vmatmul.bf16.gmra.mxu0 %v1366
      %v2012 = vpop.f32.mrf.mxu0
      %v2013 = vadd.f32 %v1796, %v2012
      %v2014 = vpop.f32.mrf.mxu0
      %v2015 = vadd.f32 %v1798, %v2014
      %2016 = vmatmul.bf16.gmra.mxu0 %v1367
      %v2017 = vpop.f32.mrf.mxu0
      %v2018 = vadd.f32 %v1801, %v2017
      %v2019 = vpop.f32.mrf.mxu0
      %v2020 = vadd.f32 %v1803, %v2019
      %2021 = vmatmul.bf16.gmra.mxu0 %v1368
      %v2022 = vpop.f32.mrf.mxu0
      %v2023 = vadd.f32 %v1806, %v2022
      %v2024 = vpop.f32.mrf.mxu0
      %v2025 = vadd.f32 %v1808, %v2024
      %2026 = vmatmul.bf16.gmra.mxu0 %v1369
      %v2027 = vpop.f32.mrf.mxu0
      %v2028 = vadd.f32 %v1811, %v2027
      %v2029 = vpop.f32.mrf.mxu0
      %v2030 = vadd.f32 %v1813, %v2029
      %2031 = vmatmul.bf16.gmra.mxu0 %v1370
      %v2032 = vpop.f32.mrf.mxu0
      %v2033 = vadd.f32 %v1816, %v2032
      %v2034 = vpop.f32.mrf.mxu0
      %v2035 = vadd.f32 %v1818, %v2034
      %2036 = vmatmul.bf16.gmra.mxu0 %v1371
      %v2037 = vpop.f32.mrf.mxu0
      %v2038 = vadd.f32 %v1821, %v2037
      %v2039 = vpop.f32.mrf.mxu0
      %v2040 = vadd.f32 %v1823, %v2039
      %2041 = vmatmul.bf16.gmra.mxu0 %v1372
      %v2042 = vpop.f32.mrf.mxu0
      %v2043 = vadd.f32 %v1826, %v2042
      %v2044 = vpop.f32.mrf.mxu0
      %v2045 = vadd.f32 %v1828, %v2044
      %2046 = vmatmul.bf16.gmra.mxu0 %v1373
      %v2047 = vpop.f32.mrf.mxu0
      %v2048 = vadd.f32 %v1831, %v2047
      %v2049 = vpop.f32.mrf.mxu0
      %v2050 = vadd.f32 %v1833, %v2049
      %2051 = vmatmul.bf16.gmra.mxu0 %v1374
      %v2052 = vpop.f32.mrf.mxu0
      %v2053 = vadd.f32 %v1836, %v2052
      %v2054 = vpop.f32.mrf.mxu0
      %v2055 = vadd.f32 %v1838, %v2054
      %2056 = vmatmul.bf16.gmra.mxu0 %v1375
      %v2057 = vpop.f32.mrf.mxu0
      %v2058 = vadd.f32 %v1841, %v2057
      %v2059 = vpop.f32.mrf.mxu0
      %v2060 = vadd.f32 %v1843, %v2059
      %2061 = vmatmul.bf16.gmra.mxu0 %v1376
      %v2062 = vpop.f32.mrf.mxu0
      %v2063 = vadd.f32 %v1846, %v2062
      %v2064 = vpop.f32.mrf.mxu0
      %v2065 = vadd.f32 %v1848, %v2064
      %2066 = vmatmul.bf16.gmra.mxu0 %v1377
      %v2067 = vpop.f32.mrf.mxu0
      %v2068 = vadd.f32 %v1851, %v2067
      %v2069 = vpop.f32.mrf.mxu0
      %v2070 = vadd.f32 %v1853, %v2069
      %2071 = vmatmul.bf16.gmra.mxu0 %v1378
      %v2072 = vpop.f32.mrf.mxu0
      %v2073 = vadd.f32 %v1856, %v2072
      %v2074 = vpop.f32.mrf.mxu0
      %v2075 = vadd.f32 %v1858, %v2074
      %2076 = vmatmul.bf16.gmra.mxu0 %v1379
      %v2077 = vpop.f32.mrf.mxu0
      %v2078 = vadd.f32 %v1861, %v2077
      %v2079 = vpop.f32.mrf.mxu0
      %v2080 = vadd.f32 %v1863, %v2079
      %2081 = vmatmul.bf16.gmra.mxu0 %v1380
      %v2082 = vpop.f32.mrf.mxu0
      %v2083 = vadd.f32 %v1866, %v2082
      %v2084 = vpop.f32.mrf.mxu0
      %v2085 = vadd.f32 %v1868, %v2084
      %2086 = vmatmul.bf16.gmra.mxu0 %v1381
      %v2087 = vpop.f32.mrf.mxu0
      %v2088 = vadd.f32 %v1871, %v2087
      %v2089 = vpop.f32.mrf.mxu0
      %v2090 = vadd.f32 %v1873, %v2089
      %2091 = vmatmul.bf16.gmra.mxu0 %v1382
      %v2092 = vpop.f32.mrf.mxu0
      %v2093 = vadd.f32 %v1876, %v2092
      %v2094 = vpop.f32.mrf.mxu0
      %v2095 = vadd.f32 %v1878, %v2094
      %2096 = vmatmul.bf16.gmra.mxu0 %v1383
      %v2097 = vpop.f32.mrf.mxu0
      %v2098 = vadd.f32 %v1881, %v2097
      %v2099 = vpop.f32.mrf.mxu0
      %v2100 = vadd.f32 %v1883, %v2099
      %2101 = vmatmul.bf16.gmra.mxu0 %v1384
      %v2102 = vpop.f32.mrf.mxu0
      %v2103 = vadd.f32 %v1886, %v2102
      %v2104 = vpop.f32.mrf.mxu0
      %v2105 = vadd.f32 %v1888, %v2104
      %2106 = vmatmul.bf16.gmra.mxu0 %v1385
      %v2107 = vpop.f32.mrf.mxu0
      %v2108 = vadd.f32 %v1891, %v2107
      %v2109 = vpop.f32.mrf.mxu0
      %v2110 = vadd.f32 %v1893, %v2109
      %2111 = vmatmul.bf16.gmra.mxu0 %v1386
      %v2112 = vpop.f32.mrf.mxu0
      %v2113 = vadd.f32 %v1896, %v2112
      %v2114 = vpop.f32.mrf.mxu0
      %v2115 = vadd.f32 %v1898, %v2114
      %2116 = vmatmul.bf16.gmra.mxu0 %v1387
      %v2117 = vpop.f32.mrf.mxu0
      %v2118 = vadd.f32 %v1901, %v2117
      %v2119 = vpop.f32.mrf.mxu0
      %v2120 = vadd.f32 %v1903, %v2119
      %2121 = vmatmul.bf16.gmra.mxu0 %v1388
      %v2122 = vpop.f32.mrf.mxu0
      %v2123 = vadd.f32 %v1906, %v2122
      %v2124 = vpop.f32.mrf.mxu0
      %v2125 = vadd.f32 %v1908, %v2124
      %2126 = vdwg.mxu0
      %v2127 = vld [vmem:[%s13] sm:$0x1]
      %v2129 = vperm.slane %v2127, 0
      %v2131 = vadd.f32 %v1968, %v2129
      %v2132 = vadd.f32 %v1970, %v2129
      %v2133 = vadd.f32 %v1973, %v2129
      %v2134 = vadd.f32 %v1975, %v2129
      %v2135 = vadd.f32 %v1978, %v2129
      %v2136 = vadd.f32 %v1980, %v2129
      %v2137 = vadd.f32 %v1983, %v2129
      %v2138 = vadd.f32 %v1985, %v2129
      %v2139 = vadd.f32 %v1988, %v2129
      %v2140 = vadd.f32 %v1990, %v2129
      %v2141 = vadd.f32 %v1993, %v2129
      %v2142 = vadd.f32 %v1995, %v2129
      %v2143 = vadd.f32 %v1998, %v2129
      %v2144 = vadd.f32 %v2000, %v2129
      %v2145 = vadd.f32 %v2003, %v2129
      %v2146 = vadd.f32 %v2005, %v2129
      %v2147 = vadd.f32 %v2008, %v2129
      %v2148 = vadd.f32 %v2010, %v2129
      %v2149 = vadd.f32 %v2013, %v2129
      %v2150 = vadd.f32 %v2015, %v2129
      %v2151 = vadd.f32 %v2018, %v2129
      %v2152 = vadd.f32 %v2020, %v2129
      %v2153 = vadd.f32 %v2023, %v2129
      %v2154 = vadd.f32 %v2025, %v2129
      %v2155 = vadd.f32 %v2028, %v2129
      %v2156 = vadd.f32 %v2030, %v2129
      %v2157 = vadd.f32 %v2033, %v2129
      %v2158 = vadd.f32 %v2035, %v2129
      %v2159 = vadd.f32 %v2038, %v2129
      %v2160 = vadd.f32 %v2040, %v2129
      %v2161 = vadd.f32 %v2043, %v2129
      %v2162 = vadd.f32 %v2045, %v2129
      %v2163 = vadd.f32 %v2048, %v2129
      %v2164 = vadd.f32 %v2050, %v2129
      %v2165 = vadd.f32 %v2053, %v2129
      %v2166 = vadd.f32 %v2055, %v2129
      %v2167 = vadd.f32 %v2058, %v2129
      %v2168 = vadd.f32 %v2060, %v2129
      %v2169 = vadd.f32 %v2063, %v2129
      %v2170 = vadd.f32 %v2065, %v2129
      %v2171 = vadd.f32 %v2068, %v2129
      %v2172 = vadd.f32 %v2070, %v2129
      %v2173 = vadd.f32 %v2073, %v2129
      %v2174 = vadd.f32 %v2075, %v2129
      %v2175 = vadd.f32 %v2078, %v2129
      %v2176 = vadd.f32 %v2080, %v2129
      %v2177 = vadd.f32 %v2083, %v2129
      %v2178 = vadd.f32 %v2085, %v2129
      %v2179 = vadd.f32 %v2088, %v2129
      %v2180 = vadd.f32 %v2090, %v2129
      %v2181 = vadd.f32 %v2093, %v2129
      %v2182 = vadd.f32 %v2095, %v2129
      %v2183 = vadd.f32 %v2098, %v2129
      %v2184 = vadd.f32 %v2100, %v2129
      %v2185 = vadd.f32 %v2103, %v2129
      %v2186 = vadd.f32 %v2105, %v2129
      %v2187 = vadd.f32 %v2108, %v2129
      %v2188 = vadd.f32 %v2110, %v2129
      %v2189 = vadd.f32 %v2113, %v2129
      %v2190 = vadd.f32 %v2115, %v2129
      %v2191 = vadd.f32 %v2118, %v2129
      %v2192 = vadd.f32 %v2120, %v2129
      %v2193 = vadd.f32 %v2123, %v2129
      %v2194 = vadd.f32 %v2125, %v2129
      %v2195 = vld [vmem:[%s817] sm:$0x1]
      %v2196 = vld [vmem:[%s817 + $0x1] sm:$0x1]
      %v2197 = vld [vmem:[%s817 + $0x2] sm:$0x1]
      %v2198 = vld [vmem:[%s817 + $0x3] sm:$0x1]
      %v2203 = vperm.slane %v2195, 0
      %v2204 = vperm.slane %v2196, 0
      %v2205 = vperm.slane %v2197, 0
      %v2206 = vperm.slane %v2198, 0
      %v2211 = vmul.f32 %v1329, %v2203
      %v2212 = vmul.f32 %v1330, %v2203
      %v2213 = vmul.f32 %v1331, %v2203
      %v2214 = vmul.f32 %v1332, %v2203
      %v2215 = vmul.f32 %v1333, %v2203
      %v2216 = vmul.f32 %v1334, %v2203
      %v2217 = vmul.f32 %v1335, %v2203
      %v2218 = vmul.f32 %v1336, %v2204
      %v2219 = vmul.f32 %v1337, %v2204
      %v2220 = vmul.f32 %v1338, %v2204
      %v2221 = vmul.f32 %v1339, %v2204
      %v2222 = vmul.f32 %v1340, %v2204
      %v2223 = vmul.f32 %v1341, %v2204
      %v2224 = vmul.f32 %v1342, %v2204
      %v2225 = vmul.f32 %v1343, %v2205
      %v2226 = vmul.f32 %v1344, %v2205
      %v2227 = vmul.f32 %v1345, %v2205
      %v2228 = vmul.f32 %v1346, %v2205
      %v2229 = vmul.f32 %v1347, %v2205
      %v2230 = vmul.f32 %v1348, %v2205
      %v2231 = vmul.f32 %v1349, %v2205
      %v2232 = vmul.f32 %v1350, %v2206
      %v2233 = vmul.f32 %v1351, %v2206
      %v2234 = vmul.f32 %v1352, %v2206
      %v2235 = vmul.f32 %v1353, %v2206
      %v2236 = vmul.f32 %v1354, %v2206
      %v2237 = vmul.f32 %v1355, %v2206
      %v2238 = vmul.f32 %v1356, %v2206
      %v2239 = vld [vmem:[%s812] sm:$0x1]
      %v2240 = vld [vmem:[%s812 + $0x1] sm:$0x1]
      %v2241 = vld [vmem:[%s812 + $0x2] sm:$0x1]
      %v2242 = vld [vmem:[%s812 + $0x3] sm:$0x1]
      %v2247 = vperm.slane %v2239, 0
      %v2248 = vperm.slane %v2240, 0
      %v2249 = vperm.slane %v2241, 0
      %v2250 = vperm.slane %v2242, 0
      %v2255 = vmul.f32 %v2131, %v2247
      %v2256 = vmul.f32 %v2132, %v2247
      %v2257 = vmul.f32 %v2133, %v2247
      %v2258 = vmul.f32 %v2134, %v2247
      %v2259 = vmul.f32 %v2135, %v2247
      %v2260 = vmul.f32 %v2136, %v2247
      %v2261 = vmul.f32 %v2137, %v2247
      %v2262 = vmul.f32 %v2138, %v2247
      %v2263 = vmul.f32 %v2139, %v2247
      %v2264 = vmul.f32 %v2140, %v2247
      %v2265 = vmul.f32 %v2141, %v2247
      %v2266 = vmul.f32 %v2142, %v2247
      %v2267 = vmul.f32 %v2143, %v2247
      %v2268 = vmul.f32 %v2144, %v2247
      %v2269 = vmul.f32 %v2145, %v2247
      %v2270 = vmul.f32 %v2146, %v2247
      %v2271 = vmul.f32 %v2147, %v2248
      %v2272 = vmul.f32 %v2148, %v2248
      %v2273 = vmul.f32 %v2149, %v2248
      %v2274 = vmul.f32 %v2150, %v2248
      %v2275 = vmul.f32 %v2151, %v2248
      %v2276 = vmul.f32 %v2152, %v2248
      %v2277 = vmul.f32 %v2153, %v2248
      %v2278 = vmul.f32 %v2154, %v2248
      %v2279 = vmul.f32 %v2155, %v2248
      %v2280 = vmul.f32 %v2156, %v2248
      %v2281 = vmul.f32 %v2157, %v2248
      %v2282 = vmul.f32 %v2158, %v2248
      %v2283 = vmul.f32 %v2159, %v2248
      %v2284 = vmul.f32 %v2160, %v2248
      %v2285 = vmul.f32 %v2161, %v2248
      %v2286 = vmul.f32 %v2162, %v2248
      %v2287 = vmul.f32 %v2163, %v2249
      %v2288 = vmul.f32 %v2164, %v2249
      %v2289 = vmul.f32 %v2165, %v2249
      %v2290 = vmul.f32 %v2166, %v2249
      %v2291 = vmul.f32 %v2167, %v2249
      %v2292 = vmul.f32 %v2168, %v2249
      %v2293 = vmul.f32 %v2169, %v2249
      %v2294 = vmul.f32 %v2170, %v2249
      %v2295 = vmul.f32 %v2171, %v2249
      %v2296 = vmul.f32 %v2172, %v2249
      %v2297 = vmul.f32 %v2173, %v2249
      %v2298 = vmul.f32 %v2174, %v2249
      %v2299 = vmul.f32 %v2175, %v2249
      %v2300 = vmul.f32 %v2176, %v2249
      %v2301 = vmul.f32 %v2177, %v2249
      %v2302 = vmul.f32 %v2178, %v2249
      %v2303 = vmul.f32 %v2179, %v2250
      %v2304 = vmul.f32 %v2180, %v2250
      %v2305 = vmul.f32 %v2181, %v2250
      %v2306 = vmul.f32 %v2182, %v2250
      %v2307 = vmul.f32 %v2183, %v2250
      %v2308 = vmul.f32 %v2184, %v2250
      %v2309 = vmul.f32 %v2185, %v2250
      %v2310 = vmul.f32 %v2186, %v2250
      %v2311 = vmul.f32 %v2187, %v2250
      %v2312 = vmul.f32 %v2188, %v2250
      %v2313 = vmul.f32 %v2189, %v2250
      %v2314 = vmul.f32 %v2190, %v2250
      %v2315 = vmul.f32 %v2191, %v2250
      %v2316 = vmul.f32 %v2192, %v2250
      %v2317 = vmul.f32 %v2193, %v2250
      %v2318 = vmul.f32 %v2194, %v2250
      %v2319 = vpack.c.bf16 %v2212, %v2211
      %v2320 = vpack.c.bf16 %v2214, %v2213
      %v2321 = vpack.c.bf16 %v2216, %v2215
      %v2322 = vpack.c.bf16 %v2218, %v2217
      %v2323 = vpack.c.bf16 %v2220, %v2219
      %v2324 = vpack.c.bf16 %v2222, %v2221
      %v2325 = vpack.c.bf16 %v2224, %v2223
      %v2326 = vpack.c.bf16 %v2226, %v2225
      %v2327 = vpack.c.bf16 %v2228, %v2227
      %v2328 = vpack.c.bf16 %v2230, %v2229
      %v2329 = vpack.c.bf16 %v2232, %v2231
      %v2330 = vpack.c.bf16 %v2234, %v2233
      %v2331 = vpack.c.bf16 %v2236, %v2235
      %v2332 = vpack.c.bf16 %v2238, %v2237
      %v2333 = vld [vmem:[%s16] sm:$0xf]
      %v2334 = vld [vmem:[%s16 + $0x4] sm:$0xf]
      %v2335 = vld [vmem:[%s16 + $0x8] sm:$0xf]
      %v2336 = vld [vmem:[%s16 + $0xc] sm:$0xf]
      %v2337 = vld [vmem:[%s16 + $0x10] sm:$0xf]
      %v2338 = vld [vmem:[%s16 + $0x14] sm:$0xf]
      %v2339 = vld [vmem:[%s16 + $0x18] sm:$0xf]
      %v2340 = vld [vmem:[%s16 + $0x1c] sm:$0xf]
      %v2341 = vld [vmem:[%s16 + $0x20] sm:$0xf]
      %v2342 = vld [vmem:[%s16 + $0x24] sm:$0xf]
      %v2343 = vld [vmem:[%s16 + $0x28] sm:$0xf]
      %v2344 = vld [vmem:[%s16 + $0x2c] sm:$0xf]
      %v2345 = vld [vmem:[%s17] sm:$0x1]
      %v2347 = vperm.slane %v2345, 0
      %v2361 = vunpack.c.l.b16 %v2333
      %v2362 = vunpack.c.l.b16 %v2334
      %v2363 = vunpack.c.l.b16 %v2335
      %v2364 = vunpack.c.l.b16 %v2336
      %v2365 = vunpack.c.l.b16 %v2337
      %v2366 = vunpack.c.l.b16 %v2338
      %v2367 = vunpack.c.l.b16 %v2339
      %v2368 = vunpack.c.l.b16 %v2340
      %v2369 = vunpack.c.l.b16 %v2341
      %v2370 = vunpack.c.l.b16 %v2342
      %v2371 = vunpack.c.l.b16 %v2343
      %v2372 = vunpack.c.l.b16 %v2344
      %v2373 = vpack.c.b16 %v2362, %v2361
      %v2374 = vpack.c.b16 %v2364, %v2363
      %v2375 = vpack.c.b16 %v2366, %v2365
      %v2376 = vpack.c.b16 %v2368, %v2367
      %v2377 = vpack.c.b16 %v2370, %v2369
      %v2378 = vpack.c.b16 %v2372, %v2371
      %vm2385 = vcmask 785408
      %v2387 = vsel %vm2385, %v2319, 0
      %v2390 = vsel %vm2385, %v2320, 0
      %v2393 = vsel %vm2385, %v2321, 0
      %v2396 = vsel %vm2385, %v2322, 0
      %v2399 = vsel %vm2385, %v2323, 0
      %v2402 = vsel %vm2385, %v2324, 0
      %v2405 = vsel %vm2385, %v2325, 0
      %v2408 = vsel %vm2385, %v2326, 0
      %v2411 = vsel %vm2385, %v2327, 0
      %v2414 = vsel %vm2385, %v2328, 0
      %v2417 = vsel %vm2385, %v2329, 0
      %v2420 = vsel %vm2385, %v2330, 0
      %v2423 = vsel %vm2385, %v2331, 0
      %v2426 = vsel %vm2385, %v2332, 0
      %2428 = vmatpush.bf16.msra.mxu0 0
      %2429 = vmatpush.bf16.msra.mxu0 0
      %2430 = vmatpush.bf16.msra.mxu0 %v2378
      %2431 = vmatpush.bf16.msra.mxu0 %v2377
      %2432 = vmatpush.bf16.msra.mxu0 %v2376
      %2433 = vmatpush.bf16.msra.mxu0 %v2375
      %2434 = vmatpush.bf16.msra.mxu0 %v2374
      %2435 = vmatpush.bf16.msra.mxu0 %v2373
      %2436 = vmatmul.bf16.gmra.mxu0 %v2387
      %v2437 = vpop.f32.mrf.mxu0
      %v2438 = vadd.f32 %v2347, %v2437
      %v2439 = vpop.f32.mrf.mxu0
      %v2440 = vadd.f32 %v2347, %v2439
      %2441 = vmatmul.bf16.gmra.mxu0 %v2390
      %v2442 = vpop.f32.mrf.mxu0
      %v2443 = vadd.f32 %v2347, %v2442
      %v2444 = vpop.f32.mrf.mxu0
      %v2445 = vadd.f32 %v2347, %v2444
      %2446 = vmatmul.bf16.gmra.mxu0 %v2393
      %v2447 = vpop.f32.mrf.mxu0
      %v2448 = vadd.f32 %v2347, %v2447
      %v2449 = vpop.f32.mrf.mxu0
      %v2450 = vadd.f32 %v2347, %v2449
      %2451 = vmatmul.bf16.gmra.mxu0 %v2396
      %v2452 = vpop.f32.mrf.mxu0
      %v2453 = vadd.f32 %v2347, %v2452
      %v2454 = vpop.f32.mrf.mxu0
      %v2455 = vadd.f32 %v2347, %v2454
      %2456 = vmatmul.bf16.gmra.mxu0 %v2399
      %v2457 = vpop.f32.mrf.mxu0
      %v2458 = vadd.f32 %v2347, %v2457
      %v2459 = vpop.f32.mrf.mxu0
      %v2460 = vadd.f32 %v2347, %v2459
      %2461 = vmatmul.bf16.gmra.mxu0 %v2402
      %v2462 = vpop.f32.mrf.mxu0
      %v2463 = vadd.f32 %v2347, %v2462
      %v2464 = vpop.f32.mrf.mxu0
      %v2465 = vadd.f32 %v2347, %v2464
      %2466 = vmatmul.bf16.gmra.mxu0 %v2405
      %v2467 = vpop.f32.mrf.mxu0
      %v2468 = vadd.f32 %v2347, %v2467
      %v2469 = vpop.f32.mrf.mxu0
      %v2470 = vadd.f32 %v2347, %v2469
      %2471 = vmatmul.bf16.gmra.mxu0 %v2408
      %v2472 = vpop.f32.mrf.mxu0
      %v2473 = vadd.f32 %v2347, %v2472
      %v2474 = vpop.f32.mrf.mxu0
      %v2475 = vadd.f32 %v2347, %v2474
      %2476 = vmatmul.bf16.gmra.mxu0 %v2411
      %v2477 = vpop.f32.mrf.mxu0
      %v2478 = vadd.f32 %v2347, %v2477
      %v2479 = vpop.f32.mrf.mxu0
      %v2480 = vadd.f32 %v2347, %v2479
      %2481 = vmatmul.bf16.gmra.mxu0 %v2414
      %v2482 = vpop.f32.mrf.mxu0
      %v2483 = vadd.f32 %v2347, %v2482
      %v2484 = vpop.f32.mrf.mxu0
      %v2485 = vadd.f32 %v2347, %v2484
      %2486 = vmatmul.bf16.gmra.mxu0 %v2417
      %v2487 = vpop.f32.mrf.mxu0
      %v2488 = vadd.f32 %v2347, %v2487
      %v2489 = vpop.f32.mrf.mxu0
      %v2490 = vadd.f32 %v2347, %v2489
      %2491 = vmatmul.bf16.gmra.mxu0 %v2420
      %v2492 = vpop.f32.mrf.mxu0
      %v2493 = vadd.f32 %v2347, %v2492
      %v2494 = vpop.f32.mrf.mxu0
      %v2495 = vadd.f32 %v2347, %v2494
      %2496 = vmatmul.bf16.gmra.mxu0 %v2423
      %v2497 = vpop.f32.mrf.mxu0
      %v2498 = vadd.f32 %v2347, %v2497
      %v2499 = vpop.f32.mrf.mxu0
      %v2500 = vadd.f32 %v2347, %v2499
      %2501 = vmatmul.bf16.gmra.mxu0 %v2426
      %v2502 = vpop.f32.mrf.mxu0
      %v2503 = vadd.f32 %v2347, %v2502
      %v2504 = vpop.f32.mrf.mxu0
      %v2505 = vadd.f32 %v2347, %v2504
      %2506 = vdwg.mxu0
      %v2507 = vmax.f32 %v2438, 0.0
      %v2508 = vmax.f32 %v2440, 0.0
      %v2509 = vmax.f32 %v2443, 0.0
      %v2510 = vmax.f32 %v2445, 0.0
      %v2511 = vmax.f32 %v2448, 0.0
      %v2512 = vmax.f32 %v2450, 0.0
      %v2513 = vmax.f32 %v2453, 0.0
      %v2514 = vmax.f32 %v2455, 0.0
      %v2515 = vmax.f32 %v2458, 0.0
      %v2516 = vmax.f32 %v2460, 0.0
      %v2517 = vmax.f32 %v2463, 0.0
      %v2518 = vmax.f32 %v2465, 0.0
      %v2519 = vmax.f32 %v2468, 0.0
      %v2520 = vmax.f32 %v2470, 0.0
      %v2521 = vmax.f32 %v2473, 0.0
      %v2522 = vmax.f32 %v2475, 0.0
      %v2523 = vmax.f32 %v2478, 0.0
      %v2524 = vmax.f32 %v2480, 0.0
      %v2525 = vmax.f32 %v2483, 0.0
      %v2526 = vmax.f32 %v2485, 0.0
      %v2527 = vmax.f32 %v2488, 0.0
      %v2528 = vmax.f32 %v2490, 0.0
      %v2529 = vmax.f32 %v2493, 0.0
      %v2530 = vmax.f32 %v2495, 0.0
      %v2531 = vmax.f32 %v2498, 0.0
      %v2532 = vmax.f32 %v2500, 0.0
      %v2533 = vmax.f32 %v2503, 0.0
      %v2534 = vmax.f32 %v2505, 0.0
      %v2535 = vpack.c.bf16 %v2256, %v2255
      %v2536 = vpack.c.bf16 %v2258, %v2257
      %v2537 = vpack.c.bf16 %v2260, %v2259
      %v2538 = vpack.c.bf16 %v2262, %v2261
      %v2539 = vpack.c.bf16 %v2264, %v2263
      %v2540 = vpack.c.bf16 %v2266, %v2265
      %v2541 = vpack.c.bf16 %v2268, %v2267
      %v2542 = vpack.c.bf16 %v2270, %v2269
      %v2543 = vpack.c.bf16 %v2272, %v2271
      %v2544 = vpack.c.bf16 %v2274, %v2273
      %v2545 = vpack.c.bf16 %v2276, %v2275
      %v2546 = vpack.c.bf16 %v2278, %v2277
      %v2547 = vpack.c.bf16 %v2280, %v2279
      %v2548 = vpack.c.bf16 %v2282, %v2281
      %v2549 = vpack.c.bf16 %v2284, %v2283
      %v2550 = vpack.c.bf16 %v2286, %v2285
      %v2551 = vpack.c.bf16 %v2288, %v2287
      %v2552 = vpack.c.bf16 %v2290, %v2289
      %v2553 = vpack.c.bf16 %v2292, %v2291
      %v2554 = vpack.c.bf16 %v2294, %v2293
      %v2555 = vpack.c.bf16 %v2296, %v2295
      %v2556 = vpack.c.bf16 %v2298, %v2297
      %v2557 = vpack.c.bf16 %v2300, %v2299
      %v2558 = vpack.c.bf16 %v2302, %v2301
      %v2559 = vpack.c.bf16 %v2304, %v2303
      %v2560 = vpack.c.bf16 %v2306, %v2305
      %v2561 = vpack.c.bf16 %v2308, %v2307
      %v2562 = vpack.c.bf16 %v2310, %v2309
      %v2563 = vpack.c.bf16 %v2312, %v2311
      %v2564 = vpack.c.bf16 %v2314, %v2313
      %v2565 = vpack.c.bf16 %v2316, %v2315
      %v2566 = vpack.c.bf16 %v2318, %v2317
      %v2567 = vld [vmem:[%s14] sm:$0xf]
      %v2568 = vld [vmem:[%s14 + $0x4] sm:$0xf]
      %v2569 = vld [vmem:[%s14 + $0x8] sm:$0xf]
      %v2570 = vld [vmem:[%s14 + $0xc] sm:$0xf]
      %v2571 = vld [vmem:[%s14 + $0x10] sm:$0xf]
      %v2572 = vld [vmem:[%s14 + $0x14] sm:$0xf]
      %v2573 = vld [vmem:[%s14 + $0x18] sm:$0xf]
      %v2574 = vld [vmem:[%s14 + $0x1c] sm:$0xf]
      %v2575 = vld [vmem:[%s14 + $0x20] sm:$0xf]
      %v2576 = vld [vmem:[%s14 + $0x24] sm:$0xf]
      %v2577 = vld [vmem:[%s14 + $0x28] sm:$0xf]
      %v2578 = vld [vmem:[%s14 + $0x2c] sm:$0xf]
      %v2579 = vld [vmem:[%s15] sm:$0x1]
      %v2581 = vperm.slane %v2579, 0
      %v2595 = vunpack.c.l.b16 %v2567
      %v2596 = vunpack.c.l.b16 %v2568
      %v2597 = vunpack.c.l.b16 %v2569
      %v2598 = vunpack.c.l.b16 %v2570
      %v2599 = vunpack.c.l.b16 %v2571
      %v2600 = vunpack.c.l.b16 %v2572
      %v2601 = vunpack.c.l.b16 %v2573
      %v2602 = vunpack.c.l.b16 %v2574
      %v2603 = vunpack.c.l.b16 %v2575
      %v2604 = vunpack.c.l.b16 %v2576
      %v2605 = vunpack.c.l.b16 %v2577
      %v2606 = vunpack.c.l.b16 %v2578
      %v2607 = vpack.c.b16 %v2596, %v2595
      %v2608 = vpack.c.b16 %v2598, %v2597
      %v2609 = vpack.c.b16 %v2600, %v2599
      %v2610 = vpack.c.b16 %v2602, %v2601
      %v2611 = vpack.c.b16 %v2604, %v2603
      %v2612 = vpack.c.b16 %v2606, %v2605
      %v2620 = vsel %vm2385, %v2535, 0
      %v2623 = vsel %vm2385, %v2536, 0
      %v2626 = vsel %vm2385, %v2537, 0
      %v2629 = vsel %vm2385, %v2538, 0
      %v2632 = vsel %vm2385, %v2539, 0
      %v2635 = vsel %vm2385, %v2540, 0
      %v2638 = vsel %vm2385, %v2541, 0
      %v2641 = vsel %vm2385, %v2542, 0
      %v2644 = vsel %vm2385, %v2543, 0
      %v2647 = vsel %vm2385, %v2544, 0
      %v2650 = vsel %vm2385, %v2545, 0
      %v2653 = vsel %vm2385, %v2546, 0
      %v2656 = vsel %vm2385, %v2547, 0
      %v2659 = vsel %vm2385, %v2548, 0
      %v2662 = vsel %vm2385, %v2549, 0
      %v2665 = vsel %vm2385, %v2550, 0
      %v2668 = vsel %vm2385, %v2551, 0
      %v2671 = vsel %vm2385, %v2552, 0
      %v2674 = vsel %vm2385, %v2553, 0
      %v2677 = vsel %vm2385, %v2554, 0
      %v2680 = vsel %vm2385, %v2555, 0
      %v2683 = vsel %vm2385, %v2556, 0
      %v2686 = vsel %vm2385, %v2557, 0
      %v2689 = vsel %vm2385, %v2558, 0
      %v2692 = vsel %vm2385, %v2559, 0
      %v2695 = vsel %vm2385, %v2560, 0
      %v2698 = vsel %vm2385, %v2561, 0
      %v2701 = vsel %vm2385, %v2562, 0
      %v2704 = vsel %vm2385, %v2563, 0
      %v2707 = vsel %vm2385, %v2564, 0
      %v2710 = vsel %vm2385, %v2565, 0
      %v2713 = vsel %vm2385, %v2566, 0
      %2715 = vmatpush.bf16.msra.mxu0 0
      %2716 = vmatpush.bf16.msra.mxu0 0
      %2717 = vmatpush.bf16.msra.mxu0 %v2612
      %2718 = vmatpush.bf16.msra.mxu0 %v2611
      %2719 = vmatpush.bf16.msra.mxu0 %v2610
      %2720 = vmatpush.bf16.msra.mxu0 %v2609
      %2721 = vmatpush.bf16.msra.mxu0 %v2608
      %2722 = vmatpush.bf16.msra.mxu0 %v2607
      %2723 = vmatmul.bf16.gmra.mxu0 %v2620
      %v2724 = vpop.f32.mrf.mxu0
      %v2725 = vadd.f32 %v2581, %v2724
      %v2726 = vpop.f32.mrf.mxu0
      %v2727 = vadd.f32 %v2581, %v2726
      %2728 = vmatmul.bf16.gmra.mxu0 %v2623
      %v2729 = vpop.f32.mrf.mxu0
      %v2730 = vadd.f32 %v2581, %v2729
      %v2731 = vpop.f32.mrf.mxu0
      %v2732 = vadd.f32 %v2581, %v2731
      %2733 = vmatmul.bf16.gmra.mxu0 %v2626
      %v2734 = vpop.f32.mrf.mxu0
      %v2735 = vadd.f32 %v2581, %v2734
      %v2736 = vpop.f32.mrf.mxu0
      %v2737 = vadd.f32 %v2581, %v2736
      %2738 = vmatmul.bf16.gmra.mxu0 %v2629
      %v2739 = vpop.f32.mrf.mxu0
      %v2740 = vadd.f32 %v2581, %v2739
      %v2741 = vpop.f32.mrf.mxu0
      %v2742 = vadd.f32 %v2581, %v2741
      %2743 = vmatmul.bf16.gmra.mxu0 %v2632
      %v2744 = vpop.f32.mrf.mxu0
      %v2745 = vadd.f32 %v2581, %v2744
      %v2746 = vpop.f32.mrf.mxu0
      %v2747 = vadd.f32 %v2581, %v2746
      %2748 = vmatmul.bf16.gmra.mxu0 %v2635
      %v2749 = vpop.f32.mrf.mxu0
      %v2750 = vadd.f32 %v2581, %v2749
      %v2751 = vpop.f32.mrf.mxu0
      %v2752 = vadd.f32 %v2581, %v2751
      %2753 = vmatmul.bf16.gmra.mxu0 %v2638
      %v2754 = vpop.f32.mrf.mxu0
      %v2755 = vadd.f32 %v2581, %v2754
      %v2756 = vpop.f32.mrf.mxu0
      %v2757 = vadd.f32 %v2581, %v2756
      %2758 = vmatmul.bf16.gmra.mxu0 %v2641
      %v2759 = vpop.f32.mrf.mxu0
      %v2760 = vadd.f32 %v2581, %v2759
      %v2761 = vpop.f32.mrf.mxu0
      %v2762 = vadd.f32 %v2581, %v2761
      %2763 = vmatmul.bf16.gmra.mxu0 %v2644
      %v2764 = vpop.f32.mrf.mxu0
      %v2765 = vadd.f32 %v2581, %v2764
      %v2766 = vpop.f32.mrf.mxu0
      %v2767 = vadd.f32 %v2581, %v2766
      %2768 = vmatmul.bf16.gmra.mxu0 %v2647
      %v2769 = vpop.f32.mrf.mxu0
      %v2770 = vadd.f32 %v2581, %v2769
      %v2771 = vpop.f32.mrf.mxu0
      %v2772 = vadd.f32 %v2581, %v2771
      %2773 = vmatmul.bf16.gmra.mxu0 %v2650
      %v2774 = vpop.f32.mrf.mxu0
      %v2775 = vadd.f32 %v2581, %v2774
      %v2776 = vpop.f32.mrf.mxu0
      %v2777 = vadd.f32 %v2581, %v2776
      %2778 = vmatmul.bf16.gmra.mxu0 %v2653
      %v2779 = vpop.f32.mrf.mxu0
      %v2780 = vadd.f32 %v2581, %v2779
      %v2781 = vpop.f32.mrf.mxu0
      %v2782 = vadd.f32 %v2581, %v2781
      %2783 = vmatmul.bf16.gmra.mxu0 %v2656
      %v2784 = vpop.f32.mrf.mxu0
      %v2785 = vadd.f32 %v2581, %v2784
      %v2786 = vpop.f32.mrf.mxu0
      %v2787 = vadd.f32 %v2581, %v2786
      %2788 = vmatmul.bf16.gmra.mxu0 %v2659
      %v2789 = vpop.f32.mrf.mxu0
      %v2790 = vadd.f32 %v2581, %v2789
      %v2791 = vpop.f32.mrf.mxu0
      %v2792 = vadd.f32 %v2581, %v2791
      %2793 = vmatmul.bf16.gmra.mxu0 %v2662
      %v2794 = vpop.f32.mrf.mxu0
      %v2795 = vadd.f32 %v2581, %v2794
      %v2796 = vpop.f32.mrf.mxu0
      %v2797 = vadd.f32 %v2581, %v2796
      %2798 = vmatmul.bf16.gmra.mxu0 %v2665
      %v2799 = vpop.f32.mrf.mxu0
      %v2800 = vadd.f32 %v2581, %v2799
      %v2801 = vpop.f32.mrf.mxu0
      %v2802 = vadd.f32 %v2581, %v2801
      %2803 = vmatmul.bf16.gmra.mxu0 %v2668
      %v2804 = vpop.f32.mrf.mxu0
      %v2805 = vadd.f32 %v2581, %v2804
      %v2806 = vpop.f32.mrf.mxu0
      %v2807 = vadd.f32 %v2581, %v2806
      %2808 = vmatmul.bf16.gmra.mxu0 %v2671
      %v2809 = vpop.f32.mrf.mxu0
      %v2810 = vadd.f32 %v2581, %v2809
      %v2811 = vpop.f32.mrf.mxu0
      %v2812 = vadd.f32 %v2581, %v2811
      %2813 = vmatmul.bf16.gmra.mxu0 %v2674
      %v2814 = vpop.f32.mrf.mxu0
      %v2815 = vadd.f32 %v2581, %v2814
      %v2816 = vpop.f32.mrf.mxu0
      %v2817 = vadd.f32 %v2581, %v2816
      %2818 = vmatmul.bf16.gmra.mxu0 %v2677
      %v2819 = vpop.f32.mrf.mxu0
      %v2820 = vadd.f32 %v2581, %v2819
      %v2821 = vpop.f32.mrf.mxu0
      %v2822 = vadd.f32 %v2581, %v2821
      %2823 = vmatmul.bf16.gmra.mxu0 %v2680
      %v2824 = vpop.f32.mrf.mxu0
      %v2825 = vadd.f32 %v2581, %v2824
      %v2826 = vpop.f32.mrf.mxu0
      %v2827 = vadd.f32 %v2581, %v2826
      %2828 = vmatmul.bf16.gmra.mxu0 %v2683
      %v2829 = vpop.f32.mrf.mxu0
      %v2830 = vadd.f32 %v2581, %v2829
      %v2831 = vpop.f32.mrf.mxu0
      %v2832 = vadd.f32 %v2581, %v2831
      %2833 = vmatmul.bf16.gmra.mxu0 %v2686
      %v2834 = vpop.f32.mrf.mxu0
      %v2835 = vadd.f32 %v2581, %v2834
      %v2836 = vpop.f32.mrf.mxu0
      %v2837 = vadd.f32 %v2581, %v2836
      %2838 = vmatmul.bf16.gmra.mxu0 %v2689
      %v2839 = vpop.f32.mrf.mxu0
      %v2840 = vadd.f32 %v2581, %v2839
      %v2841 = vpop.f32.mrf.mxu0
      %v2842 = vadd.f32 %v2581, %v2841
      %2843 = vmatmul.bf16.gmra.mxu0 %v2692
      %v2844 = vpop.f32.mrf.mxu0
      %v2845 = vadd.f32 %v2581, %v2844
      %v2846 = vpop.f32.mrf.mxu0
      %v2847 = vadd.f32 %v2581, %v2846
      %2848 = vmatmul.bf16.gmra.mxu0 %v2695
      %v2849 = vpop.f32.mrf.mxu0
      %v2850 = vadd.f32 %v2581, %v2849
      %v2851 = vpop.f32.mrf.mxu0
      %v2852 = vadd.f32 %v2581, %v2851
      %2853 = vmatmul.bf16.gmra.mxu0 %v2698
      %v2854 = vpop.f32.mrf.mxu0
      %v2855 = vadd.f32 %v2581, %v2854
      %v2856 = vpop.f32.mrf.mxu0
      %v2857 = vadd.f32 %v2581, %v2856
      %2858 = vmatmul.bf16.gmra.mxu0 %v2701
      %v2859 = vpop.f32.mrf.mxu0
      %v2860 = vadd.f32 %v2581, %v2859
      %v2861 = vpop.f32.mrf.mxu0
      %v2862 = vadd.f32 %v2581, %v2861
      %2863 = vmatmul.bf16.gmra.mxu0 %v2704
      %v2864 = vpop.f32.mrf.mxu0
      %v2865 = vadd.f32 %v2581, %v2864
      %v2866 = vpop.f32.mrf.mxu0
      %v2867 = vadd.f32 %v2581, %v2866
      %2868 = vmatmul.bf16.gmra.mxu0 %v2707
      %v2869 = vpop.f32.mrf.mxu0
      %v2870 = vadd.f32 %v2581, %v2869
      %v2871 = vpop.f32.mrf.mxu0
      %v2872 = vadd.f32 %v2581, %v2871
      %2873 = vmatmul.bf16.gmra.mxu0 %v2710
      %v2874 = vpop.f32.mrf.mxu0
      %v2875 = vadd.f32 %v2581, %v2874
      %v2876 = vpop.f32.mrf.mxu0
      %v2877 = vadd.f32 %v2581, %v2876
      %2878 = vmatmul.bf16.gmra.mxu0 %v2713
      %v2879 = vpop.f32.mrf.mxu0
      %v2880 = vadd.f32 %v2581, %v2879
      %v2881 = vpop.f32.mrf.mxu0
      %v2882 = vadd.f32 %v2581, %v2881
      %2883 = vdwg.mxu0
      %v2884 = vmax.f32 %v2725, 0.0
      %v2885 = vmax.f32 %v2727, 0.0
      %v2886 = vmax.f32 %v2730, 0.0
      %v2887 = vmax.f32 %v2732, 0.0
      %v2888 = vmax.f32 %v2735, 0.0
      %v2889 = vmax.f32 %v2737, 0.0
      %v2890 = vmax.f32 %v2740, 0.0
      %v2891 = vmax.f32 %v2742, 0.0
      %v2892 = vmax.f32 %v2745, 0.0
      %v2893 = vmax.f32 %v2747, 0.0
      %v2894 = vmax.f32 %v2750, 0.0
      %v2895 = vmax.f32 %v2752, 0.0
      %v2896 = vmax.f32 %v2755, 0.0
      %v2897 = vmax.f32 %v2757, 0.0
      %v2898 = vmax.f32 %v2760, 0.0
      %v2899 = vmax.f32 %v2762, 0.0
      %v2900 = vmax.f32 %v2765, 0.0
      %v2901 = vmax.f32 %v2767, 0.0
      %v2902 = vmax.f32 %v2770, 0.0
      %v2903 = vmax.f32 %v2772, 0.0
      %v2904 = vmax.f32 %v2775, 0.0
      %v2905 = vmax.f32 %v2777, 0.0
      %v2906 = vmax.f32 %v2780, 0.0
      %v2907 = vmax.f32 %v2782, 0.0
      %v2908 = vmax.f32 %v2785, 0.0
      %v2909 = vmax.f32 %v2787, 0.0
      %v2910 = vmax.f32 %v2790, 0.0
      %v2911 = vmax.f32 %v2792, 0.0
      %v2912 = vmax.f32 %v2795, 0.0
      %v2913 = vmax.f32 %v2797, 0.0
      %v2914 = vmax.f32 %v2800, 0.0
      %v2915 = vmax.f32 %v2802, 0.0
      %v2916 = vmax.f32 %v2805, 0.0
      %v2917 = vmax.f32 %v2807, 0.0
      %v2918 = vmax.f32 %v2810, 0.0
      %v2919 = vmax.f32 %v2812, 0.0
      %v2920 = vmax.f32 %v2815, 0.0
      %v2921 = vmax.f32 %v2817, 0.0
      %v2922 = vmax.f32 %v2820, 0.0
      %v2923 = vmax.f32 %v2822, 0.0
      %v2924 = vmax.f32 %v2825, 0.0
      %v2925 = vmax.f32 %v2827, 0.0
      %v2926 = vmax.f32 %v2830, 0.0
      %v2927 = vmax.f32 %v2832, 0.0
      %v2928 = vmax.f32 %v2835, 0.0
      %v2929 = vmax.f32 %v2837, 0.0
      %v2930 = vmax.f32 %v2840, 0.0
      %v2931 = vmax.f32 %v2842, 0.0
      %v2932 = vmax.f32 %v2845, 0.0
      %v2933 = vmax.f32 %v2847, 0.0
      %v2934 = vmax.f32 %v2850, 0.0
      %v2935 = vmax.f32 %v2852, 0.0
      %v2936 = vmax.f32 %v2855, 0.0
      %v2937 = vmax.f32 %v2857, 0.0
      %v2938 = vmax.f32 %v2860, 0.0
      %v2939 = vmax.f32 %v2862, 0.0
      %v2940 = vmax.f32 %v2865, 0.0
      %v2941 = vmax.f32 %v2867, 0.0
      %v2942 = vmax.f32 %v2870, 0.0
      %v2943 = vmax.f32 %v2872, 0.0
      %v2944 = vmax.f32 %v2875, 0.0
      %v2945 = vmax.f32 %v2877, 0.0
      %v2946 = vmax.f32 %v2880, 0.0
      %v2947 = vmax.f32 %v2882, 0.0
      %2948 = vst [vmem:[%s824] sm:$0xff] %v840
      %2949 = vst [vmem:[%s824 + $0x10] sm:$0xff] %v841
      %2950 = vst [vmem:[%s824 + $0x20] sm:$0xff] %v842
      %2951 = vst [vmem:[%s824 + $0x30] sm:$0xff] %v843
      %2952 = vst [vmem:[%s824 + $0x40] sm:$0xff] %v844
      %2953 = vst [vmem:[%s824 + $0x50] sm:$0xff] %v845
      %2954 = vst [vmem:[%s824 + $0x60] sm:$0xff] %v846
      %2955 = vst [vmem:[%s824 + $0x70] sm:$0xff] %v847
      %2956 = vst [vmem:[%s824 + $0x80] sm:$0xff] %v848
      %2957 = vst [vmem:[%s824 + $0x90] sm:$0xff] %v849
      %2958 = vst [vmem:[%s824 + $0xa0] sm:$0xff] %v850
      %2959 = vst [vmem:[%s824 + $0xb0] sm:$0xff] %v851
      %2960 = vst [vmem:[%s824 + $0xc0] sm:$0xff] %v852
      %2961 = vst [vmem:[%s824 + $0xd0] sm:$0xff] %v853
      %2962 = vst [vmem:[%s824 + $0xe0] sm:$0xff] %v854
      %2963 = vst [vmem:[%s824 + $0xf0] sm:$0xff] %v855
      %2964 = vst [vmem:[%s824 + $0x100] sm:$0xff] %v856
      %2965 = vst [vmem:[%s824 + $0x110] sm:$0xff] %v857
      %2966 = vst [vmem:[%s824 + $0x120] sm:$0xff] %v858
      %2967 = vst [vmem:[%s824 + $0x130] sm:$0xff] %v859
      %2968 = vst [vmem:[%s824 + $0x140] sm:$0xff] %v860
      %2969 = vst [vmem:[%s824 + $0x150] sm:$0xff] %v861
      %2970 = vst [vmem:[%s824 + $0x160] sm:$0xff] %v862
      %2971 = vst [vmem:[%s824 + $0x170] sm:$0xff] %v863
      %2972 = vst [vmem:[%s824 + $0x180] sm:$0xff] %v864
      %2973 = vst [vmem:[%s824 + $0x190] sm:$0xff] %v865
      %2974 = vst [vmem:[%s824 + $0x1a0] sm:$0xff] %v866
      %2975 = vst [vmem:[%s824 + $0x1b0] sm:$0xff] %v867
      %v2976 = vld [vmem:[%s801] sm:$0xf]
      %v2977 = vld [vmem:[%s801 + $0x4] sm:$0xf]
      %v2978 = vld [vmem:[%s801 + $0x8] sm:$0xf]
      %v2979 = vld [vmem:[%s801 + $0xc] sm:$0xf]
      %v2980 = vld [vmem:[%s801 + $0x10] sm:$0xf]
      %v2981 = vld [vmem:[%s801 + $0x14] sm:$0xf]
      %v2982 = vld [vmem:[%s801 + $0x18] sm:$0xf]
      %v2983 = vld [vmem:[%s801 + $0x1c] sm:$0xf]
      %v2984 = vld [vmem:[%s801 + $0x20] sm:$0xf]
      %v2985 = vld [vmem:[%s801 + $0x24] sm:$0xf]
      %v2986 = vld [vmem:[%s801 + $0x28] sm:$0xf]
      %v2987 = vld [vmem:[%s801 + $0x2c] sm:$0xf]
      %v2988 = vld [vmem:[%s801 + $0x30] sm:$0xf]
      %v2989 = vld [vmem:[%s801 + $0x34] sm:$0xf]
      %v2990 = vld [vmem:[%s801 + $0x38] sm:$0xf]
      %v2991 = vld [vmem:[%s801 + $0x3c] sm:$0xf]
      %v2992 = vld [vmem:[%s801 + $0x40] sm:$0xf]
      %v2993 = vld [vmem:[%s801 + $0x44] sm:$0xf]
      %v2994 = vld [vmem:[%s801 + $0x48] sm:$0xf]
      %v2995 = vld [vmem:[%s801 + $0x4c] sm:$0xf]
      %v2996 = vld [vmem:[%s801 + $0x50] sm:$0xf]
      %v2997 = vld [vmem:[%s801 + $0x54] sm:$0xf]
      %v2998 = vld [vmem:[%s801 + $0x58] sm:$0xf]
      %v2999 = vld [vmem:[%s801 + $0x5c] sm:$0xf]
      %v3000 = vld [vmem:[%s801 + $0x60] sm:$0xf]
      %v3001 = vld [vmem:[%s801 + $0x64] sm:$0xf]
      %v3002 = vld [vmem:[%s801 + $0x68] sm:$0xf]
      %v3003 = vld [vmem:[%s801 + $0x6c] sm:$0xf]
      %v3004 = vld [vmem:[%s807] sm:$0xf]
      %v3005 = vld [vmem:[%s807 + $0x4] sm:$0xf]
      %v3006 = vld [vmem:[%s807 + $0x8] sm:$0xf]
      %v3007 = vld [vmem:[%s807 + $0xc] sm:$0xf]
      %v3008 = vld [vmem:[%s807 + $0x10] sm:$0xf]
      %v3009 = vld [vmem:[%s807 + $0x14] sm:$0xf]
      %v3010 = vld [vmem:[%s807 + $0x18] sm:$0xf]
      %v3011 = vld [vmem:[%s807 + $0x1c] sm:$0xf]
      %v3012 = vld [vmem:[%s807 + $0x20] sm:$0xf]
      %v3013 = vld [vmem:[%s807 + $0x24] sm:$0xf]
      %v3014 = vld [vmem:[%s807 + $0x28] sm:$0xf]
      %v3015 = vld [vmem:[%s807 + $0x2c] sm:$0xf]
      %v3016 = vld [vmem:[%s807 + $0x30] sm:$0xf]
      %v3017 = vld [vmem:[%s807 + $0x34] sm:$0xf]
      %v3018 = vld [vmem:[%s807 + $0x38] sm:$0xf]
      %v3019 = vld [vmem:[%s807 + $0x3c] sm:$0xf]
      %v3020 = vld [vmem:[%s807 + $0x40] sm:$0xf]
      %v3021 = vld [vmem:[%s807 + $0x44] sm:$0xf]
      %v3022 = vld [vmem:[%s807 + $0x48] sm:$0xf]
      %v3023 = vld [vmem:[%s807 + $0x4c] sm:$0xf]
      %v3024 = vld [vmem:[%s807 + $0x50] sm:$0xf]
      %v3025 = vld [vmem:[%s807 + $0x54] sm:$0xf]
      %v3026 = vld [vmem:[%s807 + $0x58] sm:$0xf]
      %v3027 = vld [vmem:[%s807 + $0x5c] sm:$0xf]
      %v3028 = vld [vmem:[%s807 + $0x60] sm:$0xf]
      %v3029 = vld [vmem:[%s807 + $0x64] sm:$0xf]
      %v3030 = vld [vmem:[%s807 + $0x68] sm:$0xf]
      %v3031 = vld [vmem:[%s807 + $0x6c] sm:$0xf]
      %v3032 = vld [vmem:[%s807 + $0x70] sm:$0xf]
      %v3033 = vld [vmem:[%s807 + $0x74] sm:$0xf]
      %v3034 = vld [vmem:[%s807 + $0x78] sm:$0xf]
      %v3035 = vld [vmem:[%s807 + $0x7c] sm:$0xf]
      %v3036 = vld [vmem:[%s807 + $0x80] sm:$0xf]
      %v3037 = vld [vmem:[%s807 + $0x84] sm:$0xf]
      %v3038 = vld [vmem:[%s807 + $0x88] sm:$0xf]
      %v3039 = vld [vmem:[%s807 + $0x8c] sm:$0xf]
      %v3040 = vld [vmem:[%s807 + $0x90] sm:$0xf]
      %v3041 = vld [vmem:[%s807 + $0x94] sm:$0xf]
      %v3042 = vld [vmem:[%s807 + $0x98] sm:$0xf]
      %v3043 = vld [vmem:[%s807 + $0x9c] sm:$0xf]
      %v3044 = vld [vmem:[%s807 + $0xa0] sm:$0xf]
      %v3045 = vld [vmem:[%s807 + $0xa4] sm:$0xf]
      %v3046 = vld [vmem:[%s807 + $0xa8] sm:$0xf]
      %v3047 = vld [vmem:[%s807 + $0xac] sm:$0xf]
      %v3048 = vld [vmem:[%s807 + $0xb0] sm:$0xf]
      %v3049 = vld [vmem:[%s807 + $0xb4] sm:$0xf]
      %v3050 = vld [vmem:[%s807 + $0xb8] sm:$0xf]
      %v3051 = vld [vmem:[%s807 + $0xbc] sm:$0xf]
      %v3052 = vld [vmem:[%s807 + $0xc0] sm:$0xf]
      %v3053 = vld [vmem:[%s807 + $0xc4] sm:$0xf]
      %v3054 = vld [vmem:[%s807 + $0xc8] sm:$0xf]
      %v3055 = vld [vmem:[%s807 + $0xcc] sm:$0xf]
      %v3056 = vld [vmem:[%s807 + $0xd0] sm:$0xf]
      %v3057 = vld [vmem:[%s807 + $0xd4] sm:$0xf]
      %v3058 = vld [vmem:[%s807 + $0xd8] sm:$0xf]
      %v3059 = vld [vmem:[%s807 + $0xdc] sm:$0xf]
      %v3060 = vld [vmem:[%s807 + $0xe0] sm:$0xf]
      %v3061 = vld [vmem:[%s807 + $0xe4] sm:$0xf]
      %v3062 = vld [vmem:[%s807 + $0xe8] sm:$0xf]
      %v3063 = vld [vmem:[%s807 + $0xec] sm:$0xf]
      %v3064 = vld [vmem:[%s807 + $0xf0] sm:$0xf]
      %v3065 = vld [vmem:[%s807 + $0xf4] sm:$0xf]
      %v3066 = vld [vmem:[%s807 + $0xf8] sm:$0xf]
      %v3067 = vld [vmem:[%s807 + $0xfc] sm:$0xf]
      %v3068 = vlaneseq
      %v3069 = vshrl.u32 %v3068, 7
      %v3070 = vadd.s32 %v3069, 8
      %v3071 = vadd.s32 %v3069, 16
      %v3072 = vadd.s32 %v3069, 24
      %v3073 = vadd.s32 %v3069, 32
      %v3074 = vadd.s32 %v3069, 40
      %v3075 = vadd.s32 %v3069, 48
      %v3076 = vlaneseq
      %v3077 = vand.u32 %v3076, 127
      %vm3078 = vcmp.lt.s32.totalorder %v3069, 50
      %vm3079 = vcmp.lt.s32.totalorder %v3070, 50
      %vm3080 = vcmp.lt.s32.totalorder %v3071, 50
      %vm3081 = vcmp.lt.s32.totalorder %v3072, 50
      %vm3082 = vcmp.lt.s32.totalorder %v3073, 50
      %vm3083 = vcmp.lt.s32.totalorder %v3074, 50
      %vm3084 = vcmp.lt.s32.totalorder %v3075, 50
      %v3085 = vsel %vm3078, 1, 0
      %v3086 = vsel %vm3079, 1, 0
      %v3087 = vsel %vm3080, 1, 0
      %v3088 = vsel %vm3081, 1, 0
      %v3089 = vsel %vm3082, 1, 0
      %v3090 = vsel %vm3083, 1, 0
      %v3091 = vsel %vm3084, 1, 0
      %v3092 = vcvt.s32.f32 %v3085
      %v3093 = vcvt.s32.f32 %v3086
      %v3094 = vcvt.s32.f32 %v3087
      %v3095 = vcvt.s32.f32 %v3088
      %v3096 = vcvt.s32.f32 %v3089
      %v3097 = vcvt.s32.f32 %v3090
      %v3098 = vcvt.s32.f32 %v3091
      %vm3099 = vcmp.lt.s32.totalorder %v3077, 100
      %v3100 = vsel %vm3099, 0.0, -1e+30
      %v3108 = vunpack.c.l.b16 %v2976
      %v3109 = vunpack.c.l.b16 %v2977
      %v3110 = vunpack.c.l.b16 %v2978
      %v3111 = vunpack.c.l.b16 %v2979
      %v3112 = vunpack.c.l.b16 %v2980
      %v3113 = vunpack.c.l.b16 %v2981
      %v3114 = vunpack.c.l.b16 %v2982
      %v3115 = vpack.c.b16 %v3109, %v3108
      %v3116 = vpack.c.b16 %v3111, %v3110
      %v3117 = vpack.c.b16 %v3113, %v3112
      %v3118 = vpack.c.b16 %v3114, %v3114
      %v3135 = vunpack.c.l.b16 %v3004
      %v3136 = vunpack.c.l.b16 %v3005
      %v3137 = vunpack.c.l.b16 %v3006
      %v3138 = vunpack.c.l.b16 %v3007
      %v3139 = vunpack.c.l.b16 %v3008
      %v3140 = vunpack.c.l.b16 %v3009
      %v3141 = vunpack.c.l.b16 %v3010
      %v3142 = vunpack.c.l.b16 %v3011
      %v3143 = vunpack.c.l.b16 %v3012
      %v3144 = vunpack.c.l.b16 %v3013
      %v3145 = vunpack.c.l.b16 %v3014
      %v3146 = vunpack.c.l.b16 %v3015
      %v3147 = vunpack.c.l.b16 %v3016
      %v3148 = vunpack.c.l.b16 %v3017
      %v3149 = vunpack.c.l.b16 %v3018
      %v3150 = vunpack.c.l.b16 %v3019
      %v3151 = vpack.c.b16 %v3136, %v3135
      %v3152 = vpack.c.b16 %v3138, %v3137
      %v3153 = vpack.c.b16 %v3140, %v3139
      %v3154 = vpack.c.b16 %v3142, %v3141
      %v3155 = vpack.c.b16 %v3144, %v3143
      %v3156 = vpack.c.b16 %v3146, %v3145
      %v3157 = vpack.c.b16 %v3148, %v3147
      %v3158 = vpack.c.b16 %v3150, %v3149
      %v3160 = vsel %vm1076, %v3115, 0
      %v3163 = vsel %vm1076, %v3116, 0
      %v3166 = vsel %vm1076, %v3117, 0
      %v3169 = vsel %vm1076, %v3118, 0
      %v3172 = vsel %vm1076, %v3151, 0
      %v3175 = vsel %vm1076, %v3152, 0
      %v3178 = vsel %vm1076, %v3153, 0
      %v3181 = vsel %vm1076, %v3154, 0
      %v3184 = vsel %vm1076, %v3155, 0
      %v3187 = vsel %vm1076, %v3156, 0
      %v3190 = vsel %vm1076, %v3157, 0
      %v3193 = vsel %vm1076, %v3158, 0
      %3195 = vmatpush.bf16.xpose.msra.mxu0 %v3193
      %3196 = vmatpush.bf16.xpose.msra.mxu0 %v3190
      %3197 = vmatpush.bf16.xpose.msra.mxu0 %v3187
      %3198 = vmatpush.bf16.xpose.msra.mxu0 %v3184
      %3199 = vmatpush.bf16.xpose.msra.mxu0 %v3181
      %3200 = vmatpush.bf16.xpose.msra.mxu0 %v3178
      %3201 = vmatpush.bf16.xpose.msra.mxu0 %v3175
      %3202 = vmatpush.bf16.xpose.msra.mxu0 %v3172
      %3203 = vmatmul.bf16.gmra.mxu0 %v3160
      %v3204 = vpop.f32.mrf.mxu0
      %v3205 = vadd.f32 0.0, %v3204
      %v3206 = vpop.f32.mrf.mxu0
      %v3207 = vadd.f32 0.0, %v3206
      %3208 = vmatmul.bf16.gmra.mxu0 %v3163
      %v3209 = vpop.f32.mrf.mxu0
      %v3210 = vadd.f32 0.0, %v3209
      %v3211 = vpop.f32.mrf.mxu0
      %v3212 = vadd.f32 0.0, %v3211
      %3213 = vmatmul.bf16.gmra.mxu0 %v3166
      %v3214 = vpop.f32.mrf.mxu0
      %v3215 = vadd.f32 0.0, %v3214
      %v3216 = vpop.f32.mrf.mxu0
      %v3217 = vadd.f32 0.0, %v3216
      %3218 = vmatmul.bf16.gmra.mxu0 %v3169
      %v3219 = vpop.f32.mrf.mxu0
      %v3220 = vadd.f32 0.0, %v3219
      %v3221 = vpop.f32.mrf.mxu0
      %3222 = vdwg.mxu0
      %v3223 = vmul.f32 %v3205, 0.5
      %v3224 = vmul.f32 %v3207, 0.5
      %v3225 = vmul.f32 %v3210, 0.5
      %v3226 = vmul.f32 %v3212, 0.5
      %v3227 = vmul.f32 %v3215, 0.5
      %v3228 = vmul.f32 %v3217, 0.5
      %v3229 = vmul.f32 %v3220, 0.5
      %v3230 = vadd.f32 %v3223, %v3100
      %v3231 = vadd.f32 %v3224, %v3100
      %v3232 = vadd.f32 %v3225, %v3100
      %v3233 = vadd.f32 %v3226, %v3100
      %v3234 = vadd.f32 %v3227, %v3100
      %v3235 = vadd.f32 %v3228, %v3100
      %v3236 = vadd.f32 %v3229, %v3100
      %3237 = vmax.xlane.f32.xlu0 %v3230
      %v3238 = vpop.xlane.xlu0 %3237
      %3239 = vmax.xlane.f32.xlu0 %v3231
      %v3240 = vpop.xlane.xlu0 %3239
      %3241 = vmax.xlane.f32.xlu0 %v3232
      %v3242 = vpop.xlane.xlu0 %3241
      %3243 = vmax.xlane.f32.xlu0 %v3233
      %v3244 = vpop.xlane.xlu0 %3243
      %3245 = vmax.xlane.f32.xlu0 %v3234
      %v3246 = vpop.xlane.xlu0 %3245
      %3247 = vmax.xlane.f32.xlu0 %v3235
      %v3248 = vpop.xlane.xlu0 %3247
      %3249 = vmax.xlane.f32.xlu0 %v3236
      %v3250 = vpop.xlane.xlu0 %3249
      %v3251 = vsub.f32 %v3230, %v3238
      %v3252 = vsub.f32 %v3231, %v3240
      %v3253 = vsub.f32 %v3232, %v3242
      %v3254 = vsub.f32 %v3233, %v3244
      %v3255 = vsub.f32 %v3234, %v3246
      %v3256 = vsub.f32 %v3235, %v3248
      %v3257 = vsub.f32 %v3236, %v3250
      %v3258 = vmul.f32 %v3251, 1.442695
      %v3259 = vpow.pop %v3258
      %v3260 = vmul.f32 %v3252, 1.442695
      %v3261 = vpow.pop %v3260
      %v3262 = vmul.f32 %v3253, 1.442695
      %v3263 = vpow.pop %v3262
      %v3264 = vmul.f32 %v3254, 1.442695
      %v3265 = vpow.pop %v3264
      %v3266 = vmul.f32 %v3255, 1.442695
      %v3267 = vpow.pop %v3266
      %v3268 = vmul.f32 %v3256, 1.442695
      %v3269 = vpow.pop %v3268
      %v3270 = vmul.f32 %v3257, 1.442695
      %v3271 = vpow.pop %v3270
      %3272 = vadd.xlane.f32.xlu0 %v3259
      %v3273 = vpop.xlane.xlu0 %3272
      %3274 = vadd.xlane.f32.xlu0 %v3261
      %v3275 = vpop.xlane.xlu0 %3274
      %3276 = vadd.xlane.f32.xlu0 %v3263
      %v3277 = vpop.xlane.xlu0 %3276
      %3278 = vadd.xlane.f32.xlu0 %v3265
      %v3279 = vpop.xlane.xlu0 %3278
      %3280 = vadd.xlane.f32.xlu0 %v3267
      %v3281 = vpop.xlane.xlu0 %3280
      %3282 = vadd.xlane.f32.xlu0 %v3269
      %v3283 = vpop.xlane.xlu0 %3282
      %3284 = vadd.xlane.f32.xlu0 %v3271
      %v3285 = vpop.xlane.xlu0 %3284
      %v3286 = vrcp.pop %v3273
      %v3287 = vmul.f32 %v3273, %v3286
      %v3288 = vsub.f32 1.0, %v3287
      %v3289 = vmul.f32 %v3286, %v3288
      %v3290 = vadd.f32 %v3286, %v3289
      %vm3291 = vweird.f32 %v3273
      %vm3292 = vweird.f32 %v3286
      %vm3293 = vmor %vm3291, %vm3292
      %v3294 = vsel %vm3293, %v3286, %v3290
      %v3295 = vand.u32 2147483647, %v3273
      %vm3296 = vcmp.eq.f32.partialorder %v3295, 8.507059e+37
      %v3297 = vand.u32 %v3273, 2147483648
      %v3298 = vor.u32 1.1754944e-38, %v3297
      %v3299 = vsel %vm3296, %v3298, %v3294
      %v3300 = vrcp.pop %v3275
      %v3301 = vmul.f32 %v3275, %v3300
      %v3302 = vsub.f32 1.0, %v3301
      %v3303 = vmul.f32 %v3300, %v3302
      %v3304 = vadd.f32 %v3300, %v3303
      %vm3305 = vweird.f32 %v3275
      %vm3306 = vweird.f32 %v3300
      %vm3307 = vmor %vm3305, %vm3306
      %v3308 = vsel %vm3307, %v3300, %v3304
      %v3309 = vand.u32 2147483647, %v3275
      %vm3310 = vcmp.eq.f32.partialorder %v3309, 8.507059e+37
      %v3311 = vand.u32 %v3275, 2147483648
      %v3312 = vor.u32 1.1754944e-38, %v3311
      %v3313 = vsel %vm3310, %v3312, %v3308
      %v3314 = vrcp.pop %v3277
      %v3315 = vmul.f32 %v3277, %v3314
      %v3316 = vsub.f32 1.0, %v3315
      %v3317 = vmul.f32 %v3314, %v3316
      %v3318 = vadd.f32 %v3314, %v3317
      %vm3319 = vweird.f32 %v3277
      %vm3320 = vweird.f32 %v3314
      %vm3321 = vmor %vm3319, %vm3320
      %v3322 = vsel %vm3321, %v3314, %v3318
      %v3323 = vand.u32 2147483647, %v3277
      %vm3324 = vcmp.eq.f32.partialorder %v3323, 8.507059e+37
      %v3325 = vand.u32 %v3277, 2147483648
      %v3326 = vor.u32 1.1754944e-38, %v3325
      %v3327 = vsel %vm3324, %v3326, %v3322
      %v3328 = vrcp.pop %v3279
      %v3329 = vmul.f32 %v3279, %v3328
      %v3330 = vsub.f32 1.0, %v3329
      %v3331 = vmul.f32 %v3328, %v3330
      %v3332 = vadd.f32 %v3328, %v3331
      %vm3333 = vweird.f32 %v3279
      %vm3334 = vweird.f32 %v3328
      %vm3335 = vmor %vm3333, %vm3334
      %v3336 = vsel %vm3335, %v3328, %v3332
      %v3337 = vand.u32 2147483647, %v3279
      %vm3338 = vcmp.eq.f32.partialorder %v3337, 8.507059e+37
      %v3339 = vand.u32 %v3279, 2147483648
      %v3340 = vor.u32 1.1754944e-38, %v3339
      %v3341 = vsel %vm3338, %v3340, %v3336
      %v3342 = vrcp.pop %v3281
      %v3343 = vmul.f32 %v3281, %v3342
      %v3344 = vsub.f32 1.0, %v3343
      %v3345 = vmul.f32 %v3342, %v3344
      %v3346 = vadd.f32 %v3342, %v3345
      %vm3347 = vweird.f32 %v3281
      %vm3348 = vweird.f32 %v3342
      %vm3349 = vmor %vm3347, %vm3348
      %v3350 = vsel %vm3349, %v3342, %v3346
      %v3351 = vand.u32 2147483647, %v3281
      %vm3352 = vcmp.eq.f32.partialorder %v3351, 8.507059e+37
      %v3353 = vand.u32 %v3281, 2147483648
      %v3354 = vor.u32 1.1754944e-38, %v3353
      %v3355 = vsel %vm3352, %v3354, %v3350
      %v3356 = vrcp.pop %v3283
      %v3357 = vmul.f32 %v3283, %v3356
      %v3358 = vsub.f32 1.0, %v3357
      %v3359 = vmul.f32 %v3356, %v3358
      %v3360 = vadd.f32 %v3356, %v3359
      %vm3361 = vweird.f32 %v3283
      %vm3362 = vweird.f32 %v3356
      %vm3363 = vmor %vm3361, %vm3362
      %v3364 = vsel %vm3363, %v3356, %v3360
      %v3365 = vand.u32 2147483647, %v3283
      %vm3366 = vcmp.eq.f32.partialorder %v3365, 8.507059e+37
      %v3367 = vand.u32 %v3283, 2147483648
      %v3368 = vor.u32 1.1754944e-38, %v3367
      %v3369 = vsel %vm3366, %v3368, %v3364
      %v3370 = vrcp.pop %v3285
      %v3371 = vmul.f32 %v3285, %v3370
      %v3372 = vsub.f32 1.0, %v3371
      %v3373 = vmul.f32 %v3370, %v3372
      %v3374 = vadd.f32 %v3370, %v3373
      %vm3375 = vweird.f32 %v3285
      %vm3376 = vweird.f32 %v3370
      %vm3377 = vmor %vm3375, %vm3376
      %v3378 = vsel %vm3377, %v3370, %v3374
      %v3379 = vand.u32 2147483647, %v3285
      %vm3380 = vcmp.eq.f32.partialorder %v3379, 8.507059e+37
      %v3381 = vand.u32 %v3285, 2147483648
      %v3382 = vor.u32 1.1754944e-38, %v3381
      %v3383 = vsel %vm3380, %v3382, %v3378
      %v3384 = vmul.f32 %v3259, %v3299
      %v3385 = vmul.f32 %v3261, %v3313
      %v3386 = vmul.f32 %v3263, %v3327
      %v3387 = vmul.f32 %v3265, %v3341
      %v3388 = vmul.f32 %v3267, %v3355
      %v3389 = vmul.f32 %v3269, %v3369
      %v3390 = vmul.f32 %v3271, %v3383
      %v3391 = vmul.f32 %v3384, %v3092
      %v3392 = vmul.f32 %v3385, %v3093
      %v3393 = vmul.f32 %v3386, %v3094
      %v3394 = vmul.f32 %v3387, %v3095
      %v3395 = vmul.f32 %v3388, %v3096
      %v3396 = vmul.f32 %v3389, %v3097
      %v3397 = vmul.f32 %v3390, %v3098
      %3398 = vst [vmem:[%s836] sm:$0xff] %v3391
      %3399 = vst [vmem:[%s836 + $0x8] sm:$0xff] %v3392
      %3400 = vst [vmem:[%s836 + $0x10] sm:$0xff] %v3393
      %3401 = vst [vmem:[%s836 + $0x18] sm:$0xff] %v3394
      %3402 = vst [vmem:[%s836 + $0x20] sm:$0xff] %v3395
      %3403 = vst [vmem:[%s836 + $0x28] sm:$0xff] %v3396
      %3404 = vst [vmem:[%s836 + $0x30] sm:$0xff] %v3397
      %3405 = vxpose.xlu0.b32.start [1/16] %v3391, 128
      %3406 = vxpose.xlu0.b32.cont [2/16] %v3392, 128
      %3407 = vxpose.xlu0.b32.cont [3/16] %v3393, 128
      %3408 = vxpose.xlu0.b32.cont [4/16] %v3394, 128
      %3409 = vxpose.xlu0.b32.cont [5/16] %v3395, 128
      %3410 = vxpose.xlu0.b32.cont [6/16] %v3396, 128
      %3411 = vxpose.xlu0.b32.cont [7/16] %v3397, 128
      %3412 = vxpose.xlu0.b32.cont [8/16] 0.0, 128
      %3413 = vxpose.xlu0.b32.cont [9/16] 0.0, 128
      %3414 = vxpose.xlu0.b32.cont [10/16] 0.0, 128
      %3415 = vxpose.xlu0.b32.cont [11/16] 0.0, 128
      %3416 = vxpose.xlu0.b32.cont [12/16] 0.0, 128
      %3417 = vxpose.xlu0.b32.cont [13/16] 0.0, 128
      %3418 = vxpose.xlu0.b32.cont [14/16] 0.0, 128
      %3419 = vxpose.xlu0.b32.cont [15/16] 0.0, 128
      %3420 = vxpose.xlu0.b32.end [16/16] 0.0, 128
      %v3421 = vpop.trf.xlu0
      %v3422 = vpop.trf.xlu0
      %v3423 = vpop.trf.xlu0
      %v3424 = vpop.trf.xlu0
      %v3425 = vpop.trf.xlu0
      %v3426 = vpop.trf.xlu0
      %v3427 = vpop.trf.xlu0
      %v3428 = vpop.trf.xlu0
      %v3429 = vpop.trf.xlu0
      %v3430 = vpop.trf.xlu0
      %v3431 = vpop.trf.xlu0
      %v3432 = vpop.trf.xlu0
      %v3433 = vpop.trf.xlu0
      %v3434 = vpop.trf.xlu0
      %v3435 = vpop.trf.xlu0
      %v3436 = vpop.trf.xlu0
      %vm3437 = vcmask 457728
      %v3439 = vsel %vm3437, %v3421, 0
      %v3442 = vsel %vm3437, %v3422, 0
      %v3445 = vsel %vm3437, %v3423, 0
      %v3448 = vsel %vm3437, %v3424, 0
      %v3451 = vsel %vm3437, %v3425, 0
      %v3454 = vsel %vm3437, %v3426, 0
      %v3457 = vsel %vm3437, %v3427, 0
      %v3460 = vsel %vm3437, %v3428, 0
      %v3463 = vsel %vm3437, %v3429, 0
      %v3466 = vsel %vm3437, %v3430, 0
      %v3469 = vsel %vm3437, %v3431, 0
      %v3472 = vsel %vm3437, %v3432, 0
      %v3475 = vsel %vm3437, %v3433, 0
      %v3478 = vsel %vm3437, %v3434, 0
      %v3481 = vsel %vm3437, %v3435, 0
      %v3484 = vsel %vm3437, %v3436, 0
      %3486 = vmatpush.msra.mxu0 0.0
      %3487 = vmatpush.msra.mxu0 0.0
      %3488 = vmatpush.msra.mxu0 0.0
      %3489 = vmatpush.msra.mxu0 0.0
      %3490 = vmatpush.msra.mxu0 0.0
      %3491 = vmatpush.msra.mxu0 0.0
      %3492 = vmatpush.msra.mxu0 0.0
      %3493 = vmatpush.msra.mxu0 0.0
      %3494 = vmatpush.msra.mxu0 0.0
      %3495 = vmatpush.msra.mxu0 %v2513
      %3496 = vmatpush.msra.mxu0 %v2512
      %3497 = vmatpush.msra.mxu0 %v2511
      %3498 = vmatpush.msra.mxu0 %v2510
      %3499 = vmatpush.msra.mxu0 %v2509
      %3500 = vmatpush.msra.mxu0 %v2508
      %3501 = vmatpush.msra.mxu0 %v2507
      %3502 = vmatmul.f32.gmra.mxu0 %v3439
      %v3503 = vpop.f32.mrf.mxu0
      %v3504 = vadd.f32 0.0, %v3503
      %3505 = vmatmul.f32.gmra.mxu0 %v3442
      %v3506 = vpop.f32.mrf.mxu0
      %v3507 = vadd.f32 0.0, %v3506
      %3508 = vmatmul.f32.gmra.mxu0 %v3445
      %v3509 = vpop.f32.mrf.mxu0
      %v3510 = vadd.f32 0.0, %v3509
      %3511 = vmatmul.f32.gmra.mxu0 %v3448
      %v3512 = vpop.f32.mrf.mxu0
      %v3513 = vadd.f32 0.0, %v3512
      %3514 = vmatmul.f32.gmra.mxu0 %v3451
      %v3515 = vpop.f32.mrf.mxu0
      %v3516 = vadd.f32 0.0, %v3515
      %3517 = vmatmul.f32.gmra.mxu0 %v3454
      %v3518 = vpop.f32.mrf.mxu0
      %v3519 = vadd.f32 0.0, %v3518
      %3520 = vmatmul.f32.gmra.mxu0 %v3457
      %v3521 = vpop.f32.mrf.mxu0
      %v3522 = vadd.f32 0.0, %v3521
      %3523 = vmatmul.f32.gmra.mxu0 %v3460
      %v3524 = vpop.f32.mrf.mxu0
      %v3525 = vadd.f32 0.0, %v3524
      %3526 = vmatmul.f32.gmra.mxu0 %v3463
      %v3527 = vpop.f32.mrf.mxu0
      %v3528 = vadd.f32 0.0, %v3527
      %3529 = vmatmul.f32.gmra.mxu0 %v3466
      %v3530 = vpop.f32.mrf.mxu0
      %v3531 = vadd.f32 0.0, %v3530
      %3532 = vmatmul.f32.gmra.mxu0 %v3469
      %v3533 = vpop.f32.mrf.mxu0
      %v3534 = vadd.f32 0.0, %v3533
      %3535 = vmatmul.f32.gmra.mxu0 %v3472
      %v3536 = vpop.f32.mrf.mxu0
      %v3537 = vadd.f32 0.0, %v3536
      %3538 = vmatmul.f32.gmra.mxu0 %v3475
      %v3539 = vpop.f32.mrf.mxu0
      %v3540 = vadd.f32 0.0, %v3539
      %3541 = vmatmul.f32.gmra.mxu0 %v3478
      %v3542 = vpop.f32.mrf.mxu0
      %v3543 = vadd.f32 0.0, %v3542
      %3544 = vmatmul.f32.gmra.mxu0 %v3481
      %v3545 = vpop.f32.mrf.mxu0
      %v3546 = vadd.f32 0.0, %v3545
      %3547 = vmatmul.f32.gmra.mxu0 %v3484
      %v3548 = vpop.f32.mrf.mxu0
      %v3549 = vadd.f32 0.0, %v3548
      %3550 = vdwg.mxu0
      %v3551 = vstv %s839
      %v3552 = vmul.f32 %v3551, %v3504
      %v3553 = vmul.f32 %v3551, %v3507
      %v3554 = vmul.f32 %v3551, %v3510
      %v3555 = vmul.f32 %v3551, %v3513
      %v3556 = vmul.f32 %v3551, %v3516
      %v3557 = vmul.f32 %v3551, %v3519
      %v3558 = vmul.f32 %v3551, %v3522
      %v3559 = vmul.f32 %v3551, %v3525
      %v3560 = vmul.f32 %v3551, %v3528
      %v3561 = vmul.f32 %v3551, %v3531
      %v3562 = vmul.f32 %v3551, %v3534
      %v3563 = vmul.f32 %v3551, %v3537
      %v3564 = vmul.f32 %v3551, %v3540
      %v3565 = vmul.f32 %v3551, %v3543
      %v3566 = vmul.f32 %v3551, %v3546
      %v3567 = vmul.f32 %v3551, %v3549
      %v3568 = vadd.f32 %v3552, %v868
      %v3569 = vadd.f32 %v3553, %v869
      %v3570 = vadd.f32 %v3554, %v870
      %v3571 = vadd.f32 %v3555, %v871
      %v3572 = vadd.f32 %v3556, %v872
      %v3573 = vadd.f32 %v3557, %v873
      %v3574 = vadd.f32 %v3558, %v874
      %v3575 = vadd.f32 %v3559, %v875
      %v3576 = vadd.f32 %v3560, %v876
      %v3577 = vadd.f32 %v3561, %v877
      %v3578 = vadd.f32 %v3562, %v878
      %v3579 = vadd.f32 %v3563, %v879
      %v3580 = vadd.f32 %v3564, %v880
      %v3581 = vadd.f32 %v3565, %v881
      %v3582 = vadd.f32 %v3566, %v882
      %v3583 = vadd.f32 %v3567, %v883
      %3584 = vst [vmem:[%s830] sm:$0xff] %v3568
      %3585 = vst [vmem:[%s830 + $0x8] sm:$0xff] %v3569
      %3586 = vst [vmem:[%s830 + $0x10] sm:$0xff] %v3570
      %3587 = vst [vmem:[%s830 + $0x18] sm:$0xff] %v3571
      %3588 = vst [vmem:[%s830 + $0x20] sm:$0xff] %v3572
      %3589 = vst [vmem:[%s830 + $0x28] sm:$0xff] %v3573
      %3590 = vst [vmem:[%s830 + $0x30] sm:$0xff] %v3574
      %3591 = vst [vmem:[%s830 + $0x38] sm:$0xff] %v3575
      %3592 = vst [vmem:[%s830 + $0x40] sm:$0xff] %v3576
      %3593 = vst [vmem:[%s830 + $0x48] sm:$0xff] %v3577
      %3594 = vst [vmem:[%s830 + $0x50] sm:$0xff] %v3578
      %3595 = vst [vmem:[%s830 + $0x58] sm:$0xff] %v3579
      %3596 = vst [vmem:[%s830 + $0x60] sm:$0xff] %v3580
      %3597 = vst [vmem:[%s830 + $0x68] sm:$0xff] %v3581
      %3598 = vst [vmem:[%s830 + $0x70] sm:$0xff] %v3582
      %3599 = vst [vmem:[%s830 + $0x78] sm:$0xff] %v3583
      %3600 = vmatpush.msra.mxu0 %v2899
      %3601 = vmatpush.msra.mxu0 %v2898
      %3602 = vmatpush.msra.mxu0 %v2897
      %3603 = vmatpush.msra.mxu0 %v2896
      %3604 = vmatpush.msra.mxu0 %v2895
      %3605 = vmatpush.msra.mxu0 %v2894
      %3606 = vmatpush.msra.mxu0 %v2893
      %3607 = vmatpush.msra.mxu0 %v2892
      %3608 = vmatpush.msra.mxu0 %v2891
      %3609 = vmatpush.msra.mxu0 %v2890
      %3610 = vmatpush.msra.mxu0 %v2889
      %3611 = vmatpush.msra.mxu0 %v2888
      %3612 = vmatpush.msra.mxu0 %v2887
      %3613 = vmatpush.msra.mxu0 %v2886
      %3614 = vmatpush.msra.mxu0 %v2885
      %3615 = vmatpush.msra.mxu0 %v2884
      %3616 = vmatmul.f32.gmra.mxu0 %v3391
      %v3617 = vpop.f32.mrf.mxu0
      %v3618 = vadd.f32 0.0, %v3617
      %3619 = vmatmul.f32.gmra.mxu0 %v3392
      %v3620 = vpop.f32.mrf.mxu0
      %v3621 = vadd.f32 0.0, %v3620
      %3622 = vmatmul.f32.gmra.mxu0 %v3393
      %v3623 = vpop.f32.mrf.mxu0
      %v3624 = vadd.f32 0.0, %v3623
      %3625 = vmatmul.f32.gmra.mxu0 %v3394
      %v3626 = vpop.f32.mrf.mxu0
      %v3627 = vadd.f32 0.0, %v3626
      %3628 = vmatmul.f32.gmra.mxu0 %v3395
      %v3629 = vpop.f32.mrf.mxu0
      %v3630 = vadd.f32 0.0, %v3629
      %3631 = vmatmul.f32.gmra.mxu0 %v3396
      %v3632 = vpop.f32.mrf.mxu0
      %v3633 = vadd.f32 0.0, %v3632
      %3634 = vmatmul.f32.gmra.mxu0 %v3397
      %v3635 = vpop.f32.mrf.mxu0
      %v3636 = vadd.f32 0.0, %v3635
      %3637 = vdwg.mxu0
      %3638 = vst [vmem:[%s824 + $0x8] sm:$0xff] %v3618
      %3639 = vst [vmem:[%s824 + $0x18] sm:$0xff] %v3621
      %3640 = vst [vmem:[%s824 + $0x28] sm:$0xff] %v3624
      %3641 = vst [vmem:[%s824 + $0x38] sm:$0xff] %v3627
      %3642 = vst [vmem:[%s824 + $0x48] sm:$0xff] %v3630
      %3643 = vst [vmem:[%s824 + $0x58] sm:$0xff] %v3633
      %3644 = vst [vmem:[%s824 + $0x68] sm:$0xff] %v3636
      %v3652 = vunpack.c.l.b16 %v2983
      %v3653 = vunpack.c.l.b16 %v2984
      %v3654 = vunpack.c.l.b16 %v2985
      %v3655 = vunpack.c.l.b16 %v2986
      %v3656 = vunpack.c.l.b16 %v2987
      %v3657 = vunpack.c.l.b16 %v2988
      %v3658 = vunpack.c.l.b16 %v2989
      %v3659 = vpack.c.b16 %v3653, %v3652
      %v3660 = vpack.c.b16 %v3655, %v3654
      %v3661 = vpack.c.b16 %v3657, %v3656
      %v3662 = vpack.c.b16 %v3658, %v3658
      %v3679 = vunpack.c.l.b16 %v3020
      %v3680 = vunpack.c.l.b16 %v3021
      %v3681 = vunpack.c.l.b16 %v3022
      %v3682 = vunpack.c.l.b16 %v3023
      %v3683 = vunpack.c.l.b16 %v3024
      %v3684 = vunpack.c.l.b16 %v3025
      %v3685 = vunpack.c.l.b16 %v3026
      %v3686 = vunpack.c.l.b16 %v3027
      %v3687 = vunpack.c.l.b16 %v3028
      %v3688 = vunpack.c.l.b16 %v3029
      %v3689 = vunpack.c.l.b16 %v3030
      %v3690 = vunpack.c.l.b16 %v3031
      %v3691 = vunpack.c.l.b16 %v3032
      %v3692 = vunpack.c.l.b16 %v3033
      %v3693 = vunpack.c.l.b16 %v3034
      %v3694 = vunpack.c.l.b16 %v3035
      %v3695 = vpack.c.b16 %v3680, %v3679
      %v3696 = vpack.c.b16 %v3682, %v3681
      %v3697 = vpack.c.b16 %v3684, %v3683
      %v3698 = vpack.c.b16 %v3686, %v3685
      %v3699 = vpack.c.b16 %v3688, %v3687
      %v3700 = vpack.c.b16 %v3690, %v3689
      %v3701 = vpack.c.b16 %v3692, %v3691
      %v3702 = vpack.c.b16 %v3694, %v3693
      %v3704 = vsel %vm1076, %v3659, 0
      %v3707 = vsel %vm1076, %v3660, 0
      %v3710 = vsel %vm1076, %v3661, 0
      %v3713 = vsel %vm1076, %v3662, 0
      %v3716 = vsel %vm1076, %v3695, 0
      %v3719 = vsel %vm1076, %v3696, 0
      %v3722 = vsel %vm1076, %v3697, 0
      %v3725 = vsel %vm1076, %v3698, 0
      %v3728 = vsel %vm1076, %v3699, 0
      %v3731 = vsel %vm1076, %v3700, 0
      %v3734 = vsel %vm1076, %v3701, 0
      %v3737 = vsel %vm1076, %v3702, 0
      %3739 = vmatpush.bf16.xpose.msra.mxu0 %v3737
      %3740 = vmatpush.bf16.xpose.msra.mxu0 %v3734
      %3741 = vmatpush.bf16.xpose.msra.mxu0 %v3731
      %3742 = vmatpush.bf16.xpose.msra.mxu0 %v3728
      %3743 = vmatpush.bf16.xpose.msra.mxu0 %v3725
      %3744 = vmatpush.bf16.xpose.msra.mxu0 %v3722
      %3745 = vmatpush.bf16.xpose.msra.mxu0 %v3719
      %3746 = vmatpush.bf16.xpose.msra.mxu0 %v3716
      %3747 = vmatmul.bf16.gmra.mxu0 %v3704
      %v3748 = vpop.f32.mrf.mxu0
      %v3749 = vadd.f32 0.0, %v3748
      %v3750 = vpop.f32.mrf.mxu0
      %v3751 = vadd.f32 0.0, %v3750
      %3752 = vmatmul.bf16.gmra.mxu0 %v3707
      %v3753 = vpop.f32.mrf.mxu0
      %v3754 = vadd.f32 0.0, %v3753
      %v3755 = vpop.f32.mrf.mxu0
      %v3756 = vadd.f32 0.0, %v3755
      %3757 = vmatmul.bf16.gmra.mxu0 %v3710
      %v3758 = vpop.f32.mrf.mxu0
      %v3759 = vadd.f32 0.0, %v3758
      %v3760 = vpop.f32.mrf.mxu0
      %v3761 = vadd.f32 0.0, %v3760
      %3762 = vmatmul.bf16.gmra.mxu0 %v3713
      %v3763 = vpop.f32.mrf.mxu0
      %v3764 = vadd.f32 0.0, %v3763
      %v3765 = vpop.f32.mrf.mxu0
      %3766 = vdwg.mxu0
      %v3767 = vmul.f32 %v3749, 0.5
      %v3768 = vmul.f32 %v3751, 0.5
      %v3769 = vmul.f32 %v3754, 0.5
      %v3770 = vmul.f32 %v3756, 0.5
      %v3771 = vmul.f32 %v3759, 0.5
      %v3772 = vmul.f32 %v3761, 0.5
      %v3773 = vmul.f32 %v3764, 0.5
      %v3774 = vadd.f32 %v3767, %v3100
      %v3775 = vadd.f32 %v3768, %v3100
      %v3776 = vadd.f32 %v3769, %v3100
      %v3777 = vadd.f32 %v3770, %v3100
      %v3778 = vadd.f32 %v3771, %v3100
      %v3779 = vadd.f32 %v3772, %v3100
      %v3780 = vadd.f32 %v3773, %v3100
      %3781 = vmax.xlane.f32.xlu0 %v3774
      %v3782 = vpop.xlane.xlu0 %3781
      %3783 = vmax.xlane.f32.xlu0 %v3775
      %v3784 = vpop.xlane.xlu0 %3783
      %3785 = vmax.xlane.f32.xlu0 %v3776
      %v3786 = vpop.xlane.xlu0 %3785
      %3787 = vmax.xlane.f32.xlu0 %v3777
      %v3788 = vpop.xlane.xlu0 %3787
      %3789 = vmax.xlane.f32.xlu0 %v3778
      %v3790 = vpop.xlane.xlu0 %3789
      %3791 = vmax.xlane.f32.xlu0 %v3779
      %v3792 = vpop.xlane.xlu0 %3791
      %3793 = vmax.xlane.f32.xlu0 %v3780
      %v3794 = vpop.xlane.xlu0 %3793
      %v3795 = vsub.f32 %v3774, %v3782
      %v3796 = vsub.f32 %v3775, %v3784
      %v3797 = vsub.f32 %v3776, %v3786
      %v3798 = vsub.f32 %v3777, %v3788
      %v3799 = vsub.f32 %v3778, %v3790
      %v3800 = vsub.f32 %v3779, %v3792
      %v3801 = vsub.f32 %v3780, %v3794
      %v3802 = vmul.f32 %v3795, 1.442695
      %v3803 = vpow.pop %v3802
      %v3804 = vmul.f32 %v3796, 1.442695
      %v3805 = vpow.pop %v3804
      %v3806 = vmul.f32 %v3797, 1.442695
      %v3807 = vpow.pop %v3806
      %v3808 = vmul.f32 %v3798, 1.442695
      %v3809 = vpow.pop %v3808
      %v3810 = vmul.f32 %v3799, 1.442695
      %v3811 = vpow.pop %v3810
      %v3812 = vmul.f32 %v3800, 1.442695
      %v3813 = vpow.pop %v3812
      %v3814 = vmul.f32 %v3801, 1.442695
      %v3815 = vpow.pop %v3814
      %3816 = vadd.xlane.f32.xlu0 %v3803
      %v3817 = vpop.xlane.xlu0 %3816
      %3818 = vadd.xlane.f32.xlu0 %v3805
      %v3819 = vpop.xlane.xlu0 %3818
      %3820 = vadd.xlane.f32.xlu0 %v3807
      %v3821 = vpop.xlane.xlu0 %3820
      %3822 = vadd.xlane.f32.xlu0 %v3809
      %v3823 = vpop.xlane.xlu0 %3822
      %3824 = vadd.xlane.f32.xlu0 %v3811
      %v3825 = vpop.xlane.xlu0 %3824
      %3826 = vadd.xlane.f32.xlu0 %v3813
      %v3827 = vpop.xlane.xlu0 %3826
      %3828 = vadd.xlane.f32.xlu0 %v3815
      %v3829 = vpop.xlane.xlu0 %3828
      %v3830 = vrcp.pop %v3817
      %v3831 = vmul.f32 %v3817, %v3830
      %v3832 = vsub.f32 1.0, %v3831
      %v3833 = vmul.f32 %v3830, %v3832
      %v3834 = vadd.f32 %v3830, %v3833
      %vm3835 = vweird.f32 %v3817
      %vm3836 = vweird.f32 %v3830
      %vm3837 = vmor %vm3835, %vm3836
      %v3838 = vsel %vm3837, %v3830, %v3834
      %v3839 = vand.u32 2147483647, %v3817
      %vm3840 = vcmp.eq.f32.partialorder %v3839, 8.507059e+37
      %v3841 = vand.u32 %v3817, 2147483648
      %v3842 = vor.u32 1.1754944e-38, %v3841
      %v3843 = vsel %vm3840, %v3842, %v3838
      %v3844 = vrcp.pop %v3819
      %v3845 = vmul.f32 %v3819, %v3844
      %v3846 = vsub.f32 1.0, %v3845
      %v3847 = vmul.f32 %v3844, %v3846
      %v3848 = vadd.f32 %v3844, %v3847
      %vm3849 = vweird.f32 %v3819
      %vm3850 = vweird.f32 %v3844
      %vm3851 = vmor %vm3849, %vm3850
      %v3852 = vsel %vm3851, %v3844, %v3848
      %v3853 = vand.u32 2147483647, %v3819
      %vm3854 = vcmp.eq.f32.partialorder %v3853, 8.507059e+37
      %v3855 = vand.u32 %v3819, 2147483648
      %v3856 = vor.u32 1.1754944e-38, %v3855
      %v3857 = vsel %vm3854, %v3856, %v3852
      %v3858 = vrcp.pop %v3821
      %v3859 = vmul.f32 %v3821, %v3858
      %v3860 = vsub.f32 1.0, %v3859
      %v3861 = vmul.f32 %v3858, %v3860
      %v3862 = vadd.f32 %v3858, %v3861
      %vm3863 = vweird.f32 %v3821
      %vm3864 = vweird.f32 %v3858
      %vm3865 = vmor %vm3863, %vm3864
      %v3866 = vsel %vm3865, %v3858, %v3862
      %v3867 = vand.u32 2147483647, %v3821
      %vm3868 = vcmp.eq.f32.partialorder %v3867, 8.507059e+37
      %v3869 = vand.u32 %v3821, 2147483648
      %v3870 = vor.u32 1.1754944e-38, %v3869
      %v3871 = vsel %vm3868, %v3870, %v3866
      %v3872 = vrcp.pop %v3823
      %v3873 = vmul.f32 %v3823, %v3872
      %v3874 = vsub.f32 1.0, %v3873
      %v3875 = vmul.f32 %v3872, %v3874
      %v3876 = vadd.f32 %v3872, %v3875
      %vm3877 = vweird.f32 %v3823
      %vm3878 = vweird.f32 %v3872
      %vm3879 = vmor %vm3877, %vm3878
      %v3880 = vsel %vm3879, %v3872, %v3876
      %v3881 = vand.u32 2147483647, %v3823
      %vm3882 = vcmp.eq.f32.partialorder %v3881, 8.507059e+37
      %v3883 = vand.u32 %v3823, 2147483648
      %v3884 = vor.u32 1.1754944e-38, %v3883
      %v3885 = vsel %vm3882, %v3884, %v3880
      %v3886 = vrcp.pop %v3825
      %v3887 = vmul.f32 %v3825, %v3886
      %v3888 = vsub.f32 1.0, %v3887
      %v3889 = vmul.f32 %v3886, %v3888
      %v3890 = vadd.f32 %v3886, %v3889
      %vm3891 = vweird.f32 %v3825
      %vm3892 = vweird.f32 %v3886
      %vm3893 = vmor %vm3891, %vm3892
      %v3894 = vsel %vm3893, %v3886, %v3890
      %v3895 = vand.u32 2147483647, %v3825
      %vm3896 = vcmp.eq.f32.partialorder %v3895, 8.507059e+37
      %v3897 = vand.u32 %v3825, 2147483648
      %v3898 = vor.u32 1.1754944e-38, %v3897
      %v3899 = vsel %vm3896, %v3898, %v3894
      %v3900 = vrcp.pop %v3827
      %v3901 = vmul.f32 %v3827, %v3900
      %v3902 = vsub.f32 1.0, %v3901
      %v3903 = vmul.f32 %v3900, %v3902
      %v3904 = vadd.f32 %v3900, %v3903
      %vm3905 = vweird.f32 %v3827
      %vm3906 = vweird.f32 %v3900
      %vm3907 = vmor %vm3905, %vm3906
      %v3908 = vsel %vm3907, %v3900, %v3904
      %v3909 = vand.u32 2147483647, %v3827
      %vm3910 = vcmp.eq.f32.partialorder %v3909, 8.507059e+37
      %v3911 = vand.u32 %v3827, 2147483648
      %v3912 = vor.u32 1.1754944e-38, %v3911
      %v3913 = vsel %vm3910, %v3912, %v3908
      %v3914 = vrcp.pop %v3829
      %v3915 = vmul.f32 %v3829, %v3914
      %v3916 = vsub.f32 1.0, %v3915
      %v3917 = vmul.f32 %v3914, %v3916
      %v3918 = vadd.f32 %v3914, %v3917
      %vm3919 = vweird.f32 %v3829
      %vm3920 = vweird.f32 %v3914
      %vm3921 = vmor %vm3919, %vm3920
      %v3922 = vsel %vm3921, %v3914, %v3918
      %v3923 = vand.u32 2147483647, %v3829
      %vm3924 = vcmp.eq.f32.partialorder %v3923, 8.507059e+37
      %v3925 = vand.u32 %v3829, 2147483648
      %v3926 = vor.u32 1.1754944e-38, %v3925
      %v3927 = vsel %vm3924, %v3926, %v3922
      %v3928 = vmul.f32 %v3803, %v3843
      %v3929 = vmul.f32 %v3805, %v3857
      %v3930 = vmul.f32 %v3807, %v3871
      %v3931 = vmul.f32 %v3809, %v3885
      %v3932 = vmul.f32 %v3811, %v3899
      %v3933 = vmul.f32 %v3813, %v3913
      %v3934 = vmul.f32 %v3815, %v3927
      %v3935 = vmul.f32 %v3928, %v3092
      %v3936 = vmul.f32 %v3929, %v3093
      %v3937 = vmul.f32 %v3930, %v3094
      %v3938 = vmul.f32 %v3931, %v3095
      %v3939 = vmul.f32 %v3932, %v3096
      %v3940 = vmul.f32 %v3933, %v3097
      %v3941 = vmul.f32 %v3934, %v3098
      %3942 = vst [vmem:[%s836 + $0x38] sm:$0xff] %v3935
      %3943 = vst [vmem:[%s836 + $0x40] sm:$0xff] %v3936
      %3944 = vst [vmem:[%s836 + $0x48] sm:$0xff] %v3937
      %3945 = vst [vmem:[%s836 + $0x50] sm:$0xff] %v3938
      %3946 = vst [vmem:[%s836 + $0x58] sm:$0xff] %v3939
      %3947 = vst [vmem:[%s836 + $0x60] sm:$0xff] %v3940
      %3948 = vst [vmem:[%s836 + $0x68] sm:$0xff] %v3941
      %3949 = vxpose.xlu0.b32.start [1/16] %v3935, 128
      %3950 = vxpose.xlu0.b32.cont [2/16] %v3936, 128
      %3951 = vxpose.xlu0.b32.cont [3/16] %v3937, 128
      %3952 = vxpose.xlu0.b32.cont [4/16] %v3938, 128
      %3953 = vxpose.xlu0.b32.cont [5/16] %v3939, 128
      %3954 = vxpose.xlu0.b32.cont [6/16] %v3940, 128
      %3955 = vxpose.xlu0.b32.cont [7/16] %v3941, 128
      %3956 = vxpose.xlu0.b32.cont [8/16] 0.0, 128
      %3957 = vxpose.xlu0.b32.cont [9/16] 0.0, 128
      %3958 = vxpose.xlu0.b32.cont [10/16] 0.0, 128
      %3959 = vxpose.xlu0.b32.cont [11/16] 0.0, 128
      %3960 = vxpose.xlu0.b32.cont [12/16] 0.0, 128
      %3961 = vxpose.xlu0.b32.cont [13/16] 0.0, 128
      %3962 = vxpose.xlu0.b32.cont [14/16] 0.0, 128
      %3963 = vxpose.xlu0.b32.cont [15/16] 0.0, 128
      %3964 = vxpose.xlu0.b32.end [16/16] 0.0, 128
      %v3965 = vpop.trf.xlu0
      %v3966 = vpop.trf.xlu0
      %v3967 = vpop.trf.xlu0
      %v3968 = vpop.trf.xlu0
      %v3969 = vpop.trf.xlu0
      %v3970 = vpop.trf.xlu0
      %v3971 = vpop.trf.xlu0
      %v3972 = vpop.trf.xlu0
      %v3973 = vpop.trf.xlu0
      %v3974 = vpop.trf.xlu0
      %v3975 = vpop.trf.xlu0
      %v3976 = vpop.trf.xlu0
      %v3977 = vpop.trf.xlu0
      %v3978 = vpop.trf.xlu0
      %v3979 = vpop.trf.xlu0
      %v3980 = vpop.trf.xlu0
      %v3982 = vsel %vm3437, %v3965, 0
      %v3985 = vsel %vm3437, %v3966, 0
      %v3988 = vsel %vm3437, %v3967, 0
      %v3991 = vsel %vm3437, %v3968, 0
      %v3994 = vsel %vm3437, %v3969, 0
      %v3997 = vsel %vm3437, %v3970, 0
      %v4000 = vsel %vm3437, %v3971, 0
      %v4003 = vsel %vm3437, %v3972, 0
      %v4006 = vsel %vm3437, %v3973, 0
      %v4009 = vsel %vm3437, %v3974, 0
      %v4012 = vsel %vm3437, %v3975, 0
      %v4015 = vsel %vm3437, %v3976, 0
      %v4018 = vsel %vm3437, %v3977, 0
      %v4021 = vsel %vm3437, %v3978, 0
      %v4024 = vsel %vm3437, %v3979, 0
      %v4027 = vsel %vm3437, %v3980, 0
      %4029 = vmatpush.msra.mxu0 0.0
      %4030 = vmatpush.msra.mxu0 0.0
      %4031 = vmatpush.msra.mxu0 0.0
      %4032 = vmatpush.msra.mxu0 0.0
      %4033 = vmatpush.msra.mxu0 0.0
      %4034 = vmatpush.msra.mxu0 0.0
      %4035 = vmatpush.msra.mxu0 0.0
      %4036 = vmatpush.msra.mxu0 0.0
      %4037 = vmatpush.msra.mxu0 0.0
      %4038 = vmatpush.msra.mxu0 %v2520
      %4039 = vmatpush.msra.mxu0 %v2519
      %4040 = vmatpush.msra.mxu0 %v2518
      %4041 = vmatpush.msra.mxu0 %v2517
      %4042 = vmatpush.msra.mxu0 %v2516
      %4043 = vmatpush.msra.mxu0 %v2515
      %4044 = vmatpush.msra.mxu0 %v2514
      %4045 = vmatmul.f32.gmra.mxu0 %v3982
      %v4046 = vpop.f32.mrf.mxu0
      %v4047 = vadd.f32 0.0, %v4046
      %4048 = vmatmul.f32.gmra.mxu0 %v3985
      %v4049 = vpop.f32.mrf.mxu0
      %v4050 = vadd.f32 0.0, %v4049
      %4051 = vmatmul.f32.gmra.mxu0 %v3988
      %v4052 = vpop.f32.mrf.mxu0
      %v4053 = vadd.f32 0.0, %v4052
      %4054 = vmatmul.f32.gmra.mxu0 %v3991
      %v4055 = vpop.f32.mrf.mxu0
      %v4056 = vadd.f32 0.0, %v4055
      %4057 = vmatmul.f32.gmra.mxu0 %v3994
      %v4058 = vpop.f32.mrf.mxu0
      %v4059 = vadd.f32 0.0, %v4058
      %4060 = vmatmul.f32.gmra.mxu0 %v3997
      %v4061 = vpop.f32.mrf.mxu0
      %v4062 = vadd.f32 0.0, %v4061
      %4063 = vmatmul.f32.gmra.mxu0 %v4000
      %v4064 = vpop.f32.mrf.mxu0
      %v4065 = vadd.f32 0.0, %v4064
      %4066 = vmatmul.f32.gmra.mxu0 %v4003
      %v4067 = vpop.f32.mrf.mxu0
      %v4068 = vadd.f32 0.0, %v4067
      %4069 = vmatmul.f32.gmra.mxu0 %v4006
      %v4070 = vpop.f32.mrf.mxu0
      %v4071 = vadd.f32 0.0, %v4070
      %4072 = vmatmul.f32.gmra.mxu0 %v4009
      %v4073 = vpop.f32.mrf.mxu0
      %v4074 = vadd.f32 0.0, %v4073
      %4075 = vmatmul.f32.gmra.mxu0 %v4012
      %v4076 = vpop.f32.mrf.mxu0
      %v4077 = vadd.f32 0.0, %v4076
      %4078 = vmatmul.f32.gmra.mxu0 %v4015
      %v4079 = vpop.f32.mrf.mxu0
      %v4080 = vadd.f32 0.0, %v4079
      %4081 = vmatmul.f32.gmra.mxu0 %v4018
      %v4082 = vpop.f32.mrf.mxu0
      %v4083 = vadd.f32 0.0, %v4082
      %4084 = vmatmul.f32.gmra.mxu0 %v4021
      %v4085 = vpop.f32.mrf.mxu0
      %v4086 = vadd.f32 0.0, %v4085
      %4087 = vmatmul.f32.gmra.mxu0 %v4024
      %v4088 = vpop.f32.mrf.mxu0
      %v4089 = vadd.f32 0.0, %v4088
      %4090 = vmatmul.f32.gmra.mxu0 %v4027
      %v4091 = vpop.f32.mrf.mxu0
      %v4092 = vadd.f32 0.0, %v4091
      %4093 = vdwg.mxu0
      %v4094 = vmul.f32 %v3551, %v4047
      %v4095 = vmul.f32 %v3551, %v4050
      %v4096 = vmul.f32 %v3551, %v4053
      %v4097 = vmul.f32 %v3551, %v4056
      %v4098 = vmul.f32 %v3551, %v4059
      %v4099 = vmul.f32 %v3551, %v4062
      %v4100 = vmul.f32 %v3551, %v4065
      %v4101 = vmul.f32 %v3551, %v4068
      %v4102 = vmul.f32 %v3551, %v4071
      %v4103 = vmul.f32 %v3551, %v4074
      %v4104 = vmul.f32 %v3551, %v4077
      %v4105 = vmul.f32 %v3551, %v4080
      %v4106 = vmul.f32 %v3551, %v4083
      %v4107 = vmul.f32 %v3551, %v4086
      %v4108 = vmul.f32 %v3551, %v4089
      %v4109 = vmul.f32 %v3551, %v4092
      %v4110 = vadd.f32 %v4094, %v884
      %v4111 = vadd.f32 %v4095, %v885
      %v4112 = vadd.f32 %v4096, %v886
      %v4113 = vadd.f32 %v4097, %v887
      %v4114 = vadd.f32 %v4098, %v888
      %v4115 = vadd.f32 %v4099, %v889
      %v4116 = vadd.f32 %v4100, %v890
      %v4117 = vadd.f32 %v4101, %v891
      %v4118 = vadd.f32 %v4102, %v892
      %v4119 = vadd.f32 %v4103, %v893
      %v4120 = vadd.f32 %v4104, %v894
      %v4121 = vadd.f32 %v4105, %v895
      %v4122 = vadd.f32 %v4106, %v896
      %v4123 = vadd.f32 %v4107, %v897
      %v4124 = vadd.f32 %v4108, %v898
      %v4125 = vadd.f32 %v4109, %v899
      %4126 = vst [vmem:[%s830 + $0x80] sm:$0xff] %v4110
      %4127 = vst [vmem:[%s830 + $0x88] sm:$0xff] %v4111
      %4128 = vst [vmem:[%s830 + $0x90] sm:$0xff] %v4112
      %4129 = vst [vmem:[%s830 + $0x98] sm:$0xff] %v4113
      %4130 = vst [vmem:[%s830 + $0xa0] sm:$0xff] %v4114
      %4131 = vst [vmem:[%s830 + $0xa8] sm:$0xff] %v4115
      %4132 = vst [vmem:[%s830 + $0xb0] sm:$0xff] %v4116
      %4133 = vst [vmem:[%s830 + $0xb8] sm:$0xff] %v4117
      %4134 = vst [vmem:[%s830 + $0xc0] sm:$0xff] %v4118
      %4135 = vst [vmem:[%s830 + $0xc8] sm:$0xff] %v4119
      %4136 = vst [vmem:[%s830 + $0xd0] sm:$0xff] %v4120
      %4137 = vst [vmem:[%s830 + $0xd8] sm:$0xff] %v4121
      %4138 = vst [vmem:[%s830 + $0xe0] sm:$0xff] %v4122
      %4139 = vst [vmem:[%s830 + $0xe8] sm:$0xff] %v4123
      %4140 = vst [vmem:[%s830 + $0xf0] sm:$0xff] %v4124
      %4141 = vst [vmem:[%s830 + $0xf8] sm:$0xff] %v4125
      %4142 = vmatpush.msra.mxu0 %v2915
      %4143 = vmatpush.msra.mxu0 %v2914
      %4144 = vmatpush.msra.mxu0 %v2913
      %4145 = vmatpush.msra.mxu0 %v2912
      %4146 = vmatpush.msra.mxu0 %v2911
      %4147 = vmatpush.msra.mxu0 %v2910
      %4148 = vmatpush.msra.mxu0 %v2909
      %4149 = vmatpush.msra.mxu0 %v2908
      %4150 = vmatpush.msra.mxu0 %v2907
      %4151 = vmatpush.msra.mxu0 %v2906
      %4152 = vmatpush.msra.mxu0 %v2905
      %4153 = vmatpush.msra.mxu0 %v2904
      %4154 = vmatpush.msra.mxu0 %v2903
      %4155 = vmatpush.msra.mxu0 %v2902
      %4156 = vmatpush.msra.mxu0 %v2901
      %4157 = vmatpush.msra.mxu0 %v2900
      %4158 = vmatmul.f32.gmra.mxu0 %v3935
      %v4159 = vpop.f32.mrf.mxu0
      %v4160 = vadd.f32 0.0, %v4159
      %4161 = vmatmul.f32.gmra.mxu0 %v3936
      %v4162 = vpop.f32.mrf.mxu0
      %v4163 = vadd.f32 0.0, %v4162
      %4164 = vmatmul.f32.gmra.mxu0 %v3937
      %v4165 = vpop.f32.mrf.mxu0
      %v4166 = vadd.f32 0.0, %v4165
      %4167 = vmatmul.f32.gmra.mxu0 %v3938
      %v4168 = vpop.f32.mrf.mxu0
      %v4169 = vadd.f32 0.0, %v4168
      %4170 = vmatmul.f32.gmra.mxu0 %v3939
      %v4171 = vpop.f32.mrf.mxu0
      %v4172 = vadd.f32 0.0, %v4171
      %4173 = vmatmul.f32.gmra.mxu0 %v3940
      %v4174 = vpop.f32.mrf.mxu0
      %v4175 = vadd.f32 0.0, %v4174
      %4176 = vmatmul.f32.gmra.mxu0 %v3941
      %v4177 = vpop.f32.mrf.mxu0
      %v4178 = vadd.f32 0.0, %v4177
      %4179 = vdwg.mxu0
      %4180 = vst [vmem:[%s824 + $0x78] sm:$0xff] %v4160
      %4181 = vst [vmem:[%s824 + $0x88] sm:$0xff] %v4163
      %4182 = vst [vmem:[%s824 + $0x98] sm:$0xff] %v4166
      %4183 = vst [vmem:[%s824 + $0xa8] sm:$0xff] %v4169
      %4184 = vst [vmem:[%s824 + $0xb8] sm:$0xff] %v4172
      %4185 = vst [vmem:[%s824 + $0xc8] sm:$0xff] %v4175
      %4186 = vst [vmem:[%s824 + $0xd8] sm:$0xff] %v4178
      %v4194 = vunpack.c.l.b16 %v2990
      %v4195 = vunpack.c.l.b16 %v2991
      %v4196 = vunpack.c.l.b16 %v2992
      %v4197 = vunpack.c.l.b16 %v2993
      %v4198 = vunpack.c.l.b16 %v2994
      %v4199 = vunpack.c.l.b16 %v2995
      %v4200 = vunpack.c.l.b16 %v2996
      %v4201 = vpack.c.b16 %v4195, %v4194
      %v4202 = vpack.c.b16 %v4197, %v4196
      %v4203 = vpack.c.b16 %v4199, %v4198
      %v4204 = vpack.c.b16 %v4200, %v4200
      %v4221 = vunpack.c.l.b16 %v3036
      %v4222 = vunpack.c.l.b16 %v3037
      %v4223 = vunpack.c.l.b16 %v3038
      %v4224 = vunpack.c.l.b16 %v3039
      %v4225 = vunpack.c.l.b16 %v3040
      %v4226 = vunpack.c.l.b16 %v3041
      %v4227 = vunpack.c.l.b16 %v3042
      %v4228 = vunpack.c.l.b16 %v3043
      %v4229 = vunpack.c.l.b16 %v3044
      %v4230 = vunpack.c.l.b16 %v3045
      %v4231 = vunpack.c.l.b16 %v3046
      %v4232 = vunpack.c.l.b16 %v3047
      %v4233 = vunpack.c.l.b16 %v3048
      %v4234 = vunpack.c.l.b16 %v3049
      %v4235 = vunpack.c.l.b16 %v3050
      %v4236 = vunpack.c.l.b16 %v3051
      %v4237 = vpack.c.b16 %v4222, %v4221
      %v4238 = vpack.c.b16 %v4224, %v4223
      %v4239 = vpack.c.b16 %v4226, %v4225
      %v4240 = vpack.c.b16 %v4228, %v4227
      %v4241 = vpack.c.b16 %v4230, %v4229
      %v4242 = vpack.c.b16 %v4232, %v4231
      %v4243 = vpack.c.b16 %v4234, %v4233
      %v4244 = vpack.c.b16 %v4236, %v4235
      %v4246 = vsel %vm1076, %v4201, 0
      %v4249 = vsel %vm1076, %v4202, 0
      %v4252 = vsel %vm1076, %v4203, 0
      %v4255 = vsel %vm1076, %v4204, 0
      %v4258 = vsel %vm1076, %v4237, 0
      %v4261 = vsel %vm1076, %v4238, 0
      %v4264 = vsel %vm1076, %v4239, 0
      %v4267 = vsel %vm1076, %v4240, 0
      %v4270 = vsel %vm1076, %v4241, 0
      %v4273 = vsel %vm1076, %v4242, 0
      %v4276 = vsel %vm1076, %v4243, 0
      %v4279 = vsel %vm1076, %v4244, 0
      %4281 = vmatpush.bf16.xpose.msra.mxu0 %v4279
      %4282 = vmatpush.bf16.xpose.msra.mxu0 %v4276
      %4283 = vmatpush.bf16.xpose.msra.mxu0 %v4273
      %4284 = vmatpush.bf16.xpose.msra.mxu0 %v4270
      %4285 = vmatpush.bf16.xpose.msra.mxu0 %v4267
      %4286 = vmatpush.bf16.xpose.msra.mxu0 %v4264
      %4287 = vmatpush.bf16.xpose.msra.mxu0 %v4261
      %4288 = vmatpush.bf16.xpose.msra.mxu0 %v4258
      %4289 = vmatmul.bf16.gmra.mxu0 %v4246
      %v4290 = vpop.f32.mrf.mxu0
      %v4291 = vadd.f32 0.0, %v4290
      %v4292 = vpop.f32.mrf.mxu0
      %v4293 = vadd.f32 0.0, %v4292
      %4294 = vmatmul.bf16.gmra.mxu0 %v4249
      %v4295 = vpop.f32.mrf.mxu0
      %v4296 = vadd.f32 0.0, %v4295
      %v4297 = vpop.f32.mrf.mxu0
      %v4298 = vadd.f32 0.0, %v4297
      %4299 = vmatmul.bf16.gmra.mxu0 %v4252
      %v4300 = vpop.f32.mrf.mxu0
      %v4301 = vadd.f32 0.0, %v4300
      %v4302 = vpop.f32.mrf.mxu0
      %v4303 = vadd.f32 0.0, %v4302
      %4304 = vmatmul.bf16.gmra.mxu0 %v4255
      %v4305 = vpop.f32.mrf.mxu0
      %v4306 = vadd.f32 0.0, %v4305
      %v4307 = vpop.f32.mrf.mxu0
      %4308 = vdwg.mxu0
      %v4309 = vmul.f32 %v4291, 0.5
      %v4310 = vmul.f32 %v4293, 0.5
      %v4311 = vmul.f32 %v4296, 0.5
      %v4312 = vmul.f32 %v4298, 0.5
      %v4313 = vmul.f32 %v4301, 0.5
      %v4314 = vmul.f32 %v4303, 0.5
      %v4315 = vmul.f32 %v4306, 0.5
      %v4316 = vadd.f32 %v4309, %v3100
      %v4317 = vadd.f32 %v4310, %v3100
      %v4318 = vadd.f32 %v4311, %v3100
      %v4319 = vadd.f32 %v4312, %v3100
      %v4320 = vadd.f32 %v4313, %v3100
      %v4321 = vadd.f32 %v4314, %v3100
      %v4322 = vadd.f32 %v4315, %v3100
      %4323 = vmax.xlane.f32.xlu0 %v4316
      %v4324 = vpop.xlane.xlu0 %4323
      %4325 = vmax.xlane.f32.xlu0 %v4317
      %v4326 = vpop.xlane.xlu0 %4325
      %4327 = vmax.xlane.f32.xlu0 %v4318
      %v4328 = vpop.xlane.xlu0 %4327
      %4329 = vmax.xlane.f32.xlu0 %v4319
      %v4330 = vpop.xlane.xlu0 %4329
      %4331 = vmax.xlane.f32.xlu0 %v4320
      %v4332 = vpop.xlane.xlu0 %4331
      %4333 = vmax.xlane.f32.xlu0 %v4321
      %v4334 = vpop.xlane.xlu0 %4333
      %4335 = vmax.xlane.f32.xlu0 %v4322
      %v4336 = vpop.xlane.xlu0 %4335
      %v4337 = vsub.f32 %v4316, %v4324
      %v4338 = vsub.f32 %v4317, %v4326
      %v4339 = vsub.f32 %v4318, %v4328
      %v4340 = vsub.f32 %v4319, %v4330
      %v4341 = vsub.f32 %v4320, %v4332
      %v4342 = vsub.f32 %v4321, %v4334
      %v4343 = vsub.f32 %v4322, %v4336
      %v4344 = vmul.f32 %v4337, 1.442695
      %v4345 = vpow.pop %v4344
      %v4346 = vmul.f32 %v4338, 1.442695
      %v4347 = vpow.pop %v4346
      %v4348 = vmul.f32 %v4339, 1.442695
      %v4349 = vpow.pop %v4348
      %v4350 = vmul.f32 %v4340, 1.442695
      %v4351 = vpow.pop %v4350
      %v4352 = vmul.f32 %v4341, 1.442695
      %v4353 = vpow.pop %v4352
      %v4354 = vmul.f32 %v4342, 1.442695
      %v4355 = vpow.pop %v4354
      %v4356 = vmul.f32 %v4343, 1.442695
      %v4357 = vpow.pop %v4356
      %4358 = vadd.xlane.f32.xlu0 %v4345
      %v4359 = vpop.xlane.xlu0 %4358
      %4360 = vadd.xlane.f32.xlu0 %v4347
      %v4361 = vpop.xlane.xlu0 %4360
      %4362 = vadd.xlane.f32.xlu0 %v4349
      %v4363 = vpop.xlane.xlu0 %4362
      %4364 = vadd.xlane.f32.xlu0 %v4351
      %v4365 = vpop.xlane.xlu0 %4364
      %4366 = vadd.xlane.f32.xlu0 %v4353
      %v4367 = vpop.xlane.xlu0 %4366
      %4368 = vadd.xlane.f32.xlu0 %v4355
      %v4369 = vpop.xlane.xlu0 %4368
      %4370 = vadd.xlane.f32.xlu0 %v4357
      %v4371 = vpop.xlane.xlu0 %4370
      %v4372 = vrcp.pop %v4359
      %v4373 = vmul.f32 %v4359, %v4372
      %v4374 = vsub.f32 1.0, %v4373
      %v4375 = vmul.f32 %v4372, %v4374
      %v4376 = vadd.f32 %v4372, %v4375
      %vm4377 = vweird.f32 %v4359
      %vm4378 = vweird.f32 %v4372
      %vm4379 = vmor %vm4377, %vm4378
      %v4380 = vsel %vm4379, %v4372, %v4376
      %v4381 = vand.u32 2147483647, %v4359
      %vm4382 = vcmp.eq.f32.partialorder %v4381, 8.507059e+37
      %v4383 = vand.u32 %v4359, 2147483648
      %v4384 = vor.u32 1.1754944e-38, %v4383
      %v4385 = vsel %vm4382, %v4384, %v4380
      %v4386 = vrcp.pop %v4361
      %v4387 = vmul.f32 %v4361, %v4386
      %v4388 = vsub.f32 1.0, %v4387
      %v4389 = vmul.f32 %v4386, %v4388
      %v4390 = vadd.f32 %v4386, %v4389
      %vm4391 = vweird.f32 %v4361
      %vm4392 = vweird.f32 %v4386
      %vm4393 = vmor %vm4391, %vm4392
      %v4394 = vsel %vm4393, %v4386, %v4390
      %v4395 = vand.u32 2147483647, %v4361
      %vm4396 = vcmp.eq.f32.partialorder %v4395, 8.507059e+37
      %v4397 = vand.u32 %v4361, 2147483648
      %v4398 = vor.u32 1.1754944e-38, %v4397
      %v4399 = vsel %vm4396, %v4398, %v4394
      %v4400 = vrcp.pop %v4363
      %v4401 = vmul.f32 %v4363, %v4400
      %v4402 = vsub.f32 1.0, %v4401
      %v4403 = vmul.f32 %v4400, %v4402
      %v4404 = vadd.f32 %v4400, %v4403
      %vm4405 = vweird.f32 %v4363
      %vm4406 = vweird.f32 %v4400
      %vm4407 = vmor %vm4405, %vm4406
      %v4408 = vsel %vm4407, %v4400, %v4404
      %v4409 = vand.u32 2147483647, %v4363
      %vm4410 = vcmp.eq.f32.partialorder %v4409, 8.507059e+37
      %v4411 = vand.u32 %v4363, 2147483648
      %v4412 = vor.u32 1.1754944e-38, %v4411
      %v4413 = vsel %vm4410, %v4412, %v4408
      %v4414 = vrcp.pop %v4365
      %v4415 = vmul.f32 %v4365, %v4414
      %v4416 = vsub.f32 1.0, %v4415
      %v4417 = vmul.f32 %v4414, %v4416
      %v4418 = vadd.f32 %v4414, %v4417
      %vm4419 = vweird.f32 %v4365
      %vm4420 = vweird.f32 %v4414
      %vm4421 = vmor %vm4419, %vm4420
      %v4422 = vsel %vm4421, %v4414, %v4418
      %v4423 = vand.u32 2147483647, %v4365
      %vm4424 = vcmp.eq.f32.partialorder %v4423, 8.507059e+37
      %v4425 = vand.u32 %v4365, 2147483648
      %v4426 = vor.u32 1.1754944e-38, %v4425
      %v4427 = vsel %vm4424, %v4426, %v4422
      %v4428 = vrcp.pop %v4367
      %v4429 = vmul.f32 %v4367, %v4428
      %v4430 = vsub.f32 1.0, %v4429
      %v4431 = vmul.f32 %v4428, %v4430
      %v4432 = vadd.f32 %v4428, %v4431
      %vm4433 = vweird.f32 %v4367
      %vm4434 = vweird.f32 %v4428
      %vm4435 = vmor %vm4433, %vm4434
      %v4436 = vsel %vm4435, %v4428, %v4432
      %v4437 = vand.u32 2147483647, %v4367
      %vm4438 = vcmp.eq.f32.partialorder %v4437, 8.507059e+37
      %v4439 = vand.u32 %v4367, 2147483648
      %v4440 = vor.u32 1.1754944e-38, %v4439
      %v4441 = vsel %vm4438, %v4440, %v4436
      %v4442 = vrcp.pop %v4369
      %v4443 = vmul.f32 %v4369, %v4442
      %v4444 = vsub.f32 1.0, %v4443
      %v4445 = vmul.f32 %v4442, %v4444
      %v4446 = vadd.f32 %v4442, %v4445
      %vm4447 = vweird.f32 %v4369
      %vm4448 = vweird.f32 %v4442
      %vm4449 = vmor %vm4447, %vm4448
      %v4450 = vsel %vm4449, %v4442, %v4446
      %v4451 = vand.u32 2147483647, %v4369
      %vm4452 = vcmp.eq.f32.partialorder %v4451, 8.507059e+37
      %v4453 = vand.u32 %v4369, 2147483648
      %v4454 = vor.u32 1.1754944e-38, %v4453
      %v4455 = vsel %vm4452, %v4454, %v4450
      %v4456 = vrcp.pop %v4371
      %v4457 = vmul.f32 %v4371, %v4456
      %v4458 = vsub.f32 1.0, %v4457
      %v4459 = vmul.f32 %v4456, %v4458
      %v4460 = vadd.f32 %v4456, %v4459
      %vm4461 = vweird.f32 %v4371
      %vm4462 = vweird.f32 %v4456
      %vm4463 = vmor %vm4461, %vm4462
      %v4464 = vsel %vm4463, %v4456, %v4460
      %v4465 = vand.u32 2147483647, %v4371
      %vm4466 = vcmp.eq.f32.partialorder %v4465, 8.507059e+37
      %v4467 = vand.u32 %v4371, 2147483648
      %v4468 = vor.u32 1.1754944e-38, %v4467
      %v4469 = vsel %vm4466, %v4468, %v4464
      %v4470 = vmul.f32 %v4345, %v4385
      %v4471 = vmul.f32 %v4347, %v4399
      %v4472 = vmul.f32 %v4349, %v4413
      %v4473 = vmul.f32 %v4351, %v4427
      %v4474 = vmul.f32 %v4353, %v4441
      %v4475 = vmul.f32 %v4355, %v4455
      %v4476 = vmul.f32 %v4357, %v4469
      %v4477 = vmul.f32 %v4470, %v3092
      %v4478 = vmul.f32 %v4471, %v3093
      %v4479 = vmul.f32 %v4472, %v3094
      %v4480 = vmul.f32 %v4473, %v3095
      %v4481 = vmul.f32 %v4474, %v3096
      %v4482 = vmul.f32 %v4475, %v3097
      %v4483 = vmul.f32 %v4476, %v3098
      %4484 = vst [vmem:[%s836 + $0x70] sm:$0xff] %v4477
      %4485 = vst [vmem:[%s836 + $0x78] sm:$0xff] %v4478
      %4486 = vst [vmem:[%s836 + $0x80] sm:$0xff] %v4479
      %4487 = vst [vmem:[%s836 + $0x88] sm:$0xff] %v4480
      %4488 = vst [vmem:[%s836 + $0x90] sm:$0xff] %v4481
      %4489 = vst [vmem:[%s836 + $0x98] sm:$0xff] %v4482
      %4490 = vst [vmem:[%s836 + $0xa0] sm:$0xff] %v4483
      %4491 = vxpose.xlu0.b32.start [1/16] %v4477, 128
      %4492 = vxpose.xlu0.b32.cont [2/16] %v4478, 128
      %4493 = vxpose.xlu0.b32.cont [3/16] %v4479, 128
      %4494 = vxpose.xlu0.b32.cont [4/16] %v4480, 128
      %4495 = vxpose.xlu0.b32.cont [5/16] %v4481, 128
      %4496 = vxpose.xlu0.b32.cont [6/16] %v4482, 128
      %4497 = vxpose.xlu0.b32.cont [7/16] %v4483, 128
      %4498 = vxpose.xlu0.b32.cont [8/16] 0.0, 128
      %4499 = vxpose.xlu0.b32.cont [9/16] 0.0, 128
      %4500 = vxpose.xlu0.b32.cont [10/16] 0.0, 128
      %4501 = vxpose.xlu0.b32.cont [11/16] 0.0, 128
      %4502 = vxpose.xlu0.b32.cont [12/16] 0.0, 128
      %4503 = vxpose.xlu0.b32.cont [13/16] 0.0, 128
      %4504 = vxpose.xlu0.b32.cont [14/16] 0.0, 128
      %4505 = vxpose.xlu0.b32.cont [15/16] 0.0, 128
      %4506 = vxpose.xlu0.b32.end [16/16] 0.0, 128
      %v4507 = vpop.trf.xlu0
      %v4508 = vpop.trf.xlu0
      %v4509 = vpop.trf.xlu0
      %v4510 = vpop.trf.xlu0
      %v4511 = vpop.trf.xlu0
      %v4512 = vpop.trf.xlu0
      %v4513 = vpop.trf.xlu0
      %v4514 = vpop.trf.xlu0
      %v4515 = vpop.trf.xlu0
      %v4516 = vpop.trf.xlu0
      %v4517 = vpop.trf.xlu0
      %v4518 = vpop.trf.xlu0
      %v4519 = vpop.trf.xlu0
      %v4520 = vpop.trf.xlu0
      %v4521 = vpop.trf.xlu0
      %v4522 = vpop.trf.xlu0
      %v4524 = vsel %vm3437, %v4507, 0
      %v4527 = vsel %vm3437, %v4508, 0
      %v4530 = vsel %vm3437, %v4509, 0
      %v4533 = vsel %vm3437, %v4510, 0
      %v4536 = vsel %vm3437, %v4511, 0
      %v4539 = vsel %vm3437, %v4512, 0
      %v4542 = vsel %vm3437, %v4513, 0
      %v4545 = vsel %vm3437, %v4514, 0
      %v4548 = vsel %vm3437, %v4515, 0
      %v4551 = vsel %vm3437, %v4516, 0
      %v4554 = vsel %vm3437, %v4517, 0
      %v4557 = vsel %vm3437, %v4518, 0
      %v4560 = vsel %vm3437, %v4519, 0
      %v4563 = vsel %vm3437, %v4520, 0
      %v4566 = vsel %vm3437, %v4521, 0
      %v4569 = vsel %vm3437, %v4522, 0
      %4571 = vmatpush.msra.mxu0 0.0
      %4572 = vmatpush.msra.mxu0 0.0
      %4573 = vmatpush.msra.mxu0 0.0
      %4574 = vmatpush.msra.mxu0 0.0
      %4575 = vmatpush.msra.mxu0 0.0
      %4576 = vmatpush.msra.mxu0 0.0
      %4577 = vmatpush.msra.mxu0 0.0
      %4578 = vmatpush.msra.mxu0 0.0
      %4579 = vmatpush.msra.mxu0 0.0
      %4580 = vmatpush.msra.mxu0 %v2527
      %4581 = vmatpush.msra.mxu0 %v2526
      %4582 = vmatpush.msra.mxu0 %v2525
      %4583 = vmatpush.msra.mxu0 %v2524
      %4584 = vmatpush.msra.mxu0 %v2523
      %4585 = vmatpush.msra.mxu0 %v2522
      %4586 = vmatpush.msra.mxu0 %v2521
      %4587 = vmatmul.f32.gmra.mxu0 %v4524
      %v4588 = vpop.f32.mrf.mxu0
      %v4589 = vadd.f32 0.0, %v4588
      %4590 = vmatmul.f32.gmra.mxu0 %v4527
      %v4591 = vpop.f32.mrf.mxu0
      %v4592 = vadd.f32 0.0, %v4591
      %4593 = vmatmul.f32.gmra.mxu0 %v4530
      %v4594 = vpop.f32.mrf.mxu0
      %v4595 = vadd.f32 0.0, %v4594
      %4596 = vmatmul.f32.gmra.mxu0 %v4533
      %v4597 = vpop.f32.mrf.mxu0
      %v4598 = vadd.f32 0.0, %v4597
      %4599 = vmatmul.f32.gmra.mxu0 %v4536
      %v4600 = vpop.f32.mrf.mxu0
      %v4601 = vadd.f32 0.0, %v4600
      %4602 = vmatmul.f32.gmra.mxu0 %v4539
      %v4603 = vpop.f32.mrf.mxu0
      %v4604 = vadd.f32 0.0, %v4603
      %4605 = vmatmul.f32.gmra.mxu0 %v4542
      %v4606 = vpop.f32.mrf.mxu0
      %v4607 = vadd.f32 0.0, %v4606
      %4608 = vmatmul.f32.gmra.mxu0 %v4545
      %v4609 = vpop.f32.mrf.mxu0
      %v4610 = vadd.f32 0.0, %v4609
      %4611 = vmatmul.f32.gmra.mxu0 %v4548
      %v4612 = vpop.f32.mrf.mxu0
      %v4613 = vadd.f32 0.0, %v4612
      %4614 = vmatmul.f32.gmra.mxu0 %v4551
      %v4615 = vpop.f32.mrf.mxu0
      %v4616 = vadd.f32 0.0, %v4615
      %4617 = vmatmul.f32.gmra.mxu0 %v4554
      %v4618 = vpop.f32.mrf.mxu0
      %v4619 = vadd.f32 0.0, %v4618
      %4620 = vmatmul.f32.gmra.mxu0 %v4557
      %v4621 = vpop.f32.mrf.mxu0
      %v4622 = vadd.f32 0.0, %v4621
      %4623 = vmatmul.f32.gmra.mxu0 %v4560
      %v4624 = vpop.f32.mrf.mxu0
      %v4625 = vadd.f32 0.0, %v4624
      %4626 = vmatmul.f32.gmra.mxu0 %v4563
      %v4627 = vpop.f32.mrf.mxu0
      %v4628 = vadd.f32 0.0, %v4627
      %4629 = vmatmul.f32.gmra.mxu0 %v4566
      %v4630 = vpop.f32.mrf.mxu0
      %v4631 = vadd.f32 0.0, %v4630
      %4632 = vmatmul.f32.gmra.mxu0 %v4569
      %v4633 = vpop.f32.mrf.mxu0
      %v4634 = vadd.f32 0.0, %v4633
      %4635 = vdwg.mxu0
      %v4636 = vmul.f32 %v3551, %v4589
      %v4637 = vmul.f32 %v3551, %v4592
      %v4638 = vmul.f32 %v3551, %v4595
      %v4639 = vmul.f32 %v3551, %v4598
      %v4640 = vmul.f32 %v3551, %v4601
      %v4641 = vmul.f32 %v3551, %v4604
      %v4642 = vmul.f32 %v3551, %v4607
      %v4643 = vmul.f32 %v3551, %v4610
      %v4644 = vmul.f32 %v3551, %v4613
      %v4645 = vmul.f32 %v3551, %v4616
      %v4646 = vmul.f32 %v3551, %v4619
      %v4647 = vmul.f32 %v3551, %v4622
      %v4648 = vmul.f32 %v3551, %v4625
      %v4649 = vmul.f32 %v3551, %v4628
      %v4650 = vmul.f32 %v3551, %v4631
      %v4651 = vmul.f32 %v3551, %v4634
      %v4652 = vadd.f32 %v4636, %v900
      %v4653 = vadd.f32 %v4637, %v901
      %v4654 = vadd.f32 %v4638, %v902
      %v4655 = vadd.f32 %v4639, %v903
      %v4656 = vadd.f32 %v4640, %v904
      %v4657 = vadd.f32 %v4641, %v905
      %v4658 = vadd.f32 %v4642, %v906
      %v4659 = vadd.f32 %v4643, %v907
      %v4660 = vadd.f32 %v4644, %v908
      %v4661 = vadd.f32 %v4645, %v909
      %v4662 = vadd.f32 %v4646, %v910
      %v4663 = vadd.f32 %v4647, %v911
      %v4664 = vadd.f32 %v4648, %v912
      %v4665 = vadd.f32 %v4649, %v913
      %v4666 = vadd.f32 %v4650, %v914
      %v4667 = vadd.f32 %v4651, %v915
      %4668 = vst [vmem:[%s830 + $0x100] sm:$0xff] %v4652
      %4669 = vst [vmem:[%s830 + $0x108] sm:$0xff] %v4653
      %4670 = vst [vmem:[%s830 + $0x110] sm:$0xff] %v4654
      %4671 = vst [vmem:[%s830 + $0x118] sm:$0xff] %v4655
      %4672 = vst [vmem:[%s830 + $0x120] sm:$0xff] %v4656
      %4673 = vst [vmem:[%s830 + $0x128] sm:$0xff] %v4657
      %4674 = vst [vmem:[%s830 + $0x130] sm:$0xff] %v4658
      %4675 = vst [vmem:[%s830 + $0x138] sm:$0xff] %v4659
      %4676 = vst [vmem:[%s830 + $0x140] sm:$0xff] %v4660
      %4677 = vst [vmem:[%s830 + $0x148] sm:$0xff] %v4661
      %4678 = vst [vmem:[%s830 + $0x150] sm:$0xff] %v4662
      %4679 = vst [vmem:[%s830 + $0x158] sm:$0xff] %v4663
      %4680 = vst [vmem:[%s830 + $0x160] sm:$0xff] %v4664
      %4681 = vst [vmem:[%s830 + $0x168] sm:$0xff] %v4665
      %4682 = vst [vmem:[%s830 + $0x170] sm:$0xff] %v4666
      %4683 = vst [vmem:[%s830 + $0x178] sm:$0xff] %v4667
      %4684 = vmatpush.msra.mxu0 %v2931
      %4685 = vmatpush.msra.mxu0 %v2930
      %4686 = vmatpush.msra.mxu0 %v2929
      %4687 = vmatpush.msra.mxu0 %v2928
      %4688 = vmatpush.msra.mxu0 %v2927
      %4689 = vmatpush.msra.mxu0 %v2926
      %4690 = vmatpush.msra.mxu0 %v2925
      %4691 = vmatpush.msra.mxu0 %v2924
      %4692 = vmatpush.msra.mxu0 %v2923
      %4693 = vmatpush.msra.mxu0 %v2922
      %4694 = vmatpush.msra.mxu0 %v2921
      %4695 = vmatpush.msra.mxu0 %v2920
      %4696 = vmatpush.msra.mxu0 %v2919
      %4697 = vmatpush.msra.mxu0 %v2918
      %4698 = vmatpush.msra.mxu0 %v2917
      %4699 = vmatpush.msra.mxu0 %v2916
      %4700 = vmatmul.f32.gmra.mxu0 %v4477
      %v4701 = vpop.f32.mrf.mxu0
      %v4702 = vadd.f32 0.0, %v4701
      %4703 = vmatmul.f32.gmra.mxu0 %v4478
      %v4704 = vpop.f32.mrf.mxu0
      %v4705 = vadd.f32 0.0, %v4704
      %4706 = vmatmul.f32.gmra.mxu0 %v4479
      %v4707 = vpop.f32.mrf.mxu0
      %v4708 = vadd.f32 0.0, %v4707
      %4709 = vmatmul.f32.gmra.mxu0 %v4480
      %v4710 = vpop.f32.mrf.mxu0
      %v4711 = vadd.f32 0.0, %v4710
      %4712 = vmatmul.f32.gmra.mxu0 %v4481
      %v4713 = vpop.f32.mrf.mxu0
      %v4714 = vadd.f32 0.0, %v4713
      %4715 = vmatmul.f32.gmra.mxu0 %v4482
      %v4716 = vpop.f32.mrf.mxu0
      %v4717 = vadd.f32 0.0, %v4716
      %4718 = vmatmul.f32.gmra.mxu0 %v4483
      %v4719 = vpop.f32.mrf.mxu0
      %v4720 = vadd.f32 0.0, %v4719
      %4721 = vdwg.mxu0
      %4722 = vst [vmem:[%s824 + $0xe8] sm:$0xff] %v4702
      %4723 = vst [vmem:[%s824 + $0xf8] sm:$0xff] %v4705
      %4724 = vst [vmem:[%s824 + $0x108] sm:$0xff] %v4708
      %4725 = vst [vmem:[%s824 + $0x118] sm:$0xff] %v4711
      %4726 = vst [vmem:[%s824 + $0x128] sm:$0xff] %v4714
      %4727 = vst [vmem:[%s824 + $0x138] sm:$0xff] %v4717
      %4728 = vst [vmem:[%s824 + $0x148] sm:$0xff] %v4720
      %v4736 = vunpack.c.l.b16 %v2997
      %v4737 = vunpack.c.l.b16 %v2998
      %v4738 = vunpack.c.l.b16 %v2999
      %v4739 = vunpack.c.l.b16 %v3000
      %v4740 = vunpack.c.l.b16 %v3001
      %v4741 = vunpack.c.l.b16 %v3002
      %v4742 = vunpack.c.l.b16 %v3003
      %v4743 = vpack.c.b16 %v4737, %v4736
      %v4744 = vpack.c.b16 %v4739, %v4738
      %v4745 = vpack.c.b16 %v4741, %v4740
      %v4746 = vpack.c.b16 %v4742, %v4742
      %v4763 = vunpack.c.l.b16 %v3052
      %v4764 = vunpack.c.l.b16 %v3053
      %v4765 = vunpack.c.l.b16 %v3054
      %v4766 = vunpack.c.l.b16 %v3055
      %v4767 = vunpack.c.l.b16 %v3056
      %v4768 = vunpack.c.l.b16 %v3057
      %v4769 = vunpack.c.l.b16 %v3058
      %v4770 = vunpack.c.l.b16 %v3059
      %v4771 = vunpack.c.l.b16 %v3060
      %v4772 = vunpack.c.l.b16 %v3061
      %v4773 = vunpack.c.l.b16 %v3062
      %v4774 = vunpack.c.l.b16 %v3063
      %v4775 = vunpack.c.l.b16 %v3064
      %v4776 = vunpack.c.l.b16 %v3065
      %v4777 = vunpack.c.l.b16 %v3066
      %v4778 = vunpack.c.l.b16 %v3067
      %v4779 = vpack.c.b16 %v4764, %v4763
      %v4780 = vpack.c.b16 %v4766, %v4765
      %v4781 = vpack.c.b16 %v4768, %v4767
      %v4782 = vpack.c.b16 %v4770, %v4769
      %v4783 = vpack.c.b16 %v4772, %v4771
      %v4784 = vpack.c.b16 %v4774, %v4773
      %v4785 = vpack.c.b16 %v4776, %v4775
      %v4786 = vpack.c.b16 %v4778, %v4777
      %v4788 = vsel %vm1076, %v4743, 0
      %v4791 = vsel %vm1076, %v4744, 0
      %v4794 = vsel %vm1076, %v4745, 0
      %v4797 = vsel %vm1076, %v4746, 0
      %v4800 = vsel %vm1076, %v4779, 0
      %v4803 = vsel %vm1076, %v4780, 0
      %v4806 = vsel %vm1076, %v4781, 0
      %v4809 = vsel %vm1076, %v4782, 0
      %v4812 = vsel %vm1076, %v4783, 0
      %v4815 = vsel %vm1076, %v4784, 0
      %v4818 = vsel %vm1076, %v4785, 0
      %v4821 = vsel %vm1076, %v4786, 0
      %4823 = vmatpush.bf16.xpose.msra.mxu0 %v4821
      %4824 = vmatpush.bf16.xpose.msra.mxu0 %v4818
      %4825 = vmatpush.bf16.xpose.msra.mxu0 %v4815
      %4826 = vmatpush.bf16.xpose.msra.mxu0 %v4812
      %4827 = vmatpush.bf16.xpose.msra.mxu0 %v4809
      %4828 = vmatpush.bf16.xpose.msra.mxu0 %v4806
      %4829 = vmatpush.bf16.xpose.msra.mxu0 %v4803
      %4830 = vmatpush.bf16.xpose.msra.mxu0 %v4800
      %4831 = vmatmul.bf16.gmra.mxu0 %v4788
      %v4832 = vpop.f32.mrf.mxu0
      %v4833 = vadd.f32 0.0, %v4832
      %v4834 = vpop.f32.mrf.mxu0
      %v4835 = vadd.f32 0.0, %v4834
      %4836 = vmatmul.bf16.gmra.mxu0 %v4791
      %v4837 = vpop.f32.mrf.mxu0
      %v4838 = vadd.f32 0.0, %v4837
      %v4839 = vpop.f32.mrf.mxu0
      %v4840 = vadd.f32 0.0, %v4839
      %4841 = vmatmul.bf16.gmra.mxu0 %v4794
      %v4842 = vpop.f32.mrf.mxu0
      %v4843 = vadd.f32 0.0, %v4842
      %v4844 = vpop.f32.mrf.mxu0
      %v4845 = vadd.f32 0.0, %v4844
      %4846 = vmatmul.bf16.gmra.mxu0 %v4797
      %v4847 = vpop.f32.mrf.mxu0
      %v4848 = vadd.f32 0.0, %v4847
      %v4849 = vpop.f32.mrf.mxu0
      %4850 = vdwg.mxu0
      %v4851 = vmul.f32 %v4833, 0.5
      %v4852 = vmul.f32 %v4835, 0.5
      %v4853 = vmul.f32 %v4838, 0.5
      %v4854 = vmul.f32 %v4840, 0.5
      %v4855 = vmul.f32 %v4843, 0.5
      %v4856 = vmul.f32 %v4845, 0.5
      %v4857 = vmul.f32 %v4848, 0.5
      %v4858 = vadd.f32 %v4851, %v3100
      %v4859 = vadd.f32 %v4852, %v3100
      %v4860 = vadd.f32 %v4853, %v3100
      %v4861 = vadd.f32 %v4854, %v3100
      %v4862 = vadd.f32 %v4855, %v3100
      %v4863 = vadd.f32 %v4856, %v3100
      %v4864 = vadd.f32 %v4857, %v3100
      %4865 = vmax.xlane.f32.xlu0 %v4858
      %v4866 = vpop.xlane.xlu0 %4865
      %4867 = vmax.xlane.f32.xlu0 %v4859
      %v4868 = vpop.xlane.xlu0 %4867
      %4869 = vmax.xlane.f32.xlu0 %v4860
      %v4870 = vpop.xlane.xlu0 %4869
      %4871 = vmax.xlane.f32.xlu0 %v4861
      %v4872 = vpop.xlane.xlu0 %4871
      %4873 = vmax.xlane.f32.xlu0 %v4862
      %v4874 = vpop.xlane.xlu0 %4873
      %4875 = vmax.xlane.f32.xlu0 %v4863
      %v4876 = vpop.xlane.xlu0 %4875
      %4877 = vmax.xlane.f32.xlu0 %v4864
      %v4878 = vpop.xlane.xlu0 %4877
      %v4879 = vsub.f32 %v4858, %v4866
      %v4880 = vsub.f32 %v4859, %v4868
      %v4881 = vsub.f32 %v4860, %v4870
      %v4882 = vsub.f32 %v4861, %v4872
      %v4883 = vsub.f32 %v4862, %v4874
      %v4884 = vsub.f32 %v4863, %v4876
      %v4885 = vsub.f32 %v4864, %v4878
      %v4886 = vmul.f32 %v4879, 1.442695
      %v4887 = vpow.pop %v4886
      %v4888 = vmul.f32 %v4880, 1.442695
      %v4889 = vpow.pop %v4888
      %v4890 = vmul.f32 %v4881, 1.442695
      %v4891 = vpow.pop %v4890
      %v4892 = vmul.f32 %v4882, 1.442695
      %v4893 = vpow.pop %v4892
      %v4894 = vmul.f32 %v4883, 1.442695
      %v4895 = vpow.pop %v4894
      %v4896 = vmul.f32 %v4884, 1.442695
      %v4897 = vpow.pop %v4896
      %v4898 = vmul.f32 %v4885, 1.442695
      %v4899 = vpow.pop %v4898
      %4900 = vadd.xlane.f32.xlu0 %v4887
      %v4901 = vpop.xlane.xlu0 %4900
      %4902 = vadd.xlane.f32.xlu0 %v4889
      %v4903 = vpop.xlane.xlu0 %4902
      %4904 = vadd.xlane.f32.xlu0 %v4891
      %v4905 = vpop.xlane.xlu0 %4904
      %4906 = vadd.xlane.f32.xlu0 %v4893
      %v4907 = vpop.xlane.xlu0 %4906
      %4908 = vadd.xlane.f32.xlu0 %v4895
      %v4909 = vpop.xlane.xlu0 %4908
      %4910 = vadd.xlane.f32.xlu0 %v4897
      %v4911 = vpop.xlane.xlu0 %4910
      %4912 = vadd.xlane.f32.xlu0 %v4899
      %v4913 = vpop.xlane.xlu0 %4912
      %v4914 = vrcp.pop %v4901
      %v4915 = vmul.f32 %v4901, %v4914
      %v4916 = vsub.f32 1.0, %v4915
      %v4917 = vmul.f32 %v4914, %v4916
      %v4918 = vadd.f32 %v4914, %v4917
      %vm4919 = vweird.f32 %v4901
      %vm4920 = vweird.f32 %v4914
      %vm4921 = vmor %vm4919, %vm4920
      %v4922 = vsel %vm4921, %v4914, %v4918
      %v4923 = vand.u32 2147483647, %v4901
      %vm4924 = vcmp.eq.f32.partialorder %v4923, 8.507059e+37
      %v4925 = vand.u32 %v4901, 2147483648
      %v4926 = vor.u32 1.1754944e-38, %v4925
      %v4927 = vsel %vm4924, %v4926, %v4922
      %v4928 = vrcp.pop %v4903
      %v4929 = vmul.f32 %v4903, %v4928
      %v4930 = vsub.f32 1.0, %v4929
      %v4931 = vmul.f32 %v4928, %v4930
      %v4932 = vadd.f32 %v4928, %v4931
      %vm4933 = vweird.f32 %v4903
      %vm4934 = vweird.f32 %v4928
      %vm4935 = vmor %vm4933, %vm4934
      %v4936 = vsel %vm4935, %v4928, %v4932
      %v4937 = vand.u32 2147483647, %v4903
      %vm4938 = vcmp.eq.f32.partialorder %v4937, 8.507059e+37
      %v4939 = vand.u32 %v4903, 2147483648
      %v4940 = vor.u32 1.1754944e-38, %v4939
      %v4941 = vsel %vm4938, %v4940, %v4936
      %v4942 = vrcp.pop %v4905
      %v4943 = vmul.f32 %v4905, %v4942
      %v4944 = vsub.f32 1.0, %v4943
      %v4945 = vmul.f32 %v4942, %v4944
      %v4946 = vadd.f32 %v4942, %v4945
      %vm4947 = vweird.f32 %v4905
      %vm4948 = vweird.f32 %v4942
      %vm4949 = vmor %vm4947, %vm4948
      %v4950 = vsel %vm4949, %v4942, %v4946
      %v4951 = vand.u32 2147483647, %v4905
      %vm4952 = vcmp.eq.f32.partialorder %v4951, 8.507059e+37
      %v4953 = vand.u32 %v4905, 2147483648
      %v4954 = vor.u32 1.1754944e-38, %v4953
      %v4955 = vsel %vm4952, %v4954, %v4950
      %v4956 = vrcp.pop %v4907
      %v4957 = vmul.f32 %v4907, %v4956
      %v4958 = vsub.f32 1.0, %v4957
      %v4959 = vmul.f32 %v4956, %v4958
      %v4960 = vadd.f32 %v4956, %v4959
      %vm4961 = vweird.f32 %v4907
      %vm4962 = vweird.f32 %v4956
      %vm4963 = vmor %vm4961, %vm4962
      %v4964 = vsel %vm4963, %v4956, %v4960
      %v4965 = vand.u32 2147483647, %v4907
      %vm4966 = vcmp.eq.f32.partialorder %v4965, 8.507059e+37
      %v4967 = vand.u32 %v4907, 2147483648
      %v4968 = vor.u32 1.1754944e-38, %v4967
      %v4969 = vsel %vm4966, %v4968, %v4964
      %v4970 = vrcp.pop %v4909
      %v4971 = vmul.f32 %v4909, %v4970
      %v4972 = vsub.f32 1.0, %v4971
      %v4973 = vmul.f32 %v4970, %v4972
      %v4974 = vadd.f32 %v4970, %v4973
      %vm4975 = vweird.f32 %v4909
      %vm4976 = vweird.f32 %v4970
      %vm4977 = vmor %vm4975, %vm4976
      %v4978 = vsel %vm4977, %v4970, %v4974
      %v4979 = vand.u32 2147483647, %v4909
      %vm4980 = vcmp.eq.f32.partialorder %v4979, 8.507059e+37
      %v4981 = vand.u32 %v4909, 2147483648
      %v4982 = vor.u32 1.1754944e-38, %v4981
      %v4983 = vsel %vm4980, %v4982, %v4978
      %v4984 = vrcp.pop %v4911
      %v4985 = vmul.f32 %v4911, %v4984
      %v4986 = vsub.f32 1.0, %v4985
      %v4987 = vmul.f32 %v4984, %v4986
      %v4988 = vadd.f32 %v4984, %v4987
      %vm4989 = vweird.f32 %v4911
      %vm4990 = vweird.f32 %v4984
      %vm4991 = vmor %vm4989, %vm4990
      %v4992 = vsel %vm4991, %v4984, %v4988
      %v4993 = vand.u32 2147483647, %v4911
      %vm4994 = vcmp.eq.f32.partialorder %v4993, 8.507059e+37
      %v4995 = vand.u32 %v4911, 2147483648
      %v4996 = vor.u32 1.1754944e-38, %v4995
      %v4997 = vsel %vm4994, %v4996, %v4992
      %v4998 = vrcp.pop %v4913
      %v4999 = vmul.f32 %v4913, %v4998
      %v5000 = vsub.f32 1.0, %v4999
      %v5001 = vmul.f32 %v4998, %v5000
      %v5002 = vadd.f32 %v4998, %v5001
      %vm5003 = vweird.f32 %v4913
      %vm5004 = vweird.f32 %v4998
      %vm5005 = vmor %vm5003, %vm5004
      %v5006 = vsel %vm5005, %v4998, %v5002
      %v5007 = vand.u32 2147483647, %v4913
      %vm5008 = vcmp.eq.f32.partialorder %v5007, 8.507059e+37
      %v5009 = vand.u32 %v4913, 2147483648
      %v5010 = vor.u32 1.1754944e-38, %v5009
      %v5011 = vsel %vm5008, %v5010, %v5006
      %v5012 = vmul.f32 %v4887, %v4927
      %v5013 = vmul.f32 %v4889, %v4941
      %v5014 = vmul.f32 %v4891, %v4955
      %v5015 = vmul.f32 %v4893, %v4969
      %v5016 = vmul.f32 %v4895, %v4983
      %v5017 = vmul.f32 %v4897, %v4997
      %v5018 = vmul.f32 %v4899, %v5011
      %v5019 = vmul.f32 %v5012, %v3092
      %v5020 = vmul.f32 %v5013, %v3093
      %v5021 = vmul.f32 %v5014, %v3094
      %v5022 = vmul.f32 %v5015, %v3095
      %v5023 = vmul.f32 %v5016, %v3096
      %v5024 = vmul.f32 %v5017, %v3097
      %v5025 = vmul.f32 %v5018, %v3098
      %5026 = vst [vmem:[%s836 + $0xa8] sm:$0xff] %v5019
      %5027 = vst [vmem:[%s836 + $0xb0] sm:$0xff] %v5020
      %5028 = vst [vmem:[%s836 + $0xb8] sm:$0xff] %v5021
      %5029 = vst [vmem:[%s836 + $0xc0] sm:$0xff] %v5022
      %5030 = vst [vmem:[%s836 + $0xc8] sm:$0xff] %v5023
      %5031 = vst [vmem:[%s836 + $0xd0] sm:$0xff] %v5024
      %5032 = vst [vmem:[%s836 + $0xd8] sm:$0xff] %v5025
      %5033 = vxpose.xlu0.b32.start [1/16] %v5019, 128
      %5034 = vxpose.xlu0.b32.cont [2/16] %v5020, 128
      %5035 = vxpose.xlu0.b32.cont [3/16] %v5021, 128
      %5036 = vxpose.xlu0.b32.cont [4/16] %v5022, 128
      %5037 = vxpose.xlu0.b32.cont [5/16] %v5023, 128
      %5038 = vxpose.xlu0.b32.cont [6/16] %v5024, 128
      %5039 = vxpose.xlu0.b32.cont [7/16] %v5025, 128
      %5040 = vxpose.xlu0.b32.cont [8/16] 0.0, 128
      %5041 = vxpose.xlu0.b32.cont [9/16] 0.0, 128
      %5042 = vxpose.xlu0.b32.cont [10/16] 0.0, 128
      %5043 = vxpose.xlu0.b32.cont [11/16] 0.0, 128
      %5044 = vxpose.xlu0.b32.cont [12/16] 0.0, 128
      %5045 = vxpose.xlu0.b32.cont [13/16] 0.0, 128
      %5046 = vxpose.xlu0.b32.cont [14/16] 0.0, 128
      %5047 = vxpose.xlu0.b32.cont [15/16] 0.0, 128
      %5048 = vxpose.xlu0.b32.end [16/16] 0.0, 128
      %v5049 = vpop.trf.xlu0
      %v5050 = vpop.trf.xlu0
      %v5051 = vpop.trf.xlu0
      %v5052 = vpop.trf.xlu0
      %v5053 = vpop.trf.xlu0
      %v5054 = vpop.trf.xlu0
      %v5055 = vpop.trf.xlu0
      %v5056 = vpop.trf.xlu0
      %v5057 = vpop.trf.xlu0
      %v5058 = vpop.trf.xlu0
      %v5059 = vpop.trf.xlu0
      %v5060 = vpop.trf.xlu0
      %v5061 = vpop.trf.xlu0
      %v5062 = vpop.trf.xlu0
      %v5063 = vpop.trf.xlu0
      %v5064 = vpop.trf.xlu0
      %v5066 = vsel %vm3437, %v5049, 0
      %v5069 = vsel %vm3437, %v5050, 0
      %v5072 = vsel %vm3437, %v5051, 0
      %v5075 = vsel %vm3437, %v5052, 0
      %v5078 = vsel %vm3437, %v5053, 0
      %v5081 = vsel %vm3437, %v5054, 0
      %v5084 = vsel %vm3437, %v5055, 0
      %v5087 = vsel %vm3437, %v5056, 0
      %v5090 = vsel %vm3437, %v5057, 0
      %v5093 = vsel %vm3437, %v5058, 0
      %v5096 = vsel %vm3437, %v5059, 0
      %v5099 = vsel %vm3437, %v5060, 0
      %v5102 = vsel %vm3437, %v5061, 0
      %v5105 = vsel %vm3437, %v5062, 0
      %v5108 = vsel %vm3437, %v5063, 0
      %v5111 = vsel %vm3437, %v5064, 0
      %5113 = vmatpush.msra.mxu0 0.0
      %5114 = vmatpush.msra.mxu0 0.0
      %5115 = vmatpush.msra.mxu0 0.0
      %5116 = vmatpush.msra.mxu0 0.0
      %5117 = vmatpush.msra.mxu0 0.0
      %5118 = vmatpush.msra.mxu0 0.0
      %5119 = vmatpush.msra.mxu0 0.0
      %5120 = vmatpush.msra.mxu0 0.0
      %5121 = vmatpush.msra.mxu0 0.0
      %5122 = vmatpush.msra.mxu0 %v2534
      %5123 = vmatpush.msra.mxu0 %v2533
      %5124 = vmatpush.msra.mxu0 %v2532
      %5125 = vmatpush.msra.mxu0 %v2531
      %5126 = vmatpush.msra.mxu0 %v2530
      %5127 = vmatpush.msra.mxu0 %v2529
      %5128 = vmatpush.msra.mxu0 %v2528
      %5129 = vmatmul.f32.gmra.mxu0 %v5066
      %v5130 = vpop.f32.mrf.mxu0
      %v5131 = vadd.f32 0.0, %v5130
      %5132 = vmatmul.f32.gmra.mxu0 %v5069
      %v5133 = vpop.f32.mrf.mxu0
      %v5134 = vadd.f32 0.0, %v5133
      %5135 = vmatmul.f32.gmra.mxu0 %v5072
      %v5136 = vpop.f32.mrf.mxu0
      %v5137 = vadd.f32 0.0, %v5136
      %5138 = vmatmul.f32.gmra.mxu0 %v5075
      %v5139 = vpop.f32.mrf.mxu0
      %v5140 = vadd.f32 0.0, %v5139
      %5141 = vmatmul.f32.gmra.mxu0 %v5078
      %v5142 = vpop.f32.mrf.mxu0
      %v5143 = vadd.f32 0.0, %v5142
      %5144 = vmatmul.f32.gmra.mxu0 %v5081
      %v5145 = vpop.f32.mrf.mxu0
      %v5146 = vadd.f32 0.0, %v5145
      %5147 = vmatmul.f32.gmra.mxu0 %v5084
      %v5148 = vpop.f32.mrf.mxu0
      %v5149 = vadd.f32 0.0, %v5148
      %5150 = vmatmul.f32.gmra.mxu0 %v5087
      %v5151 = vpop.f32.mrf.mxu0
      %v5152 = vadd.f32 0.0, %v5151
      %5153 = vmatmul.f32.gmra.mxu0 %v5090
      %v5154 = vpop.f32.mrf.mxu0
      %v5155 = vadd.f32 0.0, %v5154
      %5156 = vmatmul.f32.gmra.mxu0 %v5093
      %v5157 = vpop.f32.mrf.mxu0
      %v5158 = vadd.f32 0.0, %v5157
      %5159 = vmatmul.f32.gmra.mxu0 %v5096
      %v5160 = vpop.f32.mrf.mxu0
      %v5161 = vadd.f32 0.0, %v5160
      %5162 = vmatmul.f32.gmra.mxu0 %v5099
      %v5163 = vpop.f32.mrf.mxu0
      %v5164 = vadd.f32 0.0, %v5163
      %5165 = vmatmul.f32.gmra.mxu0 %v5102
      %v5166 = vpop.f32.mrf.mxu0
      %v5167 = vadd.f32 0.0, %v5166
      %5168 = vmatmul.f32.gmra.mxu0 %v5105
      %v5169 = vpop.f32.mrf.mxu0
      %v5170 = vadd.f32 0.0, %v5169
      %5171 = vmatmul.f32.gmra.mxu0 %v5108
      %v5172 = vpop.f32.mrf.mxu0
      %v5173 = vadd.f32 0.0, %v5172
      %5174 = vmatmul.f32.gmra.mxu0 %v5111
      %v5175 = vpop.f32.mrf.mxu0
      %v5176 = vadd.f32 0.0, %v5175
      %5177 = vdwg.mxu0
      %v5178 = vmul.f32 %v3551, %v5131
      %v5179 = vmul.f32 %v3551, %v5134
      %v5180 = vmul.f32 %v3551, %v5137
      %v5181 = vmul.f32 %v3551, %v5140
      %v5182 = vmul.f32 %v3551, %v5143
      %v5183 = vmul.f32 %v3551, %v5146
      %v5184 = vmul.f32 %v3551, %v5149
      %v5185 = vmul.f32 %v3551, %v5152
      %v5186 = vmul.f32 %v3551, %v5155
      %v5187 = vmul.f32 %v3551, %v5158
      %v5188 = vmul.f32 %v3551, %v5161
      %v5189 = vmul.f32 %v3551, %v5164
      %v5190 = vmul.f32 %v3551, %v5167
      %v5191 = vmul.f32 %v3551, %v5170
      %v5192 = vmul.f32 %v3551, %v5173
      %v5193 = vmul.f32 %v3551, %v5176
      %v5194 = vadd.f32 %v5178, %v916
      %v5195 = vadd.f32 %v5179, %v917
      %v5196 = vadd.f32 %v5180, %v918
      %v5197 = vadd.f32 %v5181, %v919
      %v5198 = vadd.f32 %v5182, %v920
      %v5199 = vadd.f32 %v5183, %v921
      %v5200 = vadd.f32 %v5184, %v922
      %v5201 = vadd.f32 %v5185, %v923
      %v5202 = vadd.f32 %v5186, %v924
      %v5203 = vadd.f32 %v5187, %v925
      %v5204 = vadd.f32 %v5188, %v926
      %v5205 = vadd.f32 %v5189, %v927
      %v5206 = vadd.f32 %v5190, %v928
      %v5207 = vadd.f32 %v5191, %v929
      %v5208 = vadd.f32 %v5192, %v930
      %v5209 = vadd.f32 %v5193, %v931
      %5210 = vst [vmem:[%s830 + $0x180] sm:$0xff] %v5194
      %5211 = vst [vmem:[%s830 + $0x188] sm:$0xff] %v5195
      %5212 = vst [vmem:[%s830 + $0x190] sm:$0xff] %v5196
      %5213 = vst [vmem:[%s830 + $0x198] sm:$0xff] %v5197
      %5214 = vst [vmem:[%s830 + $0x1a0] sm:$0xff] %v5198
      %5215 = vst [vmem:[%s830 + $0x1a8] sm:$0xff] %v5199
      %5216 = vst [vmem:[%s830 + $0x1b0] sm:$0xff] %v5200
      %5217 = vst [vmem:[%s830 + $0x1b8] sm:$0xff] %v5201
      %5218 = vst [vmem:[%s830 + $0x1c0] sm:$0xff] %v5202
      %5219 = vst [vmem:[%s830 + $0x1c8] sm:$0xff] %v5203
      %5220 = vst [vmem:[%s830 + $0x1d0] sm:$0xff] %v5204
      %5221 = vst [vmem:[%s830 + $0x1d8] sm:$0xff] %v5205
      %5222 = vst [vmem:[%s830 + $0x1e0] sm:$0xff] %v5206
      %5223 = vst [vmem:[%s830 + $0x1e8] sm:$0xff] %v5207
      %5224 = vst [vmem:[%s830 + $0x1f0] sm:$0xff] %v5208
      %5225 = vst [vmem:[%s830 + $0x1f8] sm:$0xff] %v5209
      %5226 = vmatpush.msra.mxu0 %v2947
      %5227 = vmatpush.msra.mxu0 %v2946
      %5228 = vmatpush.msra.mxu0 %v2945
      %5229 = vmatpush.msra.mxu0 %v2944
      %5230 = vmatpush.msra.mxu0 %v2943
      %5231 = vmatpush.msra.mxu0 %v2942
      %5232 = vmatpush.msra.mxu0 %v2941
      %5233 = vmatpush.msra.mxu0 %v2940
      %5234 = vmatpush.msra.mxu0 %v2939
      %5235 = vmatpush.msra.mxu0 %v2938
      %5236 = vmatpush.msra.mxu0 %v2937
      %5237 = vmatpush.msra.mxu0 %v2936
      %5238 = vmatpush.msra.mxu0 %v2935
      %5239 = vmatpush.msra.mxu0 %v2934
      %5240 = vmatpush.msra.mxu0 %v2933
      %5241 = vmatpush.msra.mxu0 %v2932
      %5242 = vmatmul.f32.gmra.mxu0 %v5019
      %v5243 = vpop.f32.mrf.mxu0
      %v5244 = vadd.f32 0.0, %v5243
      %5245 = vmatmul.f32.gmra.mxu0 %v5020
      %v5246 = vpop.f32.mrf.mxu0
      %v5247 = vadd.f32 0.0, %v5246
      %5248 = vmatmul.f32.gmra.mxu0 %v5021
      %v5249 = vpop.f32.mrf.mxu0
      %v5250 = vadd.f32 0.0, %v5249
      %5251 = vmatmul.f32.gmra.mxu0 %v5022
      %v5252 = vpop.f32.mrf.mxu0
      %v5253 = vadd.f32 0.0, %v5252
      %5254 = vmatmul.f32.gmra.mxu0 %v5023
      %v5255 = vpop.f32.mrf.mxu0
      %v5256 = vadd.f32 0.0, %v5255
      %5257 = vmatmul.f32.gmra.mxu0 %v5024
      %v5258 = vpop.f32.mrf.mxu0
      %v5259 = vadd.f32 0.0, %v5258
      %5260 = vmatmul.f32.gmra.mxu0 %v5025
      %v5261 = vpop.f32.mrf.mxu0
      %v5262 = vadd.f32 0.0, %v5261
      %5263 = vdwg.mxu0
      %5264 = vst [vmem:[%s824 + $0x158] sm:$0xff] %v5244
      %5265 = vst [vmem:[%s824 + $0x168] sm:$0xff] %v5247
      %5266 = vst [vmem:[%s824 + $0x178] sm:$0xff] %v5250
      %5267 = vst [vmem:[%s824 + $0x188] sm:$0xff] %v5253
      %5268 = vst [vmem:[%s824 + $0x198] sm:$0xff] %v5256
      %5269 = vst [vmem:[%s824 + $0x1a8] sm:$0xff] %v5259
      %5270 = vst [vmem:[%s824 + $0x1b8] sm:$0xff] %v5262
      %s5271 = smul.u32 28, %s34
      %p5272 = scmp.lt.s32.totalorder %s5271, 55
      %s5273 = scalar_select %p5272, %s5271, 55
      %s5274 = smul.addr %s5273, 2
      %s5275 = smul.addr %s5274, 8
      %s5276 = scalar_lea.vmem %s19, %s5275
      %s5277 = smul.u32 64, %s34
      %p5278 = scmp.lt.s32.totalorder %s5277, 127
      %s5279 = scalar_select %p5278, %s5277, 127
      %s5280 = smul.addr %s5279, 8
      %s5281 = scalar_lea.vmem %s20, %s5280
      %s5282 = smul.u32 28, %s34
      %p5283 = scmp.lt.s32.totalorder %s5282, 55
      %s5284 = scalar_select %p5283, %s5282, 55
      %s5285 = smul.addr %s5284, 8
      %s5286 = scalar_lea.vmem %s21, %s5285
      // Predicated region
      $region97: #{si_gnn_forward.1} parent=95 // pred_check
        %p5287 = pneg %p491
      $region98: #{si_gnn_forward.1} parent=95 // pred_check_branch
        %5289 = sbr.rel (%p5287) target = $region100
      $region99: #{si_gnn_forward.1} parent=95 // pred_region
        %s5290 = smul.u32 28, %s34
      $region100: #{si_gnn_forward.1} parent=95 // pred_fallthru
        _
      // Predicated region
      $region101: #{si_gnn_forward.1} parent=95 // pred_check
        %p5291 = pneg %p517
      $region102: #{si_gnn_forward.1} parent=95 // pred_check_branch
        %5293 = sbr.rel (%p5291) target = $region104
      $region103: #{si_gnn_forward.1} parent=95 // pred_region
        %s5294 = smul.u32 64, %s34
      $region104: #{si_gnn_forward.1} parent=95 // pred_fallthru
        _
      // Predicated region
      $region105: #{si_gnn_forward.1} parent=95 // pred_check
        %p5295 = pneg %p543
      $region106: #{si_gnn_forward.1} parent=95 // pred_check_branch
        %5297 = sbr.rel (%p5295) target = $region108
      $region107: #{si_gnn_forward.1} parent=95 // pred_region
        %s5298 = smul.u32 28, %s34
      $region108: #{si_gnn_forward.1} parent=95 // pred_fallthru
        _
    $region96: #{si_gnn_forward.1} parent=5 // pred_fallthru
      _
    %p5299 = scmp.le.s32.totalorder 2, %s29
    // Predicated region
    $region109: #{si_gnn_forward.1} parent=5 // pred_check
      %p5300 = pneg %p5299
    $region110: #{si_gnn_forward.1} parent=5 // pred_check_branch
      %5302 = sbr.rel (%p5300) target = $region112
    $region111: #{si_gnn_forward.1} parent=5 // pred_region
      %s5303 = ssub.s32 %s29, 2
      // Predicated region
      $region113: #{si_gnn_forward.1} parent=111 // pred_check
        %p5304 = pneg %p497
      $region114: #{si_gnn_forward.1} parent=111 // pred_check_branch
        %5306 = sbr.rel (%p5304) target = $region116
      $region115: #{si_gnn_forward.1} parent=111 // pred_region
        %s5307 = smul.u32 28, %s35
        %p5308 = scmp.lt.s32.totalorder %s5307, 55
        %s5309 = scalar_select %p5308, %s5307, 55
        %s5310 = smul.addr %s5309, 2
        %s5311 = smul.addr %s5310, 8
        %s5312 = scalar_lea.vmem %s19, %s5311
      $region116: #{si_gnn_forward.1} parent=111 // pred_fallthru
        _
      // Predicated region
      $region117: #{si_gnn_forward.1} parent=111 // pred_check
        %p5313 = pneg %p523
      $region118: #{si_gnn_forward.1} parent=111 // pred_check_branch
        %5315 = sbr.rel (%p5313) target = $region120
      $region119: #{si_gnn_forward.1} parent=111 // pred_region
        %s5316 = smul.u32 64, %s35
        %p5317 = scmp.lt.s32.totalorder %s5316, 127
        %s5318 = scalar_select %p5317, %s5316, 127
        %s5319 = smul.addr %s5318, 8
        %s5320 = scalar_lea.vmem %s20, %s5319
      $region120: #{si_gnn_forward.1} parent=111 // pred_fallthru
        _
      // Predicated region
      $region121: #{si_gnn_forward.1} parent=111 // pred_check
        %p5321 = pneg %p549
      $region122: #{si_gnn_forward.1} parent=111 // pred_check_branch
        %5323 = sbr.rel (%p5321) target = $region124
      $region123: #{si_gnn_forward.1} parent=111 // pred_region
        %s5324 = smul.u32 28, %s35
        %p5325 = scmp.lt.s32.totalorder %s5324, 55
        %s5326 = scalar_select %p5325, %s5324, 55
        %s5327 = smul.addr %s5326, 8
        %s5328 = scalar_lea.vmem %s21, %s5327
      $region124: #{si_gnn_forward.1} parent=111 // pred_fallthru
        _
    $region112: #{si_gnn_forward.1} parent=5 // pred_fallthru
      _
  $region6: #{si_gnn_forward.1} parent=0 // loop_footer
    %s33 = sadd.s32 1, %s29
  $region7: #{si_gnn_forward.1} parent=0 // loop_footer_branch
    %28 = sbr.rel target = $region3
  $region8: #{si_gnn_forward.1} parent=0 // loop_exit
    _

</llo_original>
